<compile_context>
chip_gen: v6e
topology: v6e:2x2x1
jax: 0.10.0
libtpu: 0.0.40
codegen_flags: <defaults>
</compile_context>

<pallas_src>
import functools

import numpy as np
import jax
import jax.numpy as jnp
from jax.experimental import pallas as pl
from jax.experimental.pallas import tpu as pltpu


def _ru128(n):
    return ((n + 127) // 128) * 128


# ----------------------------- Pallas kernel ------------------------------- #

def vae_kernel(x_ref, w_ref, b_ref, recons_ref, onehot_ref, logits_ref,
               *, H, D, L):
    B = x_ref.shape[0]
    H2, H3, H8 = 2 * H, 3 * H, 8 * H
    f32 = jnp.float32

    # static row offsets into the weight slab (see _pack_weights)
    r_step, r_h2t, r_t2h, r_mean = 0, 3 * H, 5 * H, 5 * H + D
    # static lane offsets into the bias slab (see _pack_biases)
    o_h2t = _ru128(H8)
    o_t2h = o_h2t + _ru128(D)
    o_mean = o_t2h + _ru128(H)

    # Loop-invariant broadcasts, hoisted once (a handful of vregs only).
    b_step = jnp.broadcast_to(b_ref[0:1, 0:H8], (B, H8))
    b_h2t = jnp.broadcast_to(b_ref[0:1, o_h2t:o_h2t + D], (B, D))
    b_t2h = jnp.broadcast_to(b_ref[0:1, o_t2h:o_t2h + H], (B, H))
    lane = jax.lax.broadcasted_iota(jnp.int32, (B, D), 1)
    zeros_h = jnp.zeros((B, H), f32)

    def gru_gates(g, h, W):
        # g columns: [r(W) | z(W) | n_i(W) | n_h(W)]   (biases already added)
        rz = jax.nn.sigmoid(g[:, :2 * W])            # one sigmoid, 2W lanes
        r, z = rz[:, :W], rz[:, W:]
        n = jnp.tanh(g[:, 2 * W:3 * W] + r * g[:, 3 * W:])
        return (1.0 - z) * n + z * h

    # Packed hidden state [h_enc | h_dec]; encoder hidden starts at the input.
    h = jnp.concatenate([x_ref[...], zeros_h], axis=1)          # (B, 2H)
    # token_to_hidden embedding: encoder-step-t input == decoder-step-(t-1) input
    e = zeros_h

    # Interleaved recurrence: iteration t runs encoder step t and decoder step
    # t-1 together as ONE matmul with interleaved enc/dec gate columns.
    # t == 0 keeps the decoder hidden at zero; t == L is the trailing
    # decoder-only step (its encoder half is computed but unused).
    for t in range(L + 1):                                      # static unroll
        op = jnp.concatenate([e, h], axis=1)                    # (B, 3H)
        # Weights are re-read from VMEM at every use (never hoisted into
        # values) to keep vreg pressure low across the unroll.
        g = jnp.dot(op, w_ref[r_step:r_step + H3, :],
                    preferred_element_type=f32) + b_step        # (B, 8H)
        h_new = gru_gates(g, h, H2)
        if t == 0:
            # Decoder has not taken its first step yet -> keep h_dec = 0
            # (exact for arbitrary biases, not just zero-initialized ones).
            h = jnp.concatenate([h_new[:, :H], zeros_h], axis=1)
        else:
            h = h_new

        if t < L:
            # hidden_to_token on the packed state (decoder rows of the padded
            # weight are zero, so this is exactly h_enc @ W_h2t^T + b).
            pre = jnp.dot(h, w_ref[r_h2t:r_h2t + H2, 0:D],
                          preferred_element_type=f32) + b_h2t   # (B, D)

            # token path (off the exp/div chain; argmax(pre) == argmax(softmax))
            word = jnp.argmax(pre, axis=-1)
            onehot = (lane == word[:, None]).astype(f32)

            # softmax(pre) feeds the `logits` output only
            m = jnp.max(pre, axis=-1, keepdims=True)
            ex = jnp.exp(pre - m)
            soft = ex * pl.reciprocal(jnp.sum(ex, axis=-1, keepdims=True),
                                      approx=False)

            # lane-dense output slabs: column block t*D:(t+1)*D
            logits_ref[:, t * D:(t + 1) * D] = soft
            onehot_ref[:, t * D:(t + 1) * D] = onehot

            # token_to_hidden(onehot): feeds encoder step t+1 and decoder step t
            e = jnp.dot(onehot, w_ref[r_t2h:r_t2h + D, 0:H],
                        preferred_element_type=f32) + b_t2h     # (B, H)

    # output_mean(h_dec); eval-mode reparameterize returns mu.
    # TODO(synk): training-mode gumbel_softmax sampling and reparameterize
    # noise (eps * exp(0.5*logvar)) are stochastic; eval semantics used.
    h_dec = h[:, H:]
    b_mean = jnp.broadcast_to(b_ref[0:1, o_mean:o_mean + H], (B, H))
    recons_ref[...] = jnp.dot(h_dec, w_ref[r_mean:r_mean + H, 0:H],
                              preferred_element_type=f32) + b_mean


# ------------------------- host-side weight packing ------------------------ #

def _split3(w, H):
    return w[..., :H], w[..., H:2 * H], w[..., 2 * H:]


def _pack_weights(params, H, D):
    """One (6H+D, 8H) slab: [w_step ; h2t_pad ; t2h ; mean] (cols zero-padded)."""
    f32 = jnp.float32
    zHH = jnp.zeros((H, H), f32)

    eir, eiz, ein = _split3(params["enc_wih_t"], H)
    ehr, ehz, ehn = _split3(params["enc_whh_t"], H)
    dir_, diz, din = _split3(params["dec_wih_t"], H)
    dhr, dhz, dhn = _split3(params["dec_whh_t"], H)

    # Packed per-step GRU weight (3H, 8H); operand rows = [e | h_enc | h_dec],
    # output columns = [r_e|r_d|z_e|z_d|ni_e|ni_d|nh_e|nh_d] (H-lane blocks).
    w_step = jnp.concatenate([
        jnp.concatenate([eir, dir_, eiz, diz, ein, din, zHH, zHH], axis=1),
        jnp.concatenate([ehr, zHH, ehz, zHH, zHH, zHH, ehn, zHH], axis=1),
        jnp.concatenate([zHH, dhr, zHH, dhz, zHH, zHH, zHH, dhn], axis=1),
    ], axis=0)

    width = 8 * H

    def pad_cols(w):
        return jnp.pad(w, ((0, 0), (0, width - w.shape[1])))

    # hidden_to_token padded with zero rows so it consumes the packed state
    h2t_pad = jnp.concatenate([params["h2t_w_t"], jnp.zeros((H, D), f32)], axis=0)

    return jnp.concatenate([
        w_step,                         # rows 0    : 3H
        pad_cols(h2t_pad),              # rows 3H   : 5H    (cols 0:D)
        pad_cols(params["t2h_w_t"]),    # rows 5H   : 5H+D  (cols 0:H)
        pad_cols(params["mean_w_t"]),   # rows 5H+D : 6H+D  (cols 0:H)
    ], axis=0)


def _pack_biases(params, H, D):
    """One (1, ~640) lane-aligned slab: [b_step | h2t_b | t2h_b | mean_b]."""
    eir, eiz, ein = _split3(params["enc_bih"], H)
    ehr, ehz, ehn = _split3(params["enc_bhh"], H)
    dir_, diz, din = _split3(params["dec_bih"], H)
    dhr, dhz, dhn = _split3(params["dec_bhh"], H)

    # r/z biases folded; n-gate keeps input/hidden parts separate (for r*(.)).
    b_step = jnp.concatenate([eir + ehr, dir_ + dhr, eiz + ehz, diz + dhz,
                              ein, din, ehn, dhn], axis=1)       # (1, 8H)

    def seg(b):
        return jnp.pad(b, ((0, 0), (0, _ru128(b.shape[1]) - b.shape[1])))

    return jnp.concatenate([seg(b_step), seg(params["h2t_b"]),
                            seg(params["t2h_b"]), seg(params["mean_b"])], axis=1)


# ------------------------------ JAX wrapper -------------------------------- #

@functools.partial(jax.jit, static_argnums=2)
def vae_forward(x, params, word_length):
    B, H = x.shape
    D = params["h2t_w_t"].shape[1]
    L = word_length

    w_slab = _pack_weights(params, H, D)          # (6H+D, 8H)
    b_slab = _pack_biases(params, H, D)           # (1, ru128(8H)+3*128)

    vspec = pl.BlockSpec(memory_space=pltpu.MemorySpace.VMEM)
    out_shape = (
        jax.ShapeDtypeStruct((B, H), jnp.float32),        # recons
        jax.ShapeDtypeStruct((B, L * D), jnp.float32),    # one-hot slab
        jax.ShapeDtypeStruct((B, L * D), jnp.float32),    # logits slab
    )
    recons, onehot_slab, logits_slab = pl.pallas_call(
        functools.partial(vae_kernel, H=H, D=D, L=L),
        out_shape=out_shape,
        in_specs=[vspec, vspec, vspec],
        out_specs=(vspec, vspec, vspec),
    )(x, w_slab, b_slab)

    # free reshape back to PyTorch convention [B, L, D]; messages from the one-hot
    one_hot_tokens = onehot_slab.reshape(B, L, D)
    logits = logits_slab.reshape(B, L, D)
    messages = jnp.argmax(one_hot_tokens, axis=-1).astype(jnp.int32)
    return recons, one_hot_tokens, logits, messages


# ---------------------- deterministic parameter init ----------------------- #

def init_params(key, H, D):
    ks = jax.random.split(key, 7)

    def kaiming(k, shape, gain):
        fan_in = shape[1]
        return (gain / np.sqrt(fan_in)) * jax.random.normal(k, shape, dtype=jnp.float32)

    g_tanh = 5.0 / 3.0        # kaiming_normal_(nonlinearity='tanh')
    g_relu = np.sqrt(2.0)     # kaiming_normal_(nonlinearity='relu')

    enc_wih = kaiming(ks[0], (3 * H, H), g_tanh)   # GRUCell weight_ih
    enc_whh = kaiming(ks[1], (3 * H, H), g_tanh)   # GRUCell weight_hh
    dec_wih = kaiming(ks[2], (3 * H, H), g_tanh)
    dec_whh = kaiming(ks[3], (3 * H, H), g_tanh)
    h2t_w = kaiming(ks[4], (D, H), g_relu)         # hidden_to_token
    t2h_w = kaiming(ks[5], (H, D), g_relu)         # token_to_hidden
    mean_w = kaiming(ks[6], (H, H), g_relu)        # output_mean
    # all Linear / GRUCell biases -> zeros (per init_weights)

    return dict(
        enc_wih_t=enc_wih.T, enc_whh_t=enc_whh.T,
        enc_bih=jnp.zeros((1, 3 * H), jnp.float32),
        enc_bhh=jnp.zeros((1, 3 * H), jnp.float32),
        h2t_w_t=h2t_w.T, h2t_b=jnp.zeros((1, D), jnp.float32),
        t2h_w_t=t2h_w.T, t2h_b=jnp.zeros((1, H), jnp.float32),
        dec_wih_t=dec_wih.T, dec_whh_t=dec_whh.T,
        dec_bih=jnp.zeros((1, 3 * H), jnp.float32),
        dec_bhh=jnp.zeros((1, 3 * H), jnp.float32),
        mean_w_t=mean_w.T, mean_b=jnp.zeros((1, H), jnp.float32),
    )


# --------------------------- pure-JAX reference ----------------------------- #

def vae_reference(x, params, word_length):
    P = jax.lax.Precision.HIGHEST
    B, H = x.shape
    D = params["h2t_w_t"].shape[1]

    def gru(xi, h, wih, whh, bih, bhh):
        gi = jnp.dot(xi, wih, precision=P) + bih
        gh = jnp.dot(h, whh, precision=P) + bhh
        r = jax.nn.sigmoid(gi[:, :H] + gh[:, :H])
        z = jax.nn.sigmoid(gi[:, H:2 * H] + gh[:, H:2 * H])
        n = jnp.tanh(gi[:, 2 * H:] + r * gh[:, 2 * H:])
        return (1.0 - z) * n + z * h

    hx = x
    gru_in = jnp.zeros((B, H), jnp.float32)
    logits, onehots, msgs, embs = [], [], [], []
    for _ in range(word_length):
        hx = gru(gru_in, hx, params["enc_wih_t"], params["enc_whh_t"],
                 params["enc_bih"], params["enc_bhh"])
        pre = jnp.dot(hx, params["h2t_w_t"], precision=P) + params["h2t_b"]
        soft = jax.nn.softmax(pre, axis=-1)
        word = jnp.argmax(soft, axis=-1)
        oh = jax.nn.one_hot(word, D, dtype=jnp.float32)
        logits.append(soft); onehots.append(oh); msgs.append(word)
        gru_in = jnp.dot(oh, params["t2h_w_t"], precision=P) + params["t2h_b"]
        embs.append(gru_in)

    hx2 = jnp.zeros((B, H), jnp.float32)
    for n in range(word_length):
        hx2 = gru(embs[n], hx2, params["dec_wih_t"], params["dec_whh_t"],
                  params["dec_bih"], params["dec_bhh"])
    mu = jnp.dot(hx2, params["mean_w_t"], precision=P) + params["mean_b"]
    return (mu,
            jnp.stack(onehots, 1),
            jnp.stack(logits, 1),
            jnp.stack(msgs, 1).astype(jnp.int32))


# --------------------------------- main ------------------------------------ #

if __name__ == "__main__":
    # batch (fills the 8 sublanes), input_size, word_length, dictionary_size
    B, H, L, D = 8, 32, 8, 16

    key = jax.random.PRNGKey(0)
    kx, kp = jax.random.split(key)
    x = jax.random.normal(kx, (B, H), dtype=jnp.float32)
    params = init_params(kp, H, D)

    recons, one_hot_tokens, logits, messages = jax.block_until_ready(
        vae_forward(x, params, L))

    # sanity against a pure-JAX reference of the same eval-mode semantics
    r_rec, r_oh, r_lg, r_ms = vae_reference(x, params, L)
    np.testing.assert_allclose(np.asarray(recons), np.asarray(r_rec),
                               atol=1e-2, rtol=1e-2)
    np.testing.assert_allclose(np.asarray(one_hot_tokens), np.asarray(r_oh),
                               atol=1e-5)
    np.testing.assert_allclose(np.asarray(logits), np.asarray(r_lg),
                               atol=2e-3, rtol=2e-3)
    assert (np.asarray(messages) == np.asarray(r_ms)).all()

    assert recons.shape == (B, H)
    assert one_hot_tokens.shape == (B, L, D)
    assert logits.shape == (B, L, D)
    assert messages.shape == (B, L) and messages.dtype == jnp.int32

    print("KERNEL_OK")
</pallas_src>

<mosaic_0001>
module attributes {stable_mosaic.version = 11 : i64} {
  func.func @vae_kernel(%arg0: memref<8x32xf32, #tpu.memory_space<vmem>>, %arg1: memref<208x256xf32, #tpu.memory_space<vmem>>, %arg2: memref<1x640xf32, #tpu.memory_space<vmem>>, %arg3: memref<8x32xf32, #tpu.memory_space<vmem>>, %arg4: memref<8x128xf32, #tpu.memory_space<vmem>>, %arg5: memref<8x128xf32, #tpu.memory_space<vmem>>) attributes {dimension_semantics = [], scalar_prefetch = 0 : i64, scratch_operands = 0 : i64, tpu.core_type = #tpu.core_type<tc>} {
    %c0 = arith.constant 0 : index
    %c0_0 = arith.constant 0 : index
    %0 = vector.load %arg2[%c0, %c0_0] : memref<1x640xf32, #tpu.memory_space<vmem>>, vector<1x256xf32>
    %1 = vector.shape_cast %0 : vector<1x256xf32> to vector<1x256xf32>
    %2 = vector.broadcast %1 : vector<1x256xf32> to vector<8x256xf32>
    %c0_1 = arith.constant 0 : index
    %c256 = arith.constant 256 : index
    %3 = vector.load %arg2[%c0_1, %c256] : memref<1x640xf32, #tpu.memory_space<vmem>>, vector<1x16xf32>
    %4 = vector.shape_cast %3 : vector<1x16xf32> to vector<1x16xf32>
    %5 = vector.broadcast %4 : vector<1x16xf32> to vector<8x16xf32>
    %c0_2 = arith.constant 0 : index
    %c384 = arith.constant 384 : index
    %6 = vector.load %arg2[%c0_2, %c384] : memref<1x640xf32, #tpu.memory_space<vmem>>, vector<1x32xf32>
    %7 = vector.shape_cast %6 : vector<1x32xf32> to vector<1x32xf32>
    %8 = vector.broadcast %7 : vector<1x32xf32> to vector<8x32xf32>
    %9 = tpu.iota {dimensions = array<i32: 1>} : vector<8x16xi32>
    %cst = arith.constant 0.000000e+00 : f32
    %10 = vector.broadcast %cst : f32 to vector<8x32xf32>
    %c0_3 = arith.constant 0 : index
    %c0_4 = arith.constant 0 : index
    %11 = vector.load %arg0[%c0_3, %c0_4] : memref<8x32xf32, #tpu.memory_space<vmem>>, vector<8x32xf32>
    %12 = tpu.concatenate %11, %10 in 1 : vector<8x32xf32>, vector<8x32xf32> -> vector<8x64xf32>
    %13 = tpu.concatenate %10, %12 in 1 : vector<8x32xf32>, vector<8x64xf32> -> vector<8x96xf32>
    %c0_5 = arith.constant 0 : index
    %c0_6 = arith.constant 0 : index
    %14 = vector.load %arg1[%c0_5, %c0_6] : memref<208x256xf32, #tpu.memory_space<vmem>>, vector<96x256xf32>
    %cst_7 = arith.constant dense<0.000000e+00> : vector<8x256xf32>
    %15 = tpu.matmul %13, %14, %cst_7 {dimension_numbers = #tpu.dot_dimension_numbers<[1], [0], [0], [1], [0, 0, 1, 1], [], []>} : vector<8x96xf32>, vector<96x256xf32>, vector<8x256xf32> -> vector<8x256xf32>
    %16 = arith.addf %15, %2 : vector<8x256xf32>
    %17 = vector.extract_strided_slice %16 {offsets = [0, 0], sizes = [8, 128], strides = [1, 1]} : vector<8x256xf32> to vector<8x128xf32>
    %18 = arith.negf %17 : vector<8x128xf32>
    %19 = math.exp %18 : vector<8x128xf32>
    %cst_8 = arith.constant 1.000000e+00 : f32
    %20 = vector.broadcast %cst_8 : f32 to vector<8x128xf32>
    %21 = arith.addf %20, %19 : vector<8x128xf32>
    %22 = arith.divf %20, %21 : vector<8x128xf32>
    %23 = vector.extract_strided_slice %22 {offsets = [0, 0], sizes = [8, 64], strides = [1, 1]} : vector<8x128xf32> to vector<8x64xf32>
    %24 = vector.extract_strided_slice %22 {offsets = [0, 64], sizes = [8, 64], strides = [1, 1]} : vector<8x128xf32> to vector<8x64xf32>
    %25 = vector.extract_strided_slice %16 {offsets = [0, 128], sizes = [8, 64], strides = [1, 1]} : vector<8x256xf32> to vector<8x64xf32>
    %26 = vector.extract_strided_slice %16 {offsets = [0, 192], sizes = [8, 64], strides = [1, 1]} : vector<8x256xf32> to vector<8x64xf32>
    %27 = arith.mulf %23, %26 : vector<8x64xf32>
    %28 = arith.addf %25, %27 : vector<8x64xf32>
    %29 = math.tanh %28 : vector<8x64xf32>
    %cst_9 = arith.constant 1.000000e+00 : f32
    %30 = vector.broadcast %cst_9 : f32 to vector<8x64xf32>
    %31 = arith.subf %30, %24 : vector<8x64xf32>
    %32 = arith.mulf %31, %29 : vector<8x64xf32>
    %33 = arith.mulf %24, %12 : vector<8x64xf32>
    %34 = arith.addf %32, %33 : vector<8x64xf32>
    %35 = vector.extract_strided_slice %34 {offsets = [0, 0], sizes = [8, 32], strides = [1, 1]} : vector<8x64xf32> to vector<8x32xf32>
    %36 = tpu.concatenate %35, %10 in 1 : vector<8x32xf32>, vector<8x32xf32> -> vector<8x64xf32>
    %c96 = arith.constant 96 : index
    %c0_10 = arith.constant 0 : index
    %37 = vector.load %arg1[%c96, %c0_10] : memref<208x256xf32, #tpu.memory_space<vmem>>, vector<64x16xf32>
    %cst_11 = arith.constant dense<0.000000e+00> : vector<8x16xf32>
    %38 = tpu.matmul %36, %37, %cst_11 {dimension_numbers = #tpu.dot_dimension_numbers<[1], [0], [0], [1], [0, 0, 1, 1], [], []>} : vector<8x64xf32>, vector<64x16xf32>, vector<8x16xf32> -> vector<8x16xf32>
    %39 = arith.addf %38, %5 : vector<8x16xf32>
    %40 = tpu.reduce_index %39 {axis = 1 : i32, kind = #tpu.reduction_kind<arg_max>} : vector<8x16xf32> -> vector<8xi32>
    %41 = vector.shape_cast %40 : vector<8xi32> to vector<8x1xi32>
    %42 = vector.broadcast %41 : vector<8x1xi32> to vector<8x16xi32>
    %43 = arith.cmpi eq, %9, %42 : vector<8x16xi32>
    %44 = arith.extui %43 : vector<8x16xi1> to vector<8x16xi32>
    %45 = arith.sitofp %44 : vector<8x16xi32> to vector<8x16xf32>
    %cst_12 = arith.constant dense<0xFF800000> : vector<8xf32>
    %46 = vector.multi_reduction <maximumf>, %39, %cst_12 [1] : vector<8x16xf32> to vector<8xf32>
    %47 = vector.shape_cast %46 : vector<8xf32> to vector<8x1xf32>
    %48 = vector.broadcast %47 : vector<8x1xf32> to vector<8x16xf32>
    %49 = arith.subf %39, %48 : vector<8x16xf32>
    %50 = math.exp %49 : vector<8x16xf32>
    %cst_13 = arith.constant dense<0.000000e+00> : vector<8xf32>
    %51 = vector.multi_reduction <add>, %50, %cst_13 [1] : vector<8x16xf32> to vector<8xf32>
    %52 = vector.shape_cast %51 : vector<8xf32> to vector<8x1xf32>
    %53 = tpu.reciprocal %52 : vector<8x1xf32> -> vector<8x1xf32>
    %54 = vector.broadcast %53 : vector<8x1xf32> to vector<8x16xf32>
    %55 = arith.mulf %50, %54 : vector<8x16xf32>
    %c0_14 = arith.constant 0 : index
    %c0_15 = arith.constant 0 : index
    %56 = vector.load %arg5[%c0_14, %c0_15] : memref<8x128xf32, #tpu.memory_space<vmem>>, vector<8x16xf32>
    tpu.vector_store %arg5[%c0_14, %c0_15], %55 {strides = array<i32>} : memref<8x128xf32, #tpu.memory_space<vmem>>, vector<8x16xf32>,
    %c0_16 = arith.constant 0 : index
    %c0_17 = arith.constant 0 : index
    %57 = vector.load %arg4[%c0_16, %c0_17] : memref<8x128xf32, #tpu.memory_space<vmem>>, vector<8x16xf32>
    tpu.vector_store %arg4[%c0_16, %c0_17], %45 {strides = array<i32>} : memref<8x128xf32, #tpu.memory_space<vmem>>, vector<8x16xf32>,
    %c160 = arith.constant 160 : index
    %c0_18 = arith.constant 0 : index
    %58 = vector.load %arg1[%c160, %c0_18] : memref<208x256xf32, #tpu.memory_space<vmem>>, vector<16x32xf32>
    %cst_19 = arith.constant dense<0.000000e+00> : vector<8x32xf32>
    %59 = tpu.matmul %45, %58, %cst_19 {dimension_numbers = #tpu.dot_dimension_numbers<[1], [0], [0], [1], [0, 0, 1, 1], [], []>} : vector<8x16xf32>, vector<16x32xf32>, vector<8x32xf32> -> vector<8x32xf32>
    %60 = arith.addf %59, %8 : vector<8x32xf32>
    %61 = tpu.concatenate %60, %36 in 1 : vector<8x32xf32>, vector<8x64xf32> -> vector<8x96xf32>
    %c0_20 = arith.constant 0 : index
    %c0_21 = arith.constant 0 : index
    %62 = vector.load %arg1[%c0_20, %c0_21] : memref<208x256xf32, #tpu.memory_space<vmem>>, vector<96x256xf32>
    %cst_22 = arith.constant dense<0.000000e+00> : vector<8x256xf32>
    %63 = tpu.matmul %61, %62, %cst_22 {dimension_numbers = #tpu.dot_dimension_numbers<[1], [0], [0], [1], [0, 0, 1, 1], [], []>} : vector<8x96xf32>, vector<96x256xf32>, vector<8x256xf32> -> vector<8x256xf32>
    %64 = arith.addf %63, %2 : vector<8x256xf32>
    %65 = vector.extract_strided_slice %64 {offsets = [0, 0], sizes = [8, 128], strides = [1, 1]} : vector<8x256xf32> to vector<8x128xf32>
    %66 = arith.negf %65 : vector<8x128xf32>
    %67 = math.exp %66 : vector<8x128xf32>
    %cst_23 = arith.constant 1.000000e+00 : f32
    %68 = vector.broadcast %cst_23 : f32 to vector<8x128xf32>
    %69 = arith.addf %68, %67 : vector<8x128xf32>
    %70 = arith.divf %68, %69 : vector<8x128xf32>
    %71 = vector.extract_strided_slice %70 {offsets = [0, 0], sizes = [8, 64], strides = [1, 1]} : vector<8x128xf32> to vector<8x64xf32>
    %72 = vector.extract_strided_slice %70 {offsets = [0, 64], sizes = [8, 64], strides = [1, 1]} : vector<8x128xf32> to vector<8x64xf32>
    %73 = vector.extract_strided_slice %64 {offsets = [0, 128], sizes = [8, 64], strides = [1, 1]} : vector<8x256xf32> to vector<8x64xf32>
    %74 = vector.extract_strided_slice %64 {offsets = [0, 192], sizes = [8, 64], strides = [1, 1]} : vector<8x256xf32> to vector<8x64xf32>
    %75 = arith.mulf %71, %74 : vector<8x64xf32>
    %76 = arith.addf %73, %75 : vector<8x64xf32>
    %77 = math.tanh %76 : vector<8x64xf32>
    %cst_24 = arith.constant 1.000000e+00 : f32
    %78 = vector.broadcast %cst_24 : f32 to vector<8x64xf32>
    %79 = arith.subf %78, %72 : vector<8x64xf32>
    %80 = arith.mulf %79, %77 : vector<8x64xf32>
    %81 = arith.mulf %72, %36 : vector<8x64xf32>
    %82 = arith.addf %80, %81 : vector<8x64xf32>
    %c96_25 = arith.constant 96 : index
    %c0_26 = arith.constant 0 : index
    %83 = vector.load %arg1[%c96_25, %c0_26] : memref<208x256xf32, #tpu.memory_space<vmem>>, vector<64x16xf32>
    %cst_27 = arith.constant dense<0.000000e+00> : vector<8x16xf32>
    %84 = tpu.matmul %82, %83, %cst_27 {dimension_numbers = #tpu.dot_dimension_numbers<[1], [0], [0], [1], [0, 0, 1, 1], [], []>} : vector<8x64xf32>, vector<64x16xf32>, vector<8x16xf32> -> vector<8x16xf32>
    %85 = arith.addf %84, %5 : vector<8x16xf32>
    %86 = tpu.reduce_index %85 {axis = 1 : i32, kind = #tpu.reduction_kind<arg_max>} : vector<8x16xf32> -> vector<8xi32>
    %87 = vector.shape_cast %86 : vector<8xi32> to vector<8x1xi32>
    %88 = vector.broadcast %87 : vector<8x1xi32> to vector<8x16xi32>
    %89 = arith.cmpi eq, %9, %88 : vector<8x16xi32>
    %90 = arith.extui %89 : vector<8x16xi1> to vector<8x16xi32>
    %91 = arith.sitofp %90 : vector<8x16xi32> to vector<8x16xf32>
    %cst_28 = arith.constant dense<0xFF800000> : vector<8xf32>
    %92 = vector.multi_reduction <maximumf>, %85, %cst_28 [1] : vector<8x16xf32> to vector<8xf32>
    %93 = vector.shape_cast %92 : vector<8xf32> to vector<8x1xf32>
    %94 = vector.broadcast %93 : vector<8x1xf32> to vector<8x16xf32>
    %95 = arith.subf %85, %94 : vector<8x16xf32>
    %96 = math.exp %95 : vector<8x16xf32>
    %cst_29 = arith.constant dense<0.000000e+00> : vector<8xf32>
    %97 = vector.multi_reduction <add>, %96, %cst_29 [1] : vector<8x16xf32> to vector<8xf32>
    %98 = vector.shape_cast %97 : vector<8xf32> to vector<8x1xf32>
    %99 = tpu.reciprocal %98 : vector<8x1xf32> -> vector<8x1xf32>
    %100 = vector.broadcast %99 : vector<8x1xf32> to vector<8x16xf32>
    %101 = arith.mulf %96, %100 : vector<8x16xf32>
    %c0_30 = arith.constant 0 : index
    %c16 = arith.constant 16 : index
    %102 = vector.load %arg5[%c0_30, %c16] : memref<8x128xf32, #tpu.memory_space<vmem>>, vector<8x16xf32>
    tpu.vector_store %arg5[%c0_30, %c16], %101 {strides = array<i32>} : memref<8x128xf32, #tpu.memory_space<vmem>>, vector<8x16xf32>,
    %c0_31 = arith.constant 0 : index
    %c16_32 = arith.constant 16 : index
    %103 = vector.load %arg4[%c0_31, %c16_32] : memref<8x128xf32, #tpu.memory_space<vmem>>, vector<8x16xf32>
    tpu.vector_store %arg4[%c0_31, %c16_32], %91 {strides = array<i32>} : memref<8x128xf32, #tpu.memory_space<vmem>>, vector<8x16xf32>,
    %c160_33 = arith.constant 160 : index
    %c0_34 = arith.constant 0 : index
    %104 = vector.load %arg1[%c160_33, %c0_34] : memref<208x256xf32, #tpu.memory_space<vmem>>, vector<16x32xf32>
    %cst_35 = arith.constant dense<0.000000e+00> : vector<8x32xf32>
    %105 = tpu.matmul %91, %104, %cst_35 {dimension_numbers = #tpu.dot_dimension_numbers<[1], [0], [0], [1], [0, 0, 1, 1], [], []>} : vector<8x16xf32>, vector<16x32xf32>, vector<8x32xf32> -> vector<8x32xf32>
    %106 = arith.addf %105, %8 : vector<8x32xf32>
    %107 = tpu.concatenate %106, %82 in 1 : vector<8x32xf32>, vector<8x64xf32> -> vector<8x96xf32>
    %c0_36 = arith.constant 0 : index
    %c0_37 = arith.constant 0 : index
    %108 = vector.load %arg1[%c0_36, %c0_37] : memref<208x256xf32, #tpu.memory_space<vmem>>, vector<96x256xf32>
    %cst_38 = arith.constant dense<0.000000e+00> : vector<8x256xf32>
    %109 = tpu.matmul %107, %108, %cst_38 {dimension_numbers = #tpu.dot_dimension_numbers<[1], [0], [0], [1], [0, 0, 1, 1], [], []>} : vector<8x96xf32>, vector<96x256xf32>, vector<8x256xf32> -> vector<8x256xf32>
    %110 = arith.addf %109, %2 : vector<8x256xf32>
    %111 = vector.extract_strided_slice %110 {offsets = [0, 0], sizes = [8, 128], strides = [1, 1]} : vector<8x256xf32> to vector<8x128xf32>
    %112 = arith.negf %111 : vector<8x128xf32>
    %113 = math.exp %112 : vector<8x128xf32>
    %cst_39 = arith.constant 1.000000e+00 : f32
    %114 = vector.broadcast %cst_39 : f32 to vector<8x128xf32>
    %115 = arith.addf %114, %113 : vector<8x128xf32>
    %116 = arith.divf %114, %115 : vector<8x128xf32>
    %117 = vector.extract_strided_slice %116 {offsets = [0, 0], sizes = [8, 64], strides = [1, 1]} : vector<8x128xf32> to vector<8x64xf32>
    %118 = vector.extract_strided_slice %116 {offsets = [0, 64], sizes = [8, 64], strides = [1, 1]} : vector<8x128xf32> to vector<8x64xf32>
    %119 = vector.extract_strided_slice %110 {offsets = [0, 128], sizes = [8, 64], strides = [1, 1]} : vector<8x256xf32> to vector<8x64xf32>
    %120 = vector.extract_strided_slice %110 {offsets = [0, 192], sizes = [8, 64], strides = [1, 1]} : vector<8x256xf32> to vector<8x64xf32>
    %121 = arith.mulf %117, %120 : vector<8x64xf32>
    %122 = arith.addf %119, %121 : vector<8x64xf32>
    %123 = math.tanh %122 : vector<8x64xf32>
    %cst_40 = arith.constant 1.000000e+00 : f32
    %124 = vector.broadcast %cst_40 : f32 to vector<8x64xf32>
    %125 = arith.subf %124, %118 : vector<8x64xf32>
    %126 = arith.mulf %125, %123 : vector<8x64xf32>
    %127 = arith.mulf %118, %82 : vector<8x64xf32>
    %128 = arith.addf %126, %127 : vector<8x64xf32>
    %c96_41 = arith.constant 96 : index
    %c0_42 = arith.constant 0 : index
    %129 = vector.load %arg1[%c96_41, %c0_42] : memref<208x256xf32, #tpu.memory_space<vmem>>, vector<64x16xf32>
    %cst_43 = arith.constant dense<0.000000e+00> : vector<8x16xf32>
    %130 = tpu.matmul %128, %129, %cst_43 {dimension_numbers = #tpu.dot_dimension_numbers<[1], [0], [0], [1], [0, 0, 1, 1], [], []>} : vector<8x64xf32>, vector<64x16xf32>, vector<8x16xf32> -> vector<8x16xf32>
    %131 = arith.addf %130, %5 : vector<8x16xf32>
    %132 = tpu.reduce_index %131 {axis = 1 : i32, kind = #tpu.reduction_kind<arg_max>} : vector<8x16xf32> -> vector<8xi32>
    %133 = vector.shape_cast %132 : vector<8xi32> to vector<8x1xi32>
    %134 = vector.broadcast %133 : vector<8x1xi32> to vector<8x16xi32>
    %135 = arith.cmpi eq, %9, %134 : vector<8x16xi32>
    %136 = arith.extui %135 : vector<8x16xi1> to vector<8x16xi32>
    %137 = arith.sitofp %136 : vector<8x16xi32> to vector<8x16xf32>
    %cst_44 = arith.constant dense<0xFF800000> : vector<8xf32>
    %138 = vector.multi_reduction <maximumf>, %131, %cst_44 [1] : vector<8x16xf32> to vector<8xf32>
    %139 = vector.shape_cast %138 : vector<8xf32> to vector<8x1xf32>
    %140 = vector.broadcast %139 : vector<8x1xf32> to vector<8x16xf32>
    %141 = arith.subf %131, %140 : vector<8x16xf32>
    %142 = math.exp %141 : vector<8x16xf32>
    %cst_45 = arith.constant dense<0.000000e+00> : vector<8xf32>
    %143 = vector.multi_reduction <add>, %142, %cst_45 [1] : vector<8x16xf32> to vector<8xf32>
    %144 = vector.shape_cast %143 : vector<8xf32> to vector<8x1xf32>
    %145 = tpu.reciprocal %144 : vector<8x1xf32> -> vector<8x1xf32>
    %146 = vector.broadcast %145 : vector<8x1xf32> to vector<8x16xf32>
    %147 = arith.mulf %142, %146 : vector<8x16xf32>
    %c0_46 = arith.constant 0 : index
    %c32 = arith.constant 32 : index
    %148 = vector.load %arg5[%c0_46, %c32] : memref<8x128xf32, #tpu.memory_space<vmem>>, vector<8x16xf32>
    tpu.vector_store %arg5[%c0_46, %c32], %147 {strides = array<i32>} : memref<8x128xf32, #tpu.memory_space<vmem>>, vector<8x16xf32>,
    %c0_47 = arith.constant 0 : index
    %c32_48 = arith.constant 32 : index
    %149 = vector.load %arg4[%c0_47, %c32_48] : memref<8x128xf32, #tpu.memory_space<vmem>>, vector<8x16xf32>
    tpu.vector_store %arg4[%c0_47, %c32_48], %137 {strides = array<i32>} : memref<8x128xf32, #tpu.memory_space<vmem>>, vector<8x16xf32>,
    %c160_49 = arith.constant 160 : index
    %c0_50 = arith.constant 0 : index
    %150 = vector.load %arg1[%c160_49, %c0_50] : memref<208x256xf32, #tpu.memory_space<vmem>>, vector<16x32xf32>
    %cst_51 = arith.constant dense<0.000000e+00> : vector<8x32xf32>
    %151 = tpu.matmul %137, %150, %cst_51 {dimension_numbers = #tpu.dot_dimension_numbers<[1], [0], [0], [1], [0, 0, 1, 1], [], []>} : vector<8x16xf32>, vector<16x32xf32>, vector<8x32xf32> -> vector<8x32xf32>
    %152 = arith.addf %151, %8 : vector<8x32xf32>
    %153 = tpu.concatenate %152, %128 in 1 : vector<8x32xf32>, vector<8x64xf32> -> vector<8x96xf32>
    %c0_52 = arith.constant 0 : index
    %c0_53 = arith.constant 0 : index
    %154 = vector.load %arg1[%c0_52, %c0_53] : memref<208x256xf32, #tpu.memory_space<vmem>>, vector<96x256xf32>
    %cst_54 = arith.constant dense<0.000000e+00> : vector<8x256xf32>
    %155 = tpu.matmul %153, %154, %cst_54 {dimension_numbers = #tpu.dot_dimension_numbers<[1], [0], [0], [1], [0, 0, 1, 1], [], []>} : vector<8x96xf32>, vector<96x256xf32>, vector<8x256xf32> -> vector<8x256xf32>
    %156 = arith.addf %155, %2 : vector<8x256xf32>
    %157 = vector.extract_strided_slice %156 {offsets = [0, 0], sizes = [8, 128], strides = [1, 1]} : vector<8x256xf32> to vector<8x128xf32>
    %158 = arith.negf %157 : vector<8x128xf32>
    %159 = math.exp %158 : vector<8x128xf32>
    %cst_55 = arith.constant 1.000000e+00 : f32
    %160 = vector.broadcast %cst_55 : f32 to vector<8x128xf32>
    %161 = arith.addf %160, %159 : vector<8x128xf32>
    %162 = arith.divf %160, %161 : vector<8x128xf32>
    %163 = vector.extract_strided_slice %162 {offsets = [0, 0], sizes = [8, 64], strides = [1, 1]} : vector<8x128xf32> to vector<8x64xf32>
    %164 = vector.extract_strided_slice %162 {offsets = [0, 64], sizes = [8, 64], strides = [1, 1]} : vector<8x128xf32> to vector<8x64xf32>
    %165 = vector.extract_strided_slice %156 {offsets = [0, 128], sizes = [8, 64], strides = [1, 1]} : vector<8x256xf32> to vector<8x64xf32>
    %166 = vector.extract_strided_slice %156 {offsets = [0, 192], sizes = [8, 64], strides = [1, 1]} : vector<8x256xf32> to vector<8x64xf32>
    %167 = arith.mulf %163, %166 : vector<8x64xf32>
    %168 = arith.addf %165, %167 : vector<8x64xf32>
    %169 = math.tanh %168 : vector<8x64xf32>
    %cst_56 = arith.constant 1.000000e+00 : f32
    %170 = vector.broadcast %cst_56 : f32 to vector<8x64xf32>
    %171 = arith.subf %170, %164 : vector<8x64xf32>
    %172 = arith.mulf %171, %169 : vector<8x64xf32>
    %173 = arith.mulf %164, %128 : vector<8x64xf32>
    %174 = arith.addf %172, %173 : vector<8x64xf32>
    %c96_57 = arith.constant 96 : index
    %c0_58 = arith.constant 0 : index
    %175 = vector.load %arg1[%c96_57, %c0_58] : memref<208x256xf32, #tpu.memory_space<vmem>>, vector<64x16xf32>
    %cst_59 = arith.constant dense<0.000000e+00> : vector<8x16xf32>
    %176 = tpu.matmul %174, %175, %cst_59 {dimension_numbers = #tpu.dot_dimension_numbers<[1], [0], [0], [1], [0, 0, 1, 1], [], []>} : vector<8x64xf32>, vector<64x16xf32>, vector<8x16xf32> -> vector<8x16xf32>
    %177 = arith.addf %176, %5 : vector<8x16xf32>
    %178 = tpu.reduce_index %177 {axis = 1 : i32, kind = #tpu.reduction_kind<arg_max>} : vector<8x16xf32> -> vector<8xi32>
    %179 = vector.shape_cast %178 : vector<8xi32> to vector<8x1xi32>
    %180 = vector.broadcast %179 : vector<8x1xi32> to vector<8x16xi32>
    %181 = arith.cmpi eq, %9, %180 : vector<8x16xi32>
    %182 = arith.extui %181 : vector<8x16xi1> to vector<8x16xi32>
    %183 = arith.sitofp %182 : vector<8x16xi32> to vector<8x16xf32>
    %cst_60 = arith.constant dense<0xFF800000> : vector<8xf32>
    %184 = vector.multi_reduction <maximumf>, %177, %cst_60 [1] : vector<8x16xf32> to vector<8xf32>
    %185 = vector.shape_cast %184 : vector<8xf32> to vector<8x1xf32>
    %186 = vector.broadcast %185 : vector<8x1xf32> to vector<8x16xf32>
    %187 = arith.subf %177, %186 : vector<8x16xf32>
    %188 = math.exp %187 : vector<8x16xf32>
    %cst_61 = arith.constant dense<0.000000e+00> : vector<8xf32>
    %189 = vector.multi_reduction <add>, %188, %cst_61 [1] : vector<8x16xf32> to vector<8xf32>
    %190 = vector.shape_cast %189 : vector<8xf32> to vector<8x1xf32>
    %191 = tpu.reciprocal %190 : vector<8x1xf32> -> vector<8x1xf32>
    %192 = vector.broadcast %191 : vector<8x1xf32> to vector<8x16xf32>
    %193 = arith.mulf %188, %192 : vector<8x16xf32>
    %c0_62 = arith.constant 0 : index
    %c48 = arith.constant 48 : index
    %194 = vector.load %arg5[%c0_62, %c48] : memref<8x128xf32, #tpu.memory_space<vmem>>, vector<8x16xf32>
    tpu.vector_store %arg5[%c0_62, %c48], %193 {strides = array<i32>} : memref<8x128xf32, #tpu.memory_space<vmem>>, vector<8x16xf32>,
    %c0_63 = arith.constant 0 : index
    %c48_64 = arith.constant 48 : index
    %195 = vector.load %arg4[%c0_63, %c48_64] : memref<8x128xf32, #tpu.memory_space<vmem>>, vector<8x16xf32>
    tpu.vector_store %arg4[%c0_63, %c48_64], %183 {strides = array<i32>} : memref<8x128xf32, #tpu.memory_space<vmem>>, vector<8x16xf32>,
    %c160_65 = arith.constant 160 : index
    %c0_66 = arith.constant 0 : index
    %196 = vector.load %arg1[%c160_65, %c0_66] : memref<208x256xf32, #tpu.memory_space<vmem>>, vector<16x32xf32>
    %cst_67 = arith.constant dense<0.000000e+00> : vector<8x32xf32>
    %197 = tpu.matmul %183, %196, %cst_67 {dimension_numbers = #tpu.dot_dimension_numbers<[1], [0], [0], [1], [0, 0, 1, 1], [], []>} : vector<8x16xf32>, vector<16x32xf32>, vector<8x32xf32> -> vector<8x32xf32>
    %198 = arith.addf %197, %8 : vector<8x32xf32>
    %199 = tpu.concatenate %198, %174 in 1 : vector<8x32xf32>, vector<8x64xf32> -> vector<8x96xf32>
    %c0_68 = arith.constant 0 : index
    %c0_69 = arith.constant 0 : index
    %200 = vector.load %arg1[%c0_68, %c0_69] : memref<208x256xf32, #tpu.memory_space<vmem>>, vector<96x256xf32>
    %cst_70 = arith.constant dense<0.000000e+00> : vector<8x256xf32>
    %201 = tpu.matmul %199, %200, %cst_70 {dimension_numbers = #tpu.dot_dimension_numbers<[1], [0], [0], [1], [0, 0, 1, 1], [], []>} : vector<8x96xf32>, vector<96x256xf32>, vector<8x256xf32> -> vector<8x256xf32>
    %202 = arith.addf %201, %2 : vector<8x256xf32>
    %203 = vector.extract_strided_slice %202 {offsets = [0, 0], sizes = [8, 128], strides = [1, 1]} : vector<8x256xf32> to vector<8x128xf32>
    %204 = arith.negf %203 : vector<8x128xf32>
    %205 = math.exp %204 : vector<8x128xf32>
    %cst_71 = arith.constant 1.000000e+00 : f32
    %206 = vector.broadcast %cst_71 : f32 to vector<8x128xf32>
    %207 = arith.addf %206, %205 : vector<8x128xf32>
    %208 = arith.divf %206, %207 : vector<8x128xf32>
    %209 = vector.extract_strided_slice %208 {offsets = [0, 0], sizes = [8, 64], strides = [1, 1]} : vector<8x128xf32> to vector<8x64xf32>
    %210 = vector.extract_strided_slice %208 {offsets = [0, 64], sizes = [8, 64], strides = [1, 1]} : vector<8x128xf32> to vector<8x64xf32>
    %211 = vector.extract_strided_slice %202 {offsets = [0, 128], sizes = [8, 64], strides = [1, 1]} : vector<8x256xf32> to vector<8x64xf32>
    %212 = vector.extract_strided_slice %202 {offsets = [0, 192], sizes = [8, 64], strides = [1, 1]} : vector<8x256xf32> to vector<8x64xf32>
    %213 = arith.mulf %209, %212 : vector<8x64xf32>
    %214 = arith.addf %211, %213 : vector<8x64xf32>
    %215 = math.tanh %214 : vector<8x64xf32>
    %cst_72 = arith.constant 1.000000e+00 : f32
    %216 = vector.broadcast %cst_72 : f32 to vector<8x64xf32>
    %217 = arith.subf %216, %210 : vector<8x64xf32>
    %218 = arith.mulf %217, %215 : vector<8x64xf32>
    %219 = arith.mulf %210, %174 : vector<8x64xf32>
    %220 = arith.addf %218, %219 : vector<8x64xf32>
    %c96_73 = arith.constant 96 : index
    %c0_74 = arith.constant 0 : index
    %221 = vector.load %arg1[%c96_73, %c0_74] : memref<208x256xf32, #tpu.memory_space<vmem>>, vector<64x16xf32>
    %cst_75 = arith.constant dense<0.000000e+00> : vector<8x16xf32>
    %222 = tpu.matmul %220, %221, %cst_75 {dimension_numbers = #tpu.dot_dimension_numbers<[1], [0], [0], [1], [0, 0, 1, 1], [], []>} : vector<8x64xf32>, vector<64x16xf32>, vector<8x16xf32> -> vector<8x16xf32>
    %223 = arith.addf %222, %5 : vector<8x16xf32>
    %224 = tpu.reduce_index %223 {axis = 1 : i32, kind = #tpu.reduction_kind<arg_max>} : vector<8x16xf32> -> vector<8xi32>
    %225 = vector.shape_cast %224 : vector<8xi32> to vector<8x1xi32>
    %226 = vector.broadcast %225 : vector<8x1xi32> to vector<8x16xi32>
    %227 = arith.cmpi eq, %9, %226 : vector<8x16xi32>
    %228 = arith.extui %227 : vector<8x16xi1> to vector<8x16xi32>
    %229 = arith.sitofp %228 : vector<8x16xi32> to vector<8x16xf32>
    %cst_76 = arith.constant dense<0xFF800000> : vector<8xf32>
    %230 = vector.multi_reduction <maximumf>, %223, %cst_76 [1] : vector<8x16xf32> to vector<8xf32>
    %231 = vector.shape_cast %230 : vector<8xf32> to vector<8x1xf32>
    %232 = vector.broadcast %231 : vector<8x1xf32> to vector<8x16xf32>
    %233 = arith.subf %223, %232 : vector<8x16xf32>
    %234 = math.exp %233 : vector<8x16xf32>
    %cst_77 = arith.constant dense<0.000000e+00> : vector<8xf32>
    %235 = vector.multi_reduction <add>, %234, %cst_77 [1] : vector<8x16xf32> to vector<8xf32>
    %236 = vector.shape_cast %235 : vector<8xf32> to vector<8x1xf32>
    %237 = tpu.reciprocal %236 : vector<8x1xf32> -> vector<8x1xf32>
    %238 = vector.broadcast %237 : vector<8x1xf32> to vector<8x16xf32>
    %239 = arith.mulf %234, %238 : vector<8x16xf32>
    %c0_78 = arith.constant 0 : index
    %c64 = arith.constant 64 : index
    %240 = vector.load %arg5[%c0_78, %c64] : memref<8x128xf32, #tpu.memory_space<vmem>>, vector<8x16xf32>
    tpu.vector_store %arg5[%c0_78, %c64], %239 {strides = array<i32>} : memref<8x128xf32, #tpu.memory_space<vmem>>, vector<8x16xf32>,
    %c0_79 = arith.constant 0 : index
    %c64_80 = arith.constant 64 : index
    %241 = vector.load %arg4[%c0_79, %c64_80] : memref<8x128xf32, #tpu.memory_space<vmem>>, vector<8x16xf32>
    tpu.vector_store %arg4[%c0_79, %c64_80], %229 {strides = array<i32>} : memref<8x128xf32, #tpu.memory_space<vmem>>, vector<8x16xf32>,
    %c160_81 = arith.constant 160 : index
    %c0_82 = arith.constant 0 : index
    %242 = vector.load %arg1[%c160_81, %c0_82] : memref<208x256xf32, #tpu.memory_space<vmem>>, vector<16x32xf32>
    %cst_83 = arith.constant dense<0.000000e+00> : vector<8x32xf32>
    %243 = tpu.matmul %229, %242, %cst_83 {dimension_numbers = #tpu.dot_dimension_numbers<[1], [0], [0], [1], [0, 0, 1, 1], [], []>} : vector<8x16xf32>, vector<16x32xf32>, vector<8x32xf32> -> vector<8x32xf32>
    %244 = arith.addf %243, %8 : vector<8x32xf32>
    %245 = tpu.concatenate %244, %220 in 1 : vector<8x32xf32>, vector<8x64xf32> -> vector<8x96xf32>
    %c0_84 = arith.constant 0 : index
    %c0_85 = arith.constant 0 : index
    %246 = vector.load %arg1[%c0_84, %c0_85] : memref<208x256xf32, #tpu.memory_space<vmem>>, vector<96x256xf32>
    %cst_86 = arith.constant dense<0.000000e+00> : vector<8x256xf32>
    %247 = tpu.matmul %245, %246, %cst_86 {dimension_numbers = #tpu.dot_dimension_numbers<[1], [0], [0], [1], [0, 0, 1, 1], [], []>} : vector<8x96xf32>, vector<96x256xf32>, vector<8x256xf32> -> vector<8x256xf32>
    %248 = arith.addf %247, %2 : vector<8x256xf32>
    %249 = vector.extract_strided_slice %248 {offsets = [0, 0], sizes = [8, 128], strides = [1, 1]} : vector<8x256xf32> to vector<8x128xf32>
    %250 = arith.negf %249 : vector<8x128xf32>
    %251 = math.exp %250 : vector<8x128xf32>
    %cst_87 = arith.constant 1.000000e+00 : f32
    %252 = vector.broadcast %cst_87 : f32 to vector<8x128xf32>
    %253 = arith.addf %252, %251 : vector<8x128xf32>
    %254 = arith.divf %252, %253 : vector<8x128xf32>
    %255 = vector.extract_strided_slice %254 {offsets = [0, 0], sizes = [8, 64], strides = [1, 1]} : vector<8x128xf32> to vector<8x64xf32>
    %256 = vector.extract_strided_slice %254 {offsets = [0, 64], sizes = [8, 64], strides = [1, 1]} : vector<8x128xf32> to vector<8x64xf32>
    %257 = vector.extract_strided_slice %248 {offsets = [0, 128], sizes = [8, 64], strides = [1, 1]} : vector<8x256xf32> to vector<8x64xf32>
    %258 = vector.extract_strided_slice %248 {offsets = [0, 192], sizes = [8, 64], strides = [1, 1]} : vector<8x256xf32> to vector<8x64xf32>
    %259 = arith.mulf %255, %258 : vector<8x64xf32>
    %260 = arith.addf %257, %259 : vector<8x64xf32>
    %261 = math.tanh %260 : vector<8x64xf32>
    %cst_88 = arith.constant 1.000000e+00 : f32
    %262 = vector.broadcast %cst_88 : f32 to vector<8x64xf32>
    %263 = arith.subf %262, %256 : vector<8x64xf32>
    %264 = arith.mulf %263, %261 : vector<8x64xf32>
    %265 = arith.mulf %256, %220 : vector<8x64xf32>
    %266 = arith.addf %264, %265 : vector<8x64xf32>
    %c96_89 = arith.constant 96 : index
    %c0_90 = arith.constant 0 : index
    %267 = vector.load %arg1[%c96_89, %c0_90] : memref<208x256xf32, #tpu.memory_space<vmem>>, vector<64x16xf32>
    %cst_91 = arith.constant dense<0.000000e+00> : vector<8x16xf32>
    %268 = tpu.matmul %266, %267, %cst_91 {dimension_numbers = #tpu.dot_dimension_numbers<[1], [0], [0], [1], [0, 0, 1, 1], [], []>} : vector<8x64xf32>, vector<64x16xf32>, vector<8x16xf32> -> vector<8x16xf32>
    %269 = arith.addf %268, %5 : vector<8x16xf32>
    %270 = tpu.reduce_index %269 {axis = 1 : i32, kind = #tpu.reduction_kind<arg_max>} : vector<8x16xf32> -> vector<8xi32>
    %271 = vector.shape_cast %270 : vector<8xi32> to vector<8x1xi32>
    %272 = vector.broadcast %271 : vector<8x1xi32> to vector<8x16xi32>
    %273 = arith.cmpi eq, %9, %272 : vector<8x16xi32>
    %274 = arith.extui %273 : vector<8x16xi1> to vector<8x16xi32>
    %275 = arith.sitofp %274 : vector<8x16xi32> to vector<8x16xf32>
    %cst_92 = arith.constant dense<0xFF800000> : vector<8xf32>
    %276 = vector.multi_reduction <maximumf>, %269, %cst_92 [1] : vector<8x16xf32> to vector<8xf32>
    %277 = vector.shape_cast %276 : vector<8xf32> to vector<8x1xf32>
    %278 = vector.broadcast %277 : vector<8x1xf32> to vector<8x16xf32>
    %279 = arith.subf %269, %278 : vector<8x16xf32>
    %280 = math.exp %279 : vector<8x16xf32>
    %cst_93 = arith.constant dense<0.000000e+00> : vector<8xf32>
    %281 = vector.multi_reduction <add>, %280, %cst_93 [1] : vector<8x16xf32> to vector<8xf32>
    %282 = vector.shape_cast %281 : vector<8xf32> to vector<8x1xf32>
    %283 = tpu.reciprocal %282 : vector<8x1xf32> -> vector<8x1xf32>
    %284 = vector.broadcast %283 : vector<8x1xf32> to vector<8x16xf32>
    %285 = arith.mulf %280, %284 : vector<8x16xf32>
    %c0_94 = arith.constant 0 : index
    %c80 = arith.constant 80 : index
    %286 = vector.load %arg5[%c0_94, %c80] : memref<8x128xf32, #tpu.memory_space<vmem>>, vector<8x16xf32>
    tpu.vector_store %arg5[%c0_94, %c80], %285 {strides = array<i32>} : memref<8x128xf32, #tpu.memory_space<vmem>>, vector<8x16xf32>,
    %c0_95 = arith.constant 0 : index
    %c80_96 = arith.constant 80 : index
    %287 = vector.load %arg4[%c0_95, %c80_96] : memref<8x128xf32, #tpu.memory_space<vmem>>, vector<8x16xf32>
    tpu.vector_store %arg4[%c0_95, %c80_96], %275 {strides = array<i32>} : memref<8x128xf32, #tpu.memory_space<vmem>>, vector<8x16xf32>,
    %c160_97 = arith.constant 160 : index
    %c0_98 = arith.constant 0 : index
    %288 = vector.load %arg1[%c160_97, %c0_98] : memref<208x256xf32, #tpu.memory_space<vmem>>, vector<16x32xf32>
    %cst_99 = arith.constant dense<0.000000e+00> : vector<8x32xf32>
    %289 = tpu.matmul %275, %288, %cst_99 {dimension_numbers = #tpu.dot_dimension_numbers<[1], [0], [0], [1], [0, 0, 1, 1], [], []>} : vector<8x16xf32>, vector<16x32xf32>, vector<8x32xf32> -> vector<8x32xf32>
    %290 = arith.addf %289, %8 : vector<8x32xf32>
    %291 = tpu.concatenate %290, %266 in 1 : vector<8x32xf32>, vector<8x64xf32> -> vector<8x96xf32>
    %c0_100 = arith.constant 0 : index
    %c0_101 = arith.constant 0 : index
    %292 = vector.load %arg1[%c0_100, %c0_101] : memref<208x256xf32, #tpu.memory_space<vmem>>, vector<96x256xf32>
    %cst_102 = arith.constant dense<0.000000e+00> : vector<8x256xf32>
    %293 = tpu.matmul %291, %292, %cst_102 {dimension_numbers = #tpu.dot_dimension_numbers<[1], [0], [0], [1], [0, 0, 1, 1], [], []>} : vector<8x96xf32>, vector<96x256xf32>, vector<8x256xf32> -> vector<8x256xf32>
    %294 = arith.addf %293, %2 : vector<8x256xf32>
    %295 = vector.extract_strided_slice %294 {offsets = [0, 0], sizes = [8, 128], strides = [1, 1]} : vector<8x256xf32> to vector<8x128xf32>
    %296 = arith.negf %295 : vector<8x128xf32>
    %297 = math.exp %296 : vector<8x128xf32>
    %cst_103 = arith.constant 1.000000e+00 : f32
    %298 = vector.broadcast %cst_103 : f32 to vector<8x128xf32>
    %299 = arith.addf %298, %297 : vector<8x128xf32>
    %300 = arith.divf %298, %299 : vector<8x128xf32>
    %301 = vector.extract_strided_slice %300 {offsets = [0, 0], sizes = [8, 64], strides = [1, 1]} : vector<8x128xf32> to vector<8x64xf32>
    %302 = vector.extract_strided_slice %300 {offsets = [0, 64], sizes = [8, 64], strides = [1, 1]} : vector<8x128xf32> to vector<8x64xf32>
    %303 = vector.extract_strided_slice %294 {offsets = [0, 128], sizes = [8, 64], strides = [1, 1]} : vector<8x256xf32> to vector<8x64xf32>
    %304 = vector.extract_strided_slice %294 {offsets = [0, 192], sizes = [8, 64], strides = [1, 1]} : vector<8x256xf32> to vector<8x64xf32>
    %305 = arith.mulf %301, %304 : vector<8x64xf32>
    %306 = arith.addf %303, %305 : vector<8x64xf32>
    %307 = math.tanh %306 : vector<8x64xf32>
    %cst_104 = arith.constant 1.000000e+00 : f32
    %308 = vector.broadcast %cst_104 : f32 to vector<8x64xf32>
    %309 = arith.subf %308, %302 : vector<8x64xf32>
    %310 = arith.mulf %309, %307 : vector<8x64xf32>
    %311 = arith.mulf %302, %266 : vector<8x64xf32>
    %312 = arith.addf %310, %311 : vector<8x64xf32>
    %c96_105 = arith.constant 96 : index
    %c0_106 = arith.constant 0 : index
    %313 = vector.load %arg1[%c96_105, %c0_106] : memref<208x256xf32, #tpu.memory_space<vmem>>, vector<64x16xf32>
    %cst_107 = arith.constant dense<0.000000e+00> : vector<8x16xf32>
    %314 = tpu.matmul %312, %313, %cst_107 {dimension_numbers = #tpu.dot_dimension_numbers<[1], [0], [0], [1], [0, 0, 1, 1], [], []>} : vector<8x64xf32>, vector<64x16xf32>, vector<8x16xf32> -> vector<8x16xf32>
    %315 = arith.addf %314, %5 : vector<8x16xf32>
    %316 = tpu.reduce_index %315 {axis = 1 : i32, kind = #tpu.reduction_kind<arg_max>} : vector<8x16xf32> -> vector<8xi32>
    %317 = vector.shape_cast %316 : vector<8xi32> to vector<8x1xi32>
    %318 = vector.broadcast %317 : vector<8x1xi32> to vector<8x16xi32>
    %319 = arith.cmpi eq, %9, %318 : vector<8x16xi32>
    %320 = arith.extui %319 : vector<8x16xi1> to vector<8x16xi32>
    %321 = arith.sitofp %320 : vector<8x16xi32> to vector<8x16xf32>
    %cst_108 = arith.constant dense<0xFF800000> : vector<8xf32>
    %322 = vector.multi_reduction <maximumf>, %315, %cst_108 [1] : vector<8x16xf32> to vector<8xf32>
    %323 = vector.shape_cast %322 : vector<8xf32> to vector<8x1xf32>
    %324 = vector.broadcast %323 : vector<8x1xf32> to vector<8x16xf32>
    %325 = arith.subf %315, %324 : vector<8x16xf32>
    %326 = math.exp %325 : vector<8x16xf32>
    %cst_109 = arith.constant dense<0.000000e+00> : vector<8xf32>
    %327 = vector.multi_reduction <add>, %326, %cst_109 [1] : vector<8x16xf32> to vector<8xf32>
    %328 = vector.shape_cast %327 : vector<8xf32> to vector<8x1xf32>
    %329 = tpu.reciprocal %328 : vector<8x1xf32> -> vector<8x1xf32>
    %330 = vector.broadcast %329 : vector<8x1xf32> to vector<8x16xf32>
    %331 = arith.mulf %326, %330 : vector<8x16xf32>
    %c0_110 = arith.constant 0 : index
    %c96_111 = arith.constant 96 : index
    %332 = vector.load %arg5[%c0_110, %c96_111] : memref<8x128xf32, #tpu.memory_space<vmem>>, vector<8x16xf32>
    tpu.vector_store %arg5[%c0_110, %c96_111], %331 {strides = array<i32>} : memref<8x128xf32, #tpu.memory_space<vmem>>, vector<8x16xf32>,
    %c0_112 = arith.constant 0 : index
    %c96_113 = arith.constant 96 : index
    %333 = vector.load %arg4[%c0_112, %c96_113] : memref<8x128xf32, #tpu.memory_space<vmem>>, vector<8x16xf32>
    tpu.vector_store %arg4[%c0_112, %c96_113], %321 {strides = array<i32>} : memref<8x128xf32, #tpu.memory_space<vmem>>, vector<8x16xf32>,
    %c160_114 = arith.constant 160 : index
    %c0_115 = arith.constant 0 : index
    %334 = vector.load %arg1[%c160_114, %c0_115] : memref<208x256xf32, #tpu.memory_space<vmem>>, vector<16x32xf32>
    %cst_116 = arith.constant dense<0.000000e+00> : vector<8x32xf32>
    %335 = tpu.matmul %321, %334, %cst_116 {dimension_numbers = #tpu.dot_dimension_numbers<[1], [0], [0], [1], [0, 0, 1, 1], [], []>} : vector<8x16xf32>, vector<16x32xf32>, vector<8x32xf32> -> vector<8x32xf32>
    %336 = arith.addf %335, %8 : vector<8x32xf32>
    %337 = tpu.concatenate %336, %312 in 1 : vector<8x32xf32>, vector<8x64xf32> -> vector<8x96xf32>
    %c0_117 = arith.constant 0 : index
    %c0_118 = arith.constant 0 : index
    %338 = vector.load %arg1[%c0_117, %c0_118] : memref<208x256xf32, #tpu.memory_space<vmem>>, vector<96x256xf32>
    %cst_119 = arith.constant dense<0.000000e+00> : vector<8x256xf32>
    %339 = tpu.matmul %337, %338, %cst_119 {dimension_numbers = #tpu.dot_dimension_numbers<[1], [0], [0], [1], [0, 0, 1, 1], [], []>} : vector<8x96xf32>, vector<96x256xf32>, vector<8x256xf32> -> vector<8x256xf32>
    %340 = arith.addf %339, %2 : vector<8x256xf32>
    %341 = vector.extract_strided_slice %340 {offsets = [0, 0], sizes = [8, 128], strides = [1, 1]} : vector<8x256xf32> to vector<8x128xf32>
    %342 = arith.negf %341 : vector<8x128xf32>
    %343 = math.exp %342 : vector<8x128xf32>
    %cst_120 = arith.constant 1.000000e+00 : f32
    %344 = vector.broadcast %cst_120 : f32 to vector<8x128xf32>
    %345 = arith.addf %344, %343 : vector<8x128xf32>
    %346 = arith.divf %344, %345 : vector<8x128xf32>
    %347 = vector.extract_strided_slice %346 {offsets = [0, 0], sizes = [8, 64], strides = [1, 1]} : vector<8x128xf32> to vector<8x64xf32>
    %348 = vector.extract_strided_slice %346 {offsets = [0, 64], sizes = [8, 64], strides = [1, 1]} : vector<8x128xf32> to vector<8x64xf32>
    %349 = vector.extract_strided_slice %340 {offsets = [0, 128], sizes = [8, 64], strides = [1, 1]} : vector<8x256xf32> to vector<8x64xf32>
    %350 = vector.extract_strided_slice %340 {offsets = [0, 192], sizes = [8, 64], strides = [1, 1]} : vector<8x256xf32> to vector<8x64xf32>
    %351 = arith.mulf %347, %350 : vector<8x64xf32>
    %352 = arith.addf %349, %351 : vector<8x64xf32>
    %353 = math.tanh %352 : vector<8x64xf32>
    %cst_121 = arith.constant 1.000000e+00 : f32
    %354 = vector.broadcast %cst_121 : f32 to vector<8x64xf32>
    %355 = arith.subf %354, %348 : vector<8x64xf32>
    %356 = arith.mulf %355, %353 : vector<8x64xf32>
    %357 = arith.mulf %348, %312 : vector<8x64xf32>
    %358 = arith.addf %356, %357 : vector<8x64xf32>
    %c96_122 = arith.constant 96 : index
    %c0_123 = arith.constant 0 : index
    %359 = vector.load %arg1[%c96_122, %c0_123] : memref<208x256xf32, #tpu.memory_space<vmem>>, vector<64x16xf32>
    %cst_124 = arith.constant dense<0.000000e+00> : vector<8x16xf32>
    %360 = tpu.matmul %358, %359, %cst_124 {dimension_numbers = #tpu.dot_dimension_numbers<[1], [0], [0], [1], [0, 0, 1, 1], [], []>} : vector<8x64xf32>, vector<64x16xf32>, vector<8x16xf32> -> vector<8x16xf32>
    %361 = arith.addf %360, %5 : vector<8x16xf32>
    %362 = tpu.reduce_index %361 {axis = 1 : i32, kind = #tpu.reduction_kind<arg_max>} : vector<8x16xf32> -> vector<8xi32>
    %363 = vector.shape_cast %362 : vector<8xi32> to vector<8x1xi32>
    %364 = vector.broadcast %363 : vector<8x1xi32> to vector<8x16xi32>
    %365 = arith.cmpi eq, %9, %364 : vector<8x16xi32>
    %366 = arith.extui %365 : vector<8x16xi1> to vector<8x16xi32>
    %367 = arith.sitofp %366 : vector<8x16xi32> to vector<8x16xf32>
    %cst_125 = arith.constant dense<0xFF800000> : vector<8xf32>
    %368 = vector.multi_reduction <maximumf>, %361, %cst_125 [1] : vector<8x16xf32> to vector<8xf32>
    %369 = vector.shape_cast %368 : vector<8xf32> to vector<8x1xf32>
    %370 = vector.broadcast %369 : vector<8x1xf32> to vector<8x16xf32>
    %371 = arith.subf %361, %370 : vector<8x16xf32>
    %372 = math.exp %371 : vector<8x16xf32>
    %cst_126 = arith.constant dense<0.000000e+00> : vector<8xf32>
    %373 = vector.multi_reduction <add>, %372, %cst_126 [1] : vector<8x16xf32> to vector<8xf32>
    %374 = vector.shape_cast %373 : vector<8xf32> to vector<8x1xf32>
    %375 = tpu.reciprocal %374 : vector<8x1xf32> -> vector<8x1xf32>
    %376 = vector.broadcast %375 : vector<8x1xf32> to vector<8x16xf32>
    %377 = arith.mulf %372, %376 : vector<8x16xf32>
    %c0_127 = arith.constant 0 : index
    %c112 = arith.constant 112 : index
    %378 = vector.load %arg5[%c0_127, %c112] : memref<8x128xf32, #tpu.memory_space<vmem>>, vector<8x16xf32>
    tpu.vector_store %arg5[%c0_127, %c112], %377 {strides = array<i32>} : memref<8x128xf32, #tpu.memory_space<vmem>>, vector<8x16xf32>,
    %c0_128 = arith.constant 0 : index
    %c112_129 = arith.constant 112 : index
    %379 = vector.load %arg4[%c0_128, %c112_129] : memref<8x128xf32, #tpu.memory_space<vmem>>, vector<8x16xf32>
    tpu.vector_store %arg4[%c0_128, %c112_129], %367 {strides = array<i32>} : memref<8x128xf32, #tpu.memory_space<vmem>>, vector<8x16xf32>,
    %c160_130 = arith.constant 160 : index
    %c0_131 = arith.constant 0 : index
    %380 = vector.load %arg1[%c160_130, %c0_131] : memref<208x256xf32, #tpu.memory_space<vmem>>, vector<16x32xf32>
    %cst_132 = arith.constant dense<0.000000e+00> : vector<8x32xf32>
    %381 = tpu.matmul %367, %380, %cst_132 {dimension_numbers = #tpu.dot_dimension_numbers<[1], [0], [0], [1], [0, 0, 1, 1], [], []>} : vector<8x16xf32>, vector<16x32xf32>, vector<8x32xf32> -> vector<8x32xf32>
    %382 = arith.addf %381, %8 : vector<8x32xf32>
    %383 = tpu.concatenate %382, %358 in 1 : vector<8x32xf32>, vector<8x64xf32> -> vector<8x96xf32>
    %c0_133 = arith.constant 0 : index
    %c0_134 = arith.constant 0 : index
    %384 = vector.load %arg1[%c0_133, %c0_134] : memref<208x256xf32, #tpu.memory_space<vmem>>, vector<96x256xf32>
    %cst_135 = arith.constant dense<0.000000e+00> : vector<8x256xf32>
    %385 = tpu.matmul %383, %384, %cst_135 {dimension_numbers = #tpu.dot_dimension_numbers<[1], [0], [0], [1], [0, 0, 1, 1], [], []>} : vector<8x96xf32>, vector<96x256xf32>, vector<8x256xf32> -> vector<8x256xf32>
    %386 = arith.addf %385, %2 : vector<8x256xf32>
    %387 = vector.extract_strided_slice %386 {offsets = [0, 0], sizes = [8, 128], strides = [1, 1]} : vector<8x256xf32> to vector<8x128xf32>
    %388 = arith.negf %387 : vector<8x128xf32>
    %389 = math.exp %388 : vector<8x128xf32>
    %cst_136 = arith.constant 1.000000e+00 : f32
    %390 = vector.broadcast %cst_136 : f32 to vector<8x128xf32>
    %391 = arith.addf %390, %389 : vector<8x128xf32>
    %392 = arith.divf %390, %391 : vector<8x128xf32>
    %393 = vector.extract_strided_slice %392 {offsets = [0, 0], sizes = [8, 64], strides = [1, 1]} : vector<8x128xf32> to vector<8x64xf32>
    %394 = vector.extract_strided_slice %392 {offsets = [0, 64], sizes = [8, 64], strides = [1, 1]} : vector<8x128xf32> to vector<8x64xf32>
    %395 = vector.extract_strided_slice %386 {offsets = [0, 128], sizes = [8, 64], strides = [1, 1]} : vector<8x256xf32> to vector<8x64xf32>
    %396 = vector.extract_strided_slice %386 {offsets = [0, 192], sizes = [8, 64], strides = [1, 1]} : vector<8x256xf32> to vector<8x64xf32>
    %397 = arith.mulf %393, %396 : vector<8x64xf32>
    %398 = arith.addf %395, %397 : vector<8x64xf32>
    %399 = math.tanh %398 : vector<8x64xf32>
    %cst_137 = arith.constant 1.000000e+00 : f32
    %400 = vector.broadcast %cst_137 : f32 to vector<8x64xf32>
    %401 = arith.subf %400, %394 : vector<8x64xf32>
    %402 = arith.mulf %401, %399 : vector<8x64xf32>
    %403 = arith.mulf %394, %358 : vector<8x64xf32>
    %404 = arith.addf %402, %403 : vector<8x64xf32>
    %405 = vector.extract_strided_slice %404 {offsets = [0, 32], sizes = [8, 32], strides = [1, 1]} : vector<8x64xf32> to vector<8x32xf32>
    %c0_138 = arith.constant 0 : index
    %c512 = arith.constant 512 : index
    %406 = vector.load %arg2[%c0_138, %c512] : memref<1x640xf32, #tpu.memory_space<vmem>>, vector<1x32xf32>
    %407 = vector.shape_cast %406 : vector<1x32xf32> to vector<1x32xf32>
    %408 = vector.broadcast %407 : vector<1x32xf32> to vector<8x32xf32>
    %c176 = arith.constant 176 : index
    %c0_139 = arith.constant 0 : index
    %409 = vector.load %arg1[%c176, %c0_139] : memref<208x256xf32, #tpu.memory_space<vmem>>, vector<32x32xf32>
    %cst_140 = arith.constant dense<0.000000e+00> : vector<8x32xf32>
    %410 = tpu.matmul %405, %409, %cst_140 {dimension_numbers = #tpu.dot_dimension_numbers<[1], [0], [0], [1], [0, 0, 1, 1], [], []>} : vector<8x32xf32>, vector<32x32xf32>, vector<8x32xf32> -> vector<8x32xf32>
    %411 = arith.addf %410, %408 : vector<8x32xf32>
    %c0_141 = arith.constant 0 : index
    %c0_142 = arith.constant 0 : index
    %412 = vector.load %arg3[%c0_141, %c0_142] : memref<8x32xf32, #tpu.memory_space<vmem>>, vector<8x32xf32>
    tpu.vector_store %arg3[%c0_141, %c0_142], %411 {strides = array<i32>} : memref<8x32xf32, #tpu.memory_space<vmem>>, vector<8x32xf32>,
    return
  }
}

</mosaic_0001>

<llo_original>
// kernel: vae_forward.1
$region0: #{vae_forward.1}
  #allocation0 [shape = 'u32[]', space=smem, size = 0x4, offset = 0x4, fixed_abs, tag = 'smem constant byte address 0x4 - core index']
  #allocation1 [shape = 'u32[144,128]{1,0:T(1,128)}', space=vmem, size = 0x12000, scoped, tag = 'internal scratch']
  %s0 = inlined_call_operand.vmem [shape: f32[8,32], index: 0, kind: input, shape index: {}]
  %s1 = inlined_call_operand.vmem [shape: f32[208,256], index: 1, kind: input, shape index: {}]
  %s2 = inlined_call_operand.vmem [shape: f32[1,640], index: 2, kind: input, shape index: {}]
  %s3 = inlined_call_operand.hbm [shape: f32[8,32], index: 3, kind: output, shape index: {0}]
  %s4 = inlined_call_operand.vmem [shape: f32[8,128], index: 4, kind: output, shape index: {1}]
  %s5 = inlined_call_operand.vmem [shape: f32[8,128], index: 5, kind: output, shape index: {2}]
  %6 = xla_tuple %s3, %s4, %s5
  %s7 = sld [smem:[#allocation0]]
  $region38: #{vae_forward.1} parent=0
    _
  %s9 = ssub.s32 1, %s7
  %s10 = scalar_select 0, %s9, %s7
  $region1: #{vae_forward.1} parent=0
    #allocation2 [shape = 'u8[4096]{0}', space=vmem, size = 0x1000, scoped, tag = 'output window, operand 0, single buffered']
    #allocation3 [shape = 's32[1]{0}', space=sflag, size = 0x4, scoped, tag = 'scoped memory for vae_forward.1']
    %11 = vsyncpa [#allocation3], 0
    // Predicated region
    $region2: #{vae_forward.1} parent=1 // pred_check
      _
    $region3: #{vae_forward.1} parent=1 // pred_check_branch
      %13 = sbr.rel (0) target = $region5
    $region4: #{vae_forward.1} parent=1 // pred_region
      _
    $region5: #{vae_forward.1} parent=1 // pred_fallthru
      _
    // Predicated region
    $region6: #{vae_forward.1} parent=1 // pred_check
      _
    $region7: #{vae_forward.1} parent=1 // pred_check_branch
      %15 = sbr.rel (0) target = $region9
    $region8: #{vae_forward.1} parent=1 // pred_region
      _
    $region9: #{vae_forward.1} parent=1 // pred_fallthru
      _
    // Predicated region
    $region10: #{vae_forward.1} parent=1 // pred_check
      _
    $region11: #{vae_forward.1} parent=1 // pred_check_branch
      %17 = sbr.rel (0) target = $region13
    $region12: #{vae_forward.1} parent=1 // pred_region
      _
    $region13: #{vae_forward.1} parent=1 // pred_fallthru
      _
    %v18 = vld [vmem:[%s2] sm:$0x3]
    %v20 = vlaneseq
    %v21 = vshrl.u32 %v20, 7
    %v22 = vsub.s32 0, %v21
    %v23 = vrot.slane %v18, %v22
    %v24 = vlaneseq
    %v25 = vshrl.u32 %v24, 7
    %v26 = vsub.s32 1, %v25
    %v27 = vrot.slane %v18, %v26
    %v30 = vld [vmem:[%s2 + $0x2] sm:$0x1]
    %v32 = vlaneseq
    %v33 = vshrl.u32 %v32, 7
    %v34 = vsub.s32 0, %v33
    %v35 = vrot.slane %v30, %v34
    %v37 = vld [vmem:[%s2 + $0x3] sm:$0x1]
    %v39 = vlaneseq
    %v40 = vshrl.u32 %v39, 7
    %v41 = vsub.s32 0, %v40
    %v42 = vrot.slane %v37, %v41
    %v44 = vlaneseq
    %v45 = vand.u32 %v44, 127
    %v46 = vld [vmem:[%s0] sm:$0xff]
    %vm47 = vcmask 261120
    %v48 = vsel %vm47, %v46, 0.0
    %50 = vrot.lane.b32.xlu0 %v48, 32
    %v51 = vpop.permute.xlu0 %50
    %v53 = vsel %vm47, 0.0, %v51
    %v54 = vld [vmem:[%s1] sm:$0xff]
    %v55 = vld [vmem:[%s1 + $0x8] sm:$0xff]
    %v56 = vld [vmem:[%s1 + $0x10] sm:$0xff]
    %v57 = vld [vmem:[%s1 + $0x18] sm:$0xff]
    %v58 = vld [vmem:[%s1 + $0x20] sm:$0xff]
    %v59 = vld [vmem:[%s1 + $0x28] sm:$0xff]
    %v60 = vld [vmem:[%s1 + $0x30] sm:$0xff]
    %v61 = vld [vmem:[%s1 + $0x38] sm:$0xff]
    %v62 = vld [vmem:[%s1 + $0x40] sm:$0xff]
    %v63 = vld [vmem:[%s1 + $0x48] sm:$0xff]
    %v64 = vld [vmem:[%s1 + $0x50] sm:$0xff]
    %v65 = vld [vmem:[%s1 + $0x58] sm:$0xff]
    %v66 = vld [vmem:[%s1 + $0x60] sm:$0xff]
    %v67 = vld [vmem:[%s1 + $0x68] sm:$0xff]
    %v68 = vld [vmem:[%s1 + $0x70] sm:$0xff]
    %v69 = vld [vmem:[%s1 + $0x78] sm:$0xff]
    %v70 = vld [vmem:[%s1 + $0x80] sm:$0xff]
    %v71 = vld [vmem:[%s1 + $0x88] sm:$0xff]
    %v72 = vld [vmem:[%s1 + $0x90] sm:$0xff]
    %v73 = vld [vmem:[%s1 + $0x98] sm:$0xff]
    %v74 = vld [vmem:[%s1 + $0xa0] sm:$0xff]
    %v75 = vld [vmem:[%s1 + $0xa8] sm:$0xff]
    %v76 = vld [vmem:[%s1 + $0xb0] sm:$0xff]
    %v77 = vld [vmem:[%s1 + $0xb8] sm:$0xff]
    %vm78 = vcmask 785408
    %v80 = vsel %vm78, %v53, 0
    %82 = vmatprep.subr.mxu0 0.0
    %83 = vmatpush1.msra.mxu0 0.0
    %84 = vmatprep.subr.mxu0 0.0
    %85 = vmatpush1.msra.mxu0 0.0
    %86 = vmatprep.subr.mxu0 0.0
    %87 = vmatpush1.msra.mxu0 0.0
    %88 = vmatprep.subr.mxu0 0.0
    %89 = vmatpush1.msra.mxu0 0.0
    %90 = vmatprep.subr.mxu0 %v77
    %91 = vmatpush1.msra.mxu0 %v76
    %92 = vmatprep.subr.mxu0 %v75
    %93 = vmatpush1.msra.mxu0 %v74
    %94 = vmatprep.subr.mxu0 %v73
    %95 = vmatpush1.msra.mxu0 %v72
    %96 = vmatprep.subr.mxu0 %v71
    %97 = vmatpush1.msra.mxu0 %v70
    %98 = vmatprep.subr.mxu0 %v69
    %99 = vmatpush1.msra.mxu0 %v68
    %100 = vmatprep.subr.mxu0 %v67
    %101 = vmatpush1.msra.mxu0 %v66
    %102 = vmatprep.subr.mxu0 %v65
    %103 = vmatpush1.msra.mxu0 %v64
    %104 = vmatprep.subr.mxu0 %v63
    %105 = vmatpush1.msra.mxu0 %v62
    %106 = vmatprep.subr.mxu0 %v61
    %107 = vmatpush1.msra.mxu0 %v60
    %108 = vmatprep.subr.mxu0 %v59
    %109 = vmatpush1.msra.mxu0 %v58
    %110 = vmatprep.subr.mxu0 %v57
    %111 = vmatpush1.msra.mxu0 %v56
    %112 = vmatprep.subr.mxu0 %v55
    %113 = vmatpush1.msra.mxu0 %v54
    %114 = vmatprep.subr.mxu0 0.0
    %115 = vmatpush2.msra.mxu0 0.0
    %116 = vmatprep.subr.mxu0 0.0
    %117 = vmatpush2.msra.mxu0 0.0
    %118 = vmatprep.subr.mxu0 0.0
    %119 = vmatpush2.msra.mxu0 0.0
    %120 = vmatprep.subr.mxu0 0.0
    %121 = vmatpush2.msra.mxu0 0.0
    %122 = vmatprep.subr.mxu0 0.0
    %123 = vmatpush2.msra.mxu0 0.0
    %124 = vmatprep.subr.mxu0 0.0
    %125 = vmatpush2.msra.mxu0 0.0
    %126 = vmatprep.subr.mxu0 0.0
    %127 = vmatpush2.msra.mxu0 0.0
    %128 = vmatprep.subr.mxu0 0.0
    %129 = vmatpush2.msra.mxu0 0.0
    %130 = vmatprep.subr.mxu0 0.0
    %131 = vmatpush2.msra.mxu0 0.0
    %132 = vmatprep.subr.mxu0 0.0
    %133 = vmatpush2.msra.mxu0 0.0
    %134 = vmatprep.subr.mxu0 0.0
    %135 = vmatpush2.msra.mxu0 0.0
    %136 = vmatprep.subr.mxu0 0.0
    %137 = vmatpush2.msra.mxu0 0.0
    %138 = vmatprep.subr.mxu0 0.0
    %139 = vmatpush2.msra.mxu0 0.0
    %140 = vmatprep.subr.mxu0 0.0
    %141 = vmatpush2.msra.mxu0 0.0
    %142 = vmatprep.subr.mxu0 0.0
    %143 = vmatpush2.msra.mxu0 0.0
    %144 = vmatprep.subr.mxu0 0.0
    %145 = vmatpush2.msra.mxu0 0.0
    %146 = vmatprep.mubr.f32.mxu0 0.0
    %147 = vmatmul.mubr.f32.gmra.mxu0 %v80
    %v148 = vpop.f32.mrf.mxu0
    %v149 = vadd.f32 %v23, %v148
    %v150 = vpop.f32.mrf.mxu0
    %v151 = vadd.f32 %v27, %v150
    %152 = vdwg.mxu0
    %v153 = vxor.u32 %v149, 2147483648
    %v154 = vmul.f32 %v153, 1.442695
    %v155 = vpow.pop %v154
    %v156 = vadd.f32 %v155, 1.0
    %v157 = vrcp.pop %v156
    %v158 = vmul.f32 1.0, %v157
    %160 = vrot.lane.b32.xlu0 %v151, 64
    %v161 = vpop.permute.xlu0 %160
    %v163 = vmul.f32 %v158, %v161
    %v164 = vadd.f32 %v151, %v163
    %v165 = vtanh.pop %v164
    %v166 = vsub.f32 1.0, %v158
    %168 = vrot.lane.b32.xlu0 %v165, 64
    %v169 = vpop.permute.xlu0 %168
    %v171 = vmul.f32 %v166, %v169
    %172 = vrot.lane.b32.xlu0 %v48, 64
    %v173 = vpop.permute.xlu0 %172
    %v175 = vmul.f32 %v158, %v173
    %v176 = vadd.f32 %v171, %v175
    %178 = vrot.lane.b32.xlu0 %v176, 64
    %v179 = vpop.permute.xlu0 %178
    %v181 = vsel %vm47, %v179, 0.0
    %v182 = vld [vmem:[%s1 + $0xc0] sm:$0xff]
    %v183 = vld [vmem:[%s1 + $0xd0] sm:$0xff]
    %v184 = vld [vmem:[%s1 + $0xe0] sm:$0xff]
    %v185 = vld [vmem:[%s1 + $0xf0] sm:$0xff]
    %v186 = vld [vmem:[%s1 + $0x100] sm:$0xff]
    %v187 = vld [vmem:[%s1 + $0x110] sm:$0xff]
    %v188 = vld [vmem:[%s1 + $0x120] sm:$0xff]
    %v189 = vld [vmem:[%s1 + $0x130] sm:$0xff]
    %vm190 = vcmask 523264
    %v192 = vsel %vm190, %v181, 0
    %194 = vmatprep.subr.mxu0 0.0
    %195 = vmatpush1.msra.mxu0 0.0
    %196 = vmatprep.subr.mxu0 0.0
    %197 = vmatpush1.msra.mxu0 0.0
    %198 = vmatprep.subr.mxu0 0.0
    %199 = vmatpush1.msra.mxu0 0.0
    %200 = vmatprep.subr.mxu0 0.0
    %201 = vmatpush1.msra.mxu0 0.0
    %202 = vmatprep.subr.mxu0 0.0
    %203 = vmatpush1.msra.mxu0 0.0
    %204 = vmatprep.subr.mxu0 0.0
    %205 = vmatpush1.msra.mxu0 0.0
    %206 = vmatprep.subr.mxu0 0.0
    %207 = vmatpush1.msra.mxu0 0.0
    %208 = vmatprep.subr.mxu0 0.0
    %209 = vmatpush1.msra.mxu0 0.0
    %210 = vmatprep.subr.mxu0 0.0
    %211 = vmatpush1.msra.mxu0 %v189
    %212 = vmatprep.subr.mxu0 0.0
    %213 = vmatpush1.msra.mxu0 %v188
    %214 = vmatprep.subr.mxu0 0.0
    %215 = vmatpush1.msra.mxu0 %v187
    %216 = vmatprep.subr.mxu0 0.0
    %217 = vmatpush1.msra.mxu0 %v186
    %218 = vmatprep.subr.mxu0 0.0
    %219 = vmatpush1.msra.mxu0 %v185
    %220 = vmatprep.subr.mxu0 0.0
    %221 = vmatpush1.msra.mxu0 %v184
    %222 = vmatprep.subr.mxu0 0.0
    %223 = vmatpush1.msra.mxu0 %v183
    %224 = vmatprep.subr.mxu0 0.0
    %225 = vmatpush1.msra.mxu0 %v182
    %226 = vmatprep.subr.mxu0 0.0
    %227 = vmatpush2.msra.mxu0 0.0
    %228 = vmatprep.subr.mxu0 0.0
    %229 = vmatpush2.msra.mxu0 0.0
    %230 = vmatprep.subr.mxu0 0.0
    %231 = vmatpush2.msra.mxu0 0.0
    %232 = vmatprep.subr.mxu0 0.0
    %233 = vmatpush2.msra.mxu0 0.0
    %234 = vmatprep.subr.mxu0 0.0
    %235 = vmatpush2.msra.mxu0 0.0
    %236 = vmatprep.subr.mxu0 0.0
    %237 = vmatpush2.msra.mxu0 0.0
    %238 = vmatprep.subr.mxu0 0.0
    %239 = vmatpush2.msra.mxu0 0.0
    %240 = vmatprep.subr.mxu0 0.0
    %241 = vmatpush2.msra.mxu0 0.0
    %242 = vmatprep.subr.mxu0 0.0
    %243 = vmatpush2.msra.mxu0 0.0
    %244 = vmatprep.subr.mxu0 0.0
    %245 = vmatpush2.msra.mxu0 0.0
    %246 = vmatprep.subr.mxu0 0.0
    %247 = vmatpush2.msra.mxu0 0.0
    %248 = vmatprep.subr.mxu0 0.0
    %249 = vmatpush2.msra.mxu0 0.0
    %250 = vmatprep.subr.mxu0 0.0
    %251 = vmatpush2.msra.mxu0 0.0
    %252 = vmatprep.subr.mxu0 0.0
    %253 = vmatpush2.msra.mxu0 0.0
    %254 = vmatprep.subr.mxu0 0.0
    %255 = vmatpush2.msra.mxu0 0.0
    %256 = vmatprep.subr.mxu0 0.0
    %257 = vmatpush2.msra.mxu0 0.0
    %258 = vmatprep.mubr.f32.mxu0 0.0
    %259 = vmatmul.mubr.f32.gmra.mxu0 %v192
    %v260 = vpop.f32.mrf.mxu0
    %v261 = vadd.f32 %v35, %v260
    %v262 = vpop.f32.mrf.mxu0
    %263 = vdwg.mxu0
    %vm264 = vcmask 130048
    %v265 = vsel %vm264, %v261, -inf
    %266 = vmax.index.xlane.f32.xlu0 %v265
    %v267 = vpop.xlane.xlu0 %266
    %vm268 = vcmp.eq.s32.totalorder %v45, %v267
    %v269 = vsel %vm268, 1, 0
    %v270 = vcvt.s32.f32 %v269
    %271 = vmax.xlane.f32.xlu0 %v265
    %v272 = vpop.xlane.xlu0 %271
    %v273 = vsub.f32 %v261, %v272
    %v274 = vmul.f32 %v273, 1.442695
    %v275 = vpow.pop %v274
    %v276 = vsel %vm264, %v275, 0.0
    %277 = vadd.xlane.f32.xlu0 %v276
    %v278 = vpop.xlane.xlu0 %277
    %v279 = vrcp.pop %v278
    %v280 = vmul.f32 %v275, %v279
    %281 = vst.msk [vmem:[%s5] sm:$0xff] %vm264, %v280
    %282 = vst.msk [vmem:[%s4] sm:$0xff] %vm264, %v270
    %v283 = vld [vmem:[%s1 + $0x140] sm:$0xff]
    %v284 = vld [vmem:[%s1 + $0x150] sm:$0xff]
    %v286 = vsel %vm264, %v270, 0
    %288 = vmatprep.subr.mxu0 0.0
    %289 = vmatpush1.msra.mxu0 0.0
    %290 = vmatprep.subr.mxu0 0.0
    %291 = vmatpush1.msra.mxu0 0.0
    %292 = vmatprep.subr.mxu0 0.0
    %293 = vmatpush1.msra.mxu0 0.0
    %294 = vmatprep.subr.mxu0 0.0
    %295 = vmatpush1.msra.mxu0 0.0
    %296 = vmatprep.subr.mxu0 0.0
    %297 = vmatpush1.msra.mxu0 0.0
    %298 = vmatprep.subr.mxu0 0.0
    %299 = vmatpush1.msra.mxu0 0.0
    %300 = vmatprep.subr.mxu0 0.0
    %301 = vmatpush1.msra.mxu0 0.0
    %302 = vmatprep.subr.mxu0 0.0
    %303 = vmatpush1.msra.mxu0 0.0
    %304 = vmatprep.subr.mxu0 0.0
    %305 = vmatpush1.msra.mxu0 0.0
    %306 = vmatprep.subr.mxu0 0.0
    %307 = vmatpush1.msra.mxu0 0.0
    %308 = vmatprep.subr.mxu0 0.0
    %309 = vmatpush1.msra.mxu0 0.0
    %310 = vmatprep.subr.mxu0 0.0
    %311 = vmatpush1.msra.mxu0 0.0
    %312 = vmatprep.subr.mxu0 0.0
    %313 = vmatpush1.msra.mxu0 0.0
    %314 = vmatprep.subr.mxu0 0.0
    %315 = vmatpush1.msra.mxu0 0.0
    %316 = vmatprep.subr.mxu0 0.0
    %317 = vmatpush1.msra.mxu0 %v284
    %318 = vmatprep.subr.mxu0 0.0
    %319 = vmatpush1.msra.mxu0 %v283
    %320 = vmatprep.subr.mxu0 0.0
    %321 = vmatpush2.msra.mxu0 0.0
    %322 = vmatprep.subr.mxu0 0.0
    %323 = vmatpush2.msra.mxu0 0.0
    %324 = vmatprep.subr.mxu0 0.0
    %325 = vmatpush2.msra.mxu0 0.0
    %326 = vmatprep.subr.mxu0 0.0
    %327 = vmatpush2.msra.mxu0 0.0
    %328 = vmatprep.subr.mxu0 0.0
    %329 = vmatpush2.msra.mxu0 0.0
    %330 = vmatprep.subr.mxu0 0.0
    %331 = vmatpush2.msra.mxu0 0.0
    %332 = vmatprep.subr.mxu0 0.0
    %333 = vmatpush2.msra.mxu0 0.0
    %334 = vmatprep.subr.mxu0 0.0
    %335 = vmatpush2.msra.mxu0 0.0
    %336 = vmatprep.subr.mxu0 0.0
    %337 = vmatpush2.msra.mxu0 0.0
    %338 = vmatprep.subr.mxu0 0.0
    %339 = vmatpush2.msra.mxu0 0.0
    %340 = vmatprep.subr.mxu0 0.0
    %341 = vmatpush2.msra.mxu0 0.0
    %342 = vmatprep.subr.mxu0 0.0
    %343 = vmatpush2.msra.mxu0 0.0
    %344 = vmatprep.subr.mxu0 0.0
    %345 = vmatpush2.msra.mxu0 0.0
    %346 = vmatprep.subr.mxu0 0.0
    %347 = vmatpush2.msra.mxu0 0.0
    %348 = vmatprep.subr.mxu0 0.0
    %349 = vmatpush2.msra.mxu0 0.0
    %350 = vmatprep.subr.mxu0 0.0
    %351 = vmatpush2.msra.mxu0 0.0
    %352 = vmatprep.mubr.f32.mxu0 0.0
    %353 = vmatmul.mubr.f32.gmra.mxu0 %v286
    %v354 = vpop.f32.mrf.mxu0
    %v355 = vadd.f32 %v42, %v354
    %v356 = vpop.f32.mrf.mxu0
    %357 = vdwg.mxu0
    %358 = vrot.lane.b32.xlu0 %v181, 32
    %v359 = vpop.permute.xlu0 %358
    %v361 = vsel %vm47, %v355, %v359
    %v362 = vld [vmem:[%s1] sm:$0xff]
    %v363 = vld [vmem:[%s1 + $0x8] sm:$0xff]
    %v364 = vld [vmem:[%s1 + $0x10] sm:$0xff]
    %v365 = vld [vmem:[%s1 + $0x18] sm:$0xff]
    %v366 = vld [vmem:[%s1 + $0x20] sm:$0xff]
    %v367 = vld [vmem:[%s1 + $0x28] sm:$0xff]
    %v368 = vld [vmem:[%s1 + $0x30] sm:$0xff]
    %v369 = vld [vmem:[%s1 + $0x38] sm:$0xff]
    %v370 = vld [vmem:[%s1 + $0x40] sm:$0xff]
    %v371 = vld [vmem:[%s1 + $0x48] sm:$0xff]
    %v372 = vld [vmem:[%s1 + $0x50] sm:$0xff]
    %v373 = vld [vmem:[%s1 + $0x58] sm:$0xff]
    %v374 = vld [vmem:[%s1 + $0x60] sm:$0xff]
    %v375 = vld [vmem:[%s1 + $0x68] sm:$0xff]
    %v376 = vld [vmem:[%s1 + $0x70] sm:$0xff]
    %v377 = vld [vmem:[%s1 + $0x78] sm:$0xff]
    %v378 = vld [vmem:[%s1 + $0x80] sm:$0xff]
    %v379 = vld [vmem:[%s1 + $0x88] sm:$0xff]
    %v380 = vld [vmem:[%s1 + $0x90] sm:$0xff]
    %v381 = vld [vmem:[%s1 + $0x98] sm:$0xff]
    %v382 = vld [vmem:[%s1 + $0xa0] sm:$0xff]
    %v383 = vld [vmem:[%s1 + $0xa8] sm:$0xff]
    %v384 = vld [vmem:[%s1 + $0xb0] sm:$0xff]
    %v385 = vld [vmem:[%s1 + $0xb8] sm:$0xff]
    %v387 = vsel %vm78, %v361, 0
    %389 = vmatprep.subr.mxu0 0.0
    %390 = vmatpush1.msra.mxu0 0.0
    %391 = vmatprep.subr.mxu0 0.0
    %392 = vmatpush1.msra.mxu0 0.0
    %393 = vmatprep.subr.mxu0 0.0
    %394 = vmatpush1.msra.mxu0 0.0
    %395 = vmatprep.subr.mxu0 0.0
    %396 = vmatpush1.msra.mxu0 0.0
    %397 = vmatprep.subr.mxu0 %v385
    %398 = vmatpush1.msra.mxu0 %v384
    %399 = vmatprep.subr.mxu0 %v383
    %400 = vmatpush1.msra.mxu0 %v382
    %401 = vmatprep.subr.mxu0 %v381
    %402 = vmatpush1.msra.mxu0 %v380
    %403 = vmatprep.subr.mxu0 %v379
    %404 = vmatpush1.msra.mxu0 %v378
    %405 = vmatprep.subr.mxu0 %v377
    %406 = vmatpush1.msra.mxu0 %v376
    %407 = vmatprep.subr.mxu0 %v375
    %408 = vmatpush1.msra.mxu0 %v374
    %409 = vmatprep.subr.mxu0 %v373
    %410 = vmatpush1.msra.mxu0 %v372
    %411 = vmatprep.subr.mxu0 %v371
    %412 = vmatpush1.msra.mxu0 %v370
    %413 = vmatprep.subr.mxu0 %v369
    %414 = vmatpush1.msra.mxu0 %v368
    %415 = vmatprep.subr.mxu0 %v367
    %416 = vmatpush1.msra.mxu0 %v366
    %417 = vmatprep.subr.mxu0 %v365
    %418 = vmatpush1.msra.mxu0 %v364
    %419 = vmatprep.subr.mxu0 %v363
    %420 = vmatpush1.msra.mxu0 %v362
    %421 = vmatprep.subr.mxu0 0.0
    %422 = vmatpush2.msra.mxu0 0.0
    %423 = vmatprep.subr.mxu0 0.0
    %424 = vmatpush2.msra.mxu0 0.0
    %425 = vmatprep.subr.mxu0 0.0
    %426 = vmatpush2.msra.mxu0 0.0
    %427 = vmatprep.subr.mxu0 0.0
    %428 = vmatpush2.msra.mxu0 0.0
    %429 = vmatprep.subr.mxu0 0.0
    %430 = vmatpush2.msra.mxu0 0.0
    %431 = vmatprep.subr.mxu0 0.0
    %432 = vmatpush2.msra.mxu0 0.0
    %433 = vmatprep.subr.mxu0 0.0
    %434 = vmatpush2.msra.mxu0 0.0
    %435 = vmatprep.subr.mxu0 0.0
    %436 = vmatpush2.msra.mxu0 0.0
    %437 = vmatprep.subr.mxu0 0.0
    %438 = vmatpush2.msra.mxu0 0.0
    %439 = vmatprep.subr.mxu0 0.0
    %440 = vmatpush2.msra.mxu0 0.0
    %441 = vmatprep.subr.mxu0 0.0
    %442 = vmatpush2.msra.mxu0 0.0
    %443 = vmatprep.subr.mxu0 0.0
    %444 = vmatpush2.msra.mxu0 0.0
    %445 = vmatprep.subr.mxu0 0.0
    %446 = vmatpush2.msra.mxu0 0.0
    %447 = vmatprep.subr.mxu0 0.0
    %448 = vmatpush2.msra.mxu0 0.0
    %449 = vmatprep.subr.mxu0 0.0
    %450 = vmatpush2.msra.mxu0 0.0
    %451 = vmatprep.subr.mxu0 0.0
    %452 = vmatpush2.msra.mxu0 0.0
    %453 = vmatprep.mubr.f32.mxu0 0.0
    %454 = vmatmul.mubr.f32.gmra.mxu0 %v387
    %v455 = vpop.f32.mrf.mxu0
    %v456 = vadd.f32 %v23, %v455
    %v457 = vpop.f32.mrf.mxu0
    %v458 = vadd.f32 %v27, %v457
    %459 = vdwg.mxu0
    %v460 = vxor.u32 %v456, 2147483648
    %v461 = vmul.f32 %v460, 1.442695
    %v462 = vpow.pop %v461
    %v463 = vadd.f32 %v462, 1.0
    %v464 = vrcp.pop %v463
    %v465 = vmul.f32 1.0, %v464
    %467 = vrot.lane.b32.xlu0 %v458, 64
    %v468 = vpop.permute.xlu0 %467
    %v470 = vmul.f32 %v465, %v468
    %v471 = vadd.f32 %v458, %v470
    %v472 = vtanh.pop %v471
    %v473 = vsub.f32 1.0, %v465
    %475 = vrot.lane.b32.xlu0 %v472, 64
    %v476 = vpop.permute.xlu0 %475
    %v478 = vmul.f32 %v473, %v476
    %479 = vrot.lane.b32.xlu0 %v181, 64
    %v480 = vpop.permute.xlu0 %479
    %v482 = vmul.f32 %v465, %v480
    %v483 = vadd.f32 %v478, %v482
    %v484 = vld [vmem:[%s1 + $0xc0] sm:$0xff]
    %v485 = vld [vmem:[%s1 + $0xd0] sm:$0xff]
    %v486 = vld [vmem:[%s1 + $0xe0] sm:$0xff]
    %v487 = vld [vmem:[%s1 + $0xf0] sm:$0xff]
    %v488 = vld [vmem:[%s1 + $0x100] sm:$0xff]
    %v489 = vld [vmem:[%s1 + $0x110] sm:$0xff]
    %v490 = vld [vmem:[%s1 + $0x120] sm:$0xff]
    %v491 = vld [vmem:[%s1 + $0x130] sm:$0xff]
    %493 = vrot.lane.b32.xlu0 %v483, 64
    %v494 = vpop.permute.xlu0 %493
    %v495 = vsel %vm190, %v494, 0
    %497 = vmatprep.subr.mxu0 0.0
    %498 = vmatpush1.msra.mxu0 0.0
    %499 = vmatprep.subr.mxu0 0.0
    %500 = vmatpush1.msra.mxu0 0.0
    %501 = vmatprep.subr.mxu0 0.0
    %502 = vmatpush1.msra.mxu0 0.0
    %503 = vmatprep.subr.mxu0 0.0
    %504 = vmatpush1.msra.mxu0 0.0
    %505 = vmatprep.subr.mxu0 0.0
    %506 = vmatpush1.msra.mxu0 0.0
    %507 = vmatprep.subr.mxu0 0.0
    %508 = vmatpush1.msra.mxu0 0.0
    %509 = vmatprep.subr.mxu0 0.0
    %510 = vmatpush1.msra.mxu0 0.0
    %511 = vmatprep.subr.mxu0 0.0
    %512 = vmatpush1.msra.mxu0 0.0
    %513 = vmatprep.subr.mxu0 0.0
    %514 = vmatpush1.msra.mxu0 %v491
    %515 = vmatprep.subr.mxu0 0.0
    %516 = vmatpush1.msra.mxu0 %v490
    %517 = vmatprep.subr.mxu0 0.0
    %518 = vmatpush1.msra.mxu0 %v489
    %519 = vmatprep.subr.mxu0 0.0
    %520 = vmatpush1.msra.mxu0 %v488
    %521 = vmatprep.subr.mxu0 0.0
    %522 = vmatpush1.msra.mxu0 %v487
    %523 = vmatprep.subr.mxu0 0.0
    %524 = vmatpush1.msra.mxu0 %v486
    %525 = vmatprep.subr.mxu0 0.0
    %526 = vmatpush1.msra.mxu0 %v485
    %527 = vmatprep.subr.mxu0 0.0
    %528 = vmatpush1.msra.mxu0 %v484
    %529 = vmatprep.subr.mxu0 0.0
    %530 = vmatpush2.msra.mxu0 0.0
    %531 = vmatprep.subr.mxu0 0.0
    %532 = vmatpush2.msra.mxu0 0.0
    %533 = vmatprep.subr.mxu0 0.0
    %534 = vmatpush2.msra.mxu0 0.0
    %535 = vmatprep.subr.mxu0 0.0
    %536 = vmatpush2.msra.mxu0 0.0
    %537 = vmatprep.subr.mxu0 0.0
    %538 = vmatpush2.msra.mxu0 0.0
    %539 = vmatprep.subr.mxu0 0.0
    %540 = vmatpush2.msra.mxu0 0.0
    %541 = vmatprep.subr.mxu0 0.0
    %542 = vmatpush2.msra.mxu0 0.0
    %543 = vmatprep.subr.mxu0 0.0
    %544 = vmatpush2.msra.mxu0 0.0
    %545 = vmatprep.subr.mxu0 0.0
    %546 = vmatpush2.msra.mxu0 0.0
    %547 = vmatprep.subr.mxu0 0.0
    %548 = vmatpush2.msra.mxu0 0.0
    %549 = vmatprep.subr.mxu0 0.0
    %550 = vmatpush2.msra.mxu0 0.0
    %551 = vmatprep.subr.mxu0 0.0
    %552 = vmatpush2.msra.mxu0 0.0
    %553 = vmatprep.subr.mxu0 0.0
    %554 = vmatpush2.msra.mxu0 0.0
    %555 = vmatprep.subr.mxu0 0.0
    %556 = vmatpush2.msra.mxu0 0.0
    %557 = vmatprep.subr.mxu0 0.0
    %558 = vmatpush2.msra.mxu0 0.0
    %559 = vmatprep.subr.mxu0 0.0
    %560 = vmatpush2.msra.mxu0 0.0
    %561 = vmatprep.mubr.f32.mxu0 0.0
    %562 = vmatmul.mubr.f32.gmra.mxu0 %v495
    %v563 = vpop.f32.mrf.mxu0
    %v564 = vadd.f32 %v35, %v563
    %v565 = vpop.f32.mrf.mxu0
    %566 = vdwg.mxu0
    %v567 = vsel %vm264, %v564, -inf
    %568 = vmax.index.xlane.f32.xlu0 %v567
    %v569 = vpop.xlane.xlu0 %568
    %vm570 = vcmp.eq.s32.totalorder %v45, %v569
    %v571 = vsel %vm570, 1, 0
    %v572 = vcvt.s32.f32 %v571
    %573 = vmax.xlane.f32.xlu0 %v567
    %v574 = vpop.xlane.xlu0 %573
    %v575 = vsub.f32 %v564, %v574
    %v576 = vmul.f32 %v575, 1.442695
    %v577 = vpow.pop %v576
    %v578 = vsel %vm264, %v577, 0.0
    %579 = vadd.xlane.f32.xlu0 %v578
    %v580 = vpop.xlane.xlu0 %579
    %v581 = vrcp.pop %v580
    %v582 = vmul.f32 %v577, %v581
    %584 = vrot.lane.b32.xlu0 %v582, 16
    %v585 = vpop.permute.xlu0 %584
    %vm587 = vcmask 261248
    %588 = vst.msk [vmem:[%s5] sm:$0xff] %vm587, %v585
    %590 = vrot.lane.b32.xlu0 %v572, 16
    %v591 = vpop.permute.xlu0 %590
    %593 = vst.msk [vmem:[%s4] sm:$0xff] %vm587, %v591
    %v594 = vld [vmem:[%s1 + $0x140] sm:$0xff]
    %v595 = vld [vmem:[%s1 + $0x150] sm:$0xff]
    %v596 = vsel %vm264, %v572, 0
    %598 = vmatprep.subr.mxu0 0.0
    %599 = vmatpush1.msra.mxu0 0.0
    %600 = vmatprep.subr.mxu0 0.0
    %601 = vmatpush1.msra.mxu0 0.0
    %602 = vmatprep.subr.mxu0 0.0
    %603 = vmatpush1.msra.mxu0 0.0
    %604 = vmatprep.subr.mxu0 0.0
    %605 = vmatpush1.msra.mxu0 0.0
    %606 = vmatprep.subr.mxu0 0.0
    %607 = vmatpush1.msra.mxu0 0.0
    %608 = vmatprep.subr.mxu0 0.0
    %609 = vmatpush1.msra.mxu0 0.0
    %610 = vmatprep.subr.mxu0 0.0
    %611 = vmatpush1.msra.mxu0 0.0
    %612 = vmatprep.subr.mxu0 0.0
    %613 = vmatpush1.msra.mxu0 0.0
    %614 = vmatprep.subr.mxu0 0.0
    %615 = vmatpush1.msra.mxu0 0.0
    %616 = vmatprep.subr.mxu0 0.0
    %617 = vmatpush1.msra.mxu0 0.0
    %618 = vmatprep.subr.mxu0 0.0
    %619 = vmatpush1.msra.mxu0 0.0
    %620 = vmatprep.subr.mxu0 0.0
    %621 = vmatpush1.msra.mxu0 0.0
    %622 = vmatprep.subr.mxu0 0.0
    %623 = vmatpush1.msra.mxu0 0.0
    %624 = vmatprep.subr.mxu0 0.0
    %625 = vmatpush1.msra.mxu0 0.0
    %626 = vmatprep.subr.mxu0 0.0
    %627 = vmatpush1.msra.mxu0 %v595
    %628 = vmatprep.subr.mxu0 0.0
    %629 = vmatpush1.msra.mxu0 %v594
    %630 = vmatprep.subr.mxu0 0.0
    %631 = vmatpush2.msra.mxu0 0.0
    %632 = vmatprep.subr.mxu0 0.0
    %633 = vmatpush2.msra.mxu0 0.0
    %634 = vmatprep.subr.mxu0 0.0
    %635 = vmatpush2.msra.mxu0 0.0
    %636 = vmatprep.subr.mxu0 0.0
    %637 = vmatpush2.msra.mxu0 0.0
    %638 = vmatprep.subr.mxu0 0.0
    %639 = vmatpush2.msra.mxu0 0.0
    %640 = vmatprep.subr.mxu0 0.0
    %641 = vmatpush2.msra.mxu0 0.0
    %642 = vmatprep.subr.mxu0 0.0
    %643 = vmatpush2.msra.mxu0 0.0
    %644 = vmatprep.subr.mxu0 0.0
    %645 = vmatpush2.msra.mxu0 0.0
    %646 = vmatprep.subr.mxu0 0.0
    %647 = vmatpush2.msra.mxu0 0.0
    %648 = vmatprep.subr.mxu0 0.0
    %649 = vmatpush2.msra.mxu0 0.0
    %650 = vmatprep.subr.mxu0 0.0
    %651 = vmatpush2.msra.mxu0 0.0
    %652 = vmatprep.subr.mxu0 0.0
    %653 = vmatpush2.msra.mxu0 0.0
    %654 = vmatprep.subr.mxu0 0.0
    %655 = vmatpush2.msra.mxu0 0.0
    %656 = vmatprep.subr.mxu0 0.0
    %657 = vmatpush2.msra.mxu0 0.0
    %658 = vmatprep.subr.mxu0 0.0
    %659 = vmatpush2.msra.mxu0 0.0
    %660 = vmatprep.subr.mxu0 0.0
    %661 = vmatpush2.msra.mxu0 0.0
    %662 = vmatprep.mubr.f32.mxu0 0.0
    %663 = vmatmul.mubr.f32.gmra.mxu0 %v596
    %v664 = vpop.f32.mrf.mxu0
    %v665 = vadd.f32 %v42, %v664
    %v666 = vpop.f32.mrf.mxu0
    %667 = vdwg.mxu0
    %668 = vrot.lane.b32.xlu0 %v483, 96
    %v669 = vpop.permute.xlu0 %668
    %v671 = vsel %vm47, %v665, %v669
    %v672 = vld [vmem:[%s1] sm:$0xff]
    %v673 = vld [vmem:[%s1 + $0x8] sm:$0xff]
    %v674 = vld [vmem:[%s1 + $0x10] sm:$0xff]
    %v675 = vld [vmem:[%s1 + $0x18] sm:$0xff]
    %v676 = vld [vmem:[%s1 + $0x20] sm:$0xff]
    %v677 = vld [vmem:[%s1 + $0x28] sm:$0xff]
    %v678 = vld [vmem:[%s1 + $0x30] sm:$0xff]
    %v679 = vld [vmem:[%s1 + $0x38] sm:$0xff]
    %v680 = vld [vmem:[%s1 + $0x40] sm:$0xff]
    %v681 = vld [vmem:[%s1 + $0x48] sm:$0xff]
    %v682 = vld [vmem:[%s1 + $0x50] sm:$0xff]
    %v683 = vld [vmem:[%s1 + $0x58] sm:$0xff]
    %v684 = vld [vmem:[%s1 + $0x60] sm:$0xff]
    %v685 = vld [vmem:[%s1 + $0x68] sm:$0xff]
    %v686 = vld [vmem:[%s1 + $0x70] sm:$0xff]
    %v687 = vld [vmem:[%s1 + $0x78] sm:$0xff]
    %v688 = vld [vmem:[%s1 + $0x80] sm:$0xff]
    %v689 = vld [vmem:[%s1 + $0x88] sm:$0xff]
    %v690 = vld [vmem:[%s1 + $0x90] sm:$0xff]
    %v691 = vld [vmem:[%s1 + $0x98] sm:$0xff]
    %v692 = vld [vmem:[%s1 + $0xa0] sm:$0xff]
    %v693 = vld [vmem:[%s1 + $0xa8] sm:$0xff]
    %v694 = vld [vmem:[%s1 + $0xb0] sm:$0xff]
    %v695 = vld [vmem:[%s1 + $0xb8] sm:$0xff]
    %v697 = vsel %vm78, %v671, 0
    %699 = vmatprep.subr.mxu0 0.0
    %700 = vmatpush1.msra.mxu0 0.0
    %701 = vmatprep.subr.mxu0 0.0
    %702 = vmatpush1.msra.mxu0 0.0
    %703 = vmatprep.subr.mxu0 0.0
    %704 = vmatpush1.msra.mxu0 0.0
    %705 = vmatprep.subr.mxu0 0.0
    %706 = vmatpush1.msra.mxu0 0.0
    %707 = vmatprep.subr.mxu0 %v695
    %708 = vmatpush1.msra.mxu0 %v694
    %709 = vmatprep.subr.mxu0 %v693
    %710 = vmatpush1.msra.mxu0 %v692
    %711 = vmatprep.subr.mxu0 %v691
    %712 = vmatpush1.msra.mxu0 %v690
    %713 = vmatprep.subr.mxu0 %v689
    %714 = vmatpush1.msra.mxu0 %v688
    %715 = vmatprep.subr.mxu0 %v687
    %716 = vmatpush1.msra.mxu0 %v686
    %717 = vmatprep.subr.mxu0 %v685
    %718 = vmatpush1.msra.mxu0 %v684
    %719 = vmatprep.subr.mxu0 %v683
    %720 = vmatpush1.msra.mxu0 %v682
    %721 = vmatprep.subr.mxu0 %v681
    %722 = vmatpush1.msra.mxu0 %v680
    %723 = vmatprep.subr.mxu0 %v679
    %724 = vmatpush1.msra.mxu0 %v678
    %725 = vmatprep.subr.mxu0 %v677
    %726 = vmatpush1.msra.mxu0 %v676
    %727 = vmatprep.subr.mxu0 %v675
    %728 = vmatpush1.msra.mxu0 %v674
    %729 = vmatprep.subr.mxu0 %v673
    %730 = vmatpush1.msra.mxu0 %v672
    %731 = vmatprep.subr.mxu0 0.0
    %732 = vmatpush2.msra.mxu0 0.0
    %733 = vmatprep.subr.mxu0 0.0
    %734 = vmatpush2.msra.mxu0 0.0
    %735 = vmatprep.subr.mxu0 0.0
    %736 = vmatpush2.msra.mxu0 0.0
    %737 = vmatprep.subr.mxu0 0.0
    %738 = vmatpush2.msra.mxu0 0.0
    %739 = vmatprep.subr.mxu0 0.0
    %740 = vmatpush2.msra.mxu0 0.0
    %741 = vmatprep.subr.mxu0 0.0
    %742 = vmatpush2.msra.mxu0 0.0
    %743 = vmatprep.subr.mxu0 0.0
    %744 = vmatpush2.msra.mxu0 0.0
    %745 = vmatprep.subr.mxu0 0.0
    %746 = vmatpush2.msra.mxu0 0.0
    %747 = vmatprep.subr.mxu0 0.0
    %748 = vmatpush2.msra.mxu0 0.0
    %749 = vmatprep.subr.mxu0 0.0
    %750 = vmatpush2.msra.mxu0 0.0
    %751 = vmatprep.subr.mxu0 0.0
    %752 = vmatpush2.msra.mxu0 0.0
    %753 = vmatprep.subr.mxu0 0.0
    %754 = vmatpush2.msra.mxu0 0.0
    %755 = vmatprep.subr.mxu0 0.0
    %756 = vmatpush2.msra.mxu0 0.0
    %757 = vmatprep.subr.mxu0 0.0
    %758 = vmatpush2.msra.mxu0 0.0
    %759 = vmatprep.subr.mxu0 0.0
    %760 = vmatpush2.msra.mxu0 0.0
    %761 = vmatprep.subr.mxu0 0.0
    %762 = vmatpush2.msra.mxu0 0.0
    %763 = vmatprep.mubr.f32.mxu0 0.0
    %764 = vmatmul.mubr.f32.gmra.mxu0 %v697
    %v765 = vpop.f32.mrf.mxu0
    %v766 = vadd.f32 %v23, %v765
    %v767 = vpop.f32.mrf.mxu0
    %v768 = vadd.f32 %v27, %v767
    %769 = vdwg.mxu0
    %v770 = vxor.u32 %v766, 2147483648
    %v771 = vmul.f32 %v770, 1.442695
    %v772 = vpow.pop %v771
    %v773 = vadd.f32 %v772, 1.0
    %v774 = vrcp.pop %v773
    %v775 = vmul.f32 1.0, %v774
    %777 = vrot.lane.b32.xlu0 %v768, 64
    %v778 = vpop.permute.xlu0 %777
    %v780 = vmul.f32 %v775, %v778
    %v781 = vadd.f32 %v768, %v780
    %v782 = vtanh.pop %v781
    %v783 = vsub.f32 1.0, %v775
    %785 = vrot.lane.b32.xlu0 %v782, 64
    %v786 = vpop.permute.xlu0 %785
    %v788 = vmul.f32 %v783, %v786
    %v789 = vmul.f32 %v775, %v483
    %v790 = vadd.f32 %v788, %v789
    %v791 = vld [vmem:[%s1 + $0xc0] sm:$0xff]
    %v792 = vld [vmem:[%s1 + $0xd0] sm:$0xff]
    %v793 = vld [vmem:[%s1 + $0xe0] sm:$0xff]
    %v794 = vld [vmem:[%s1 + $0xf0] sm:$0xff]
    %v795 = vld [vmem:[%s1 + $0x100] sm:$0xff]
    %v796 = vld [vmem:[%s1 + $0x110] sm:$0xff]
    %v797 = vld [vmem:[%s1 + $0x120] sm:$0xff]
    %v798 = vld [vmem:[%s1 + $0x130] sm:$0xff]
    %800 = vrot.lane.b32.xlu0 %v790, 64
    %v801 = vpop.permute.xlu0 %800
    %v802 = vsel %vm190, %v801, 0
    %804 = vmatprep.subr.mxu0 0.0
    %805 = vmatpush1.msra.mxu0 0.0
    %806 = vmatprep.subr.mxu0 0.0
    %807 = vmatpush1.msra.mxu0 0.0
    %808 = vmatprep.subr.mxu0 0.0
    %809 = vmatpush1.msra.mxu0 0.0
    %810 = vmatprep.subr.mxu0 0.0
    %811 = vmatpush1.msra.mxu0 0.0
    %812 = vmatprep.subr.mxu0 0.0
    %813 = vmatpush1.msra.mxu0 0.0
    %814 = vmatprep.subr.mxu0 0.0
    %815 = vmatpush1.msra.mxu0 0.0
    %816 = vmatprep.subr.mxu0 0.0
    %817 = vmatpush1.msra.mxu0 0.0
    %818 = vmatprep.subr.mxu0 0.0
    %819 = vmatpush1.msra.mxu0 0.0
    %820 = vmatprep.subr.mxu0 0.0
    %821 = vmatpush1.msra.mxu0 %v798
    %822 = vmatprep.subr.mxu0 0.0
    %823 = vmatpush1.msra.mxu0 %v797
    %824 = vmatprep.subr.mxu0 0.0
    %825 = vmatpush1.msra.mxu0 %v796
    %826 = vmatprep.subr.mxu0 0.0
    %827 = vmatpush1.msra.mxu0 %v795
    %828 = vmatprep.subr.mxu0 0.0
    %829 = vmatpush1.msra.mxu0 %v794
    %830 = vmatprep.subr.mxu0 0.0
    %831 = vmatpush1.msra.mxu0 %v793
    %832 = vmatprep.subr.mxu0 0.0
    %833 = vmatpush1.msra.mxu0 %v792
    %834 = vmatprep.subr.mxu0 0.0
    %835 = vmatpush1.msra.mxu0 %v791
    %836 = vmatprep.subr.mxu0 0.0
    %837 = vmatpush2.msra.mxu0 0.0
    %838 = vmatprep.subr.mxu0 0.0
    %839 = vmatpush2.msra.mxu0 0.0
    %840 = vmatprep.subr.mxu0 0.0
    %841 = vmatpush2.msra.mxu0 0.0
    %842 = vmatprep.subr.mxu0 0.0
    %843 = vmatpush2.msra.mxu0 0.0
    %844 = vmatprep.subr.mxu0 0.0
    %845 = vmatpush2.msra.mxu0 0.0
    %846 = vmatprep.subr.mxu0 0.0
    %847 = vmatpush2.msra.mxu0 0.0
    %848 = vmatprep.subr.mxu0 0.0
    %849 = vmatpush2.msra.mxu0 0.0
    %850 = vmatprep.subr.mxu0 0.0
    %851 = vmatpush2.msra.mxu0 0.0
    %852 = vmatprep.subr.mxu0 0.0
    %853 = vmatpush2.msra.mxu0 0.0
    %854 = vmatprep.subr.mxu0 0.0
    %855 = vmatpush2.msra.mxu0 0.0
    %856 = vmatprep.subr.mxu0 0.0
    %857 = vmatpush2.msra.mxu0 0.0
    %858 = vmatprep.subr.mxu0 0.0
    %859 = vmatpush2.msra.mxu0 0.0
    %860 = vmatprep.subr.mxu0 0.0
    %861 = vmatpush2.msra.mxu0 0.0
    %862 = vmatprep.subr.mxu0 0.0
    %863 = vmatpush2.msra.mxu0 0.0
    %864 = vmatprep.subr.mxu0 0.0
    %865 = vmatpush2.msra.mxu0 0.0
    %866 = vmatprep.subr.mxu0 0.0
    %867 = vmatpush2.msra.mxu0 0.0
    %868 = vmatprep.mubr.f32.mxu0 0.0
    %869 = vmatmul.mubr.f32.gmra.mxu0 %v802
    %v870 = vpop.f32.mrf.mxu0
    %v871 = vadd.f32 %v35, %v870
    %v872 = vpop.f32.mrf.mxu0
    %873 = vdwg.mxu0
    %v874 = vsel %vm264, %v871, -inf
    %875 = vmax.index.xlane.f32.xlu0 %v874
    %v876 = vpop.xlane.xlu0 %875
    %vm877 = vcmp.eq.s32.totalorder %v45, %v876
    %v878 = vsel %vm877, 1, 0
    %v879 = vcvt.s32.f32 %v878
    %880 = vmax.xlane.f32.xlu0 %v874
    %v881 = vpop.xlane.xlu0 %880
    %v882 = vsub.f32 %v871, %v881
    %v883 = vmul.f32 %v882, 1.442695
    %v884 = vpow.pop %v883
    %v885 = vsel %vm264, %v884, 0.0
    %886 = vadd.xlane.f32.xlu0 %v885
    %v887 = vpop.xlane.xlu0 %886
    %v888 = vrcp.pop %v887
    %v889 = vmul.f32 %v884, %v888
    %891 = vrot.lane.b32.xlu0 %v889, 32
    %v892 = vpop.permute.xlu0 %891
    %vm894 = vcmask 392448
    %895 = vst.msk [vmem:[%s5] sm:$0xff] %vm894, %v892
    %897 = vrot.lane.b32.xlu0 %v879, 32
    %v898 = vpop.permute.xlu0 %897
    %900 = vst.msk [vmem:[%s4] sm:$0xff] %vm894, %v898
    %v901 = vld [vmem:[%s1 + $0x140] sm:$0xff]
    %v902 = vld [vmem:[%s1 + $0x150] sm:$0xff]
    %v903 = vsel %vm264, %v879, 0
    %905 = vmatprep.subr.mxu0 0.0
    %906 = vmatpush1.msra.mxu0 0.0
    %907 = vmatprep.subr.mxu0 0.0
    %908 = vmatpush1.msra.mxu0 0.0
    %909 = vmatprep.subr.mxu0 0.0
    %910 = vmatpush1.msra.mxu0 0.0
    %911 = vmatprep.subr.mxu0 0.0
    %912 = vmatpush1.msra.mxu0 0.0
    %913 = vmatprep.subr.mxu0 0.0
    %914 = vmatpush1.msra.mxu0 0.0
    %915 = vmatprep.subr.mxu0 0.0
    %916 = vmatpush1.msra.mxu0 0.0
    %917 = vmatprep.subr.mxu0 0.0
    %918 = vmatpush1.msra.mxu0 0.0
    %919 = vmatprep.subr.mxu0 0.0
    %920 = vmatpush1.msra.mxu0 0.0
    %921 = vmatprep.subr.mxu0 0.0
    %922 = vmatpush1.msra.mxu0 0.0
    %923 = vmatprep.subr.mxu0 0.0
    %924 = vmatpush1.msra.mxu0 0.0
    %925 = vmatprep.subr.mxu0 0.0
    %926 = vmatpush1.msra.mxu0 0.0
    %927 = vmatprep.subr.mxu0 0.0
    %928 = vmatpush1.msra.mxu0 0.0
    %929 = vmatprep.subr.mxu0 0.0
    %930 = vmatpush1.msra.mxu0 0.0
    %931 = vmatprep.subr.mxu0 0.0
    %932 = vmatpush1.msra.mxu0 0.0
    %933 = vmatprep.subr.mxu0 0.0
    %934 = vmatpush1.msra.mxu0 %v902
    %935 = vmatprep.subr.mxu0 0.0
    %936 = vmatpush1.msra.mxu0 %v901
    %937 = vmatprep.subr.mxu0 0.0
    %938 = vmatpush2.msra.mxu0 0.0
    %939 = vmatprep.subr.mxu0 0.0
    %940 = vmatpush2.msra.mxu0 0.0
    %941 = vmatprep.subr.mxu0 0.0
    %942 = vmatpush2.msra.mxu0 0.0
    %943 = vmatprep.subr.mxu0 0.0
    %944 = vmatpush2.msra.mxu0 0.0
    %945 = vmatprep.subr.mxu0 0.0
    %946 = vmatpush2.msra.mxu0 0.0
    %947 = vmatprep.subr.mxu0 0.0
    %948 = vmatpush2.msra.mxu0 0.0
    %949 = vmatprep.subr.mxu0 0.0
    %950 = vmatpush2.msra.mxu0 0.0
    %951 = vmatprep.subr.mxu0 0.0
    %952 = vmatpush2.msra.mxu0 0.0
    %953 = vmatprep.subr.mxu0 0.0
    %954 = vmatpush2.msra.mxu0 0.0
    %955 = vmatprep.subr.mxu0 0.0
    %956 = vmatpush2.msra.mxu0 0.0
    %957 = vmatprep.subr.mxu0 0.0
    %958 = vmatpush2.msra.mxu0 0.0
    %959 = vmatprep.subr.mxu0 0.0
    %960 = vmatpush2.msra.mxu0 0.0
    %961 = vmatprep.subr.mxu0 0.0
    %962 = vmatpush2.msra.mxu0 0.0
    %963 = vmatprep.subr.mxu0 0.0
    %964 = vmatpush2.msra.mxu0 0.0
    %965 = vmatprep.subr.mxu0 0.0
    %966 = vmatpush2.msra.mxu0 0.0
    %967 = vmatprep.subr.mxu0 0.0
    %968 = vmatpush2.msra.mxu0 0.0
    %969 = vmatprep.mubr.f32.mxu0 0.0
    %970 = vmatmul.mubr.f32.gmra.mxu0 %v903
    %v971 = vpop.f32.mrf.mxu0
    %v972 = vadd.f32 %v42, %v971
    %v973 = vpop.f32.mrf.mxu0
    %974 = vdwg.mxu0
    %975 = vrot.lane.b32.xlu0 %v790, 96
    %v976 = vpop.permute.xlu0 %975
    %v978 = vsel %vm47, %v972, %v976
    %v979 = vld [vmem:[%s1] sm:$0xff]
    %v980 = vld [vmem:[%s1 + $0x8] sm:$0xff]
    %v981 = vld [vmem:[%s1 + $0x10] sm:$0xff]
    %v982 = vld [vmem:[%s1 + $0x18] sm:$0xff]
    %v983 = vld [vmem:[%s1 + $0x20] sm:$0xff]
    %v984 = vld [vmem:[%s1 + $0x28] sm:$0xff]
    %v985 = vld [vmem:[%s1 + $0x30] sm:$0xff]
    %v986 = vld [vmem:[%s1 + $0x38] sm:$0xff]
    %v987 = vld [vmem:[%s1 + $0x40] sm:$0xff]
    %v988 = vld [vmem:[%s1 + $0x48] sm:$0xff]
    %v989 = vld [vmem:[%s1 + $0x50] sm:$0xff]
    %v990 = vld [vmem:[%s1 + $0x58] sm:$0xff]
    %v991 = vld [vmem:[%s1 + $0x60] sm:$0xff]
    %v992 = vld [vmem:[%s1 + $0x68] sm:$0xff]
    %v993 = vld [vmem:[%s1 + $0x70] sm:$0xff]
    %v994 = vld [vmem:[%s1 + $0x78] sm:$0xff]
    %v995 = vld [vmem:[%s1 + $0x80] sm:$0xff]
    %v996 = vld [vmem:[%s1 + $0x88] sm:$0xff]
    %v997 = vld [vmem:[%s1 + $0x90] sm:$0xff]
    %v998 = vld [vmem:[%s1 + $0x98] sm:$0xff]
    %v999 = vld [vmem:[%s1 + $0xa0] sm:$0xff]
    %v1000 = vld [vmem:[%s1 + $0xa8] sm:$0xff]
    %v1001 = vld [vmem:[%s1 + $0xb0] sm:$0xff]
    %v1002 = vld [vmem:[%s1 + $0xb8] sm:$0xff]
    %v1004 = vsel %vm78, %v978, 0
    %1006 = vmatprep.subr.mxu0 0.0
    %1007 = vmatpush1.msra.mxu0 0.0
    %1008 = vmatprep.subr.mxu0 0.0
    %1009 = vmatpush1.msra.mxu0 0.0
    %1010 = vmatprep.subr.mxu0 0.0
    %1011 = vmatpush1.msra.mxu0 0.0
    %1012 = vmatprep.subr.mxu0 0.0
    %1013 = vmatpush1.msra.mxu0 0.0
    %1014 = vmatprep.subr.mxu0 %v1002
    %1015 = vmatpush1.msra.mxu0 %v1001
    %1016 = vmatprep.subr.mxu0 %v1000
    %1017 = vmatpush1.msra.mxu0 %v999
    %1018 = vmatprep.subr.mxu0 %v998
    %1019 = vmatpush1.msra.mxu0 %v997
    %1020 = vmatprep.subr.mxu0 %v996
    %1021 = vmatpush1.msra.mxu0 %v995
    %1022 = vmatprep.subr.mxu0 %v994
    %1023 = vmatpush1.msra.mxu0 %v993
    %1024 = vmatprep.subr.mxu0 %v992
    %1025 = vmatpush1.msra.mxu0 %v991
    %1026 = vmatprep.subr.mxu0 %v990
    %1027 = vmatpush1.msra.mxu0 %v989
    %1028 = vmatprep.subr.mxu0 %v988
    %1029 = vmatpush1.msra.mxu0 %v987
    %1030 = vmatprep.subr.mxu0 %v986
    %1031 = vmatpush1.msra.mxu0 %v985
    %1032 = vmatprep.subr.mxu0 %v984
    %1033 = vmatpush1.msra.mxu0 %v983
    %1034 = vmatprep.subr.mxu0 %v982
    %1035 = vmatpush1.msra.mxu0 %v981
    %1036 = vmatprep.subr.mxu0 %v980
    %1037 = vmatpush1.msra.mxu0 %v979
    %1038 = vmatprep.subr.mxu0 0.0
    %1039 = vmatpush2.msra.mxu0 0.0
    %1040 = vmatprep.subr.mxu0 0.0
    %1041 = vmatpush2.msra.mxu0 0.0
    %1042 = vmatprep.subr.mxu0 0.0
    %1043 = vmatpush2.msra.mxu0 0.0
    %1044 = vmatprep.subr.mxu0 0.0
    %1045 = vmatpush2.msra.mxu0 0.0
    %1046 = vmatprep.subr.mxu0 0.0
    %1047 = vmatpush2.msra.mxu0 0.0
    %1048 = vmatprep.subr.mxu0 0.0
    %1049 = vmatpush2.msra.mxu0 0.0
    %1050 = vmatprep.subr.mxu0 0.0
    %1051 = vmatpush2.msra.mxu0 0.0
    %1052 = vmatprep.subr.mxu0 0.0
    %1053 = vmatpush2.msra.mxu0 0.0
    %1054 = vmatprep.subr.mxu0 0.0
    %1055 = vmatpush2.msra.mxu0 0.0
    %1056 = vmatprep.subr.mxu0 0.0
    %1057 = vmatpush2.msra.mxu0 0.0
    %1058 = vmatprep.subr.mxu0 0.0
    %1059 = vmatpush2.msra.mxu0 0.0
    %1060 = vmatprep.subr.mxu0 0.0
    %1061 = vmatpush2.msra.mxu0 0.0
    %1062 = vmatprep.subr.mxu0 0.0
    %1063 = vmatpush2.msra.mxu0 0.0
    %1064 = vmatprep.subr.mxu0 0.0
    %1065 = vmatpush2.msra.mxu0 0.0
    %1066 = vmatprep.subr.mxu0 0.0
    %1067 = vmatpush2.msra.mxu0 0.0
    %1068 = vmatprep.subr.mxu0 0.0
    %1069 = vmatpush2.msra.mxu0 0.0
    %1070 = vmatprep.mubr.f32.mxu0 0.0
    %1071 = vmatmul.mubr.f32.gmra.mxu0 %v1004
    %v1072 = vpop.f32.mrf.mxu0
    %v1073 = vadd.f32 %v23, %v1072
    %v1074 = vpop.f32.mrf.mxu0
    %v1075 = vadd.f32 %v27, %v1074
    %1076 = vdwg.mxu0
    %v1077 = vxor.u32 %v1073, 2147483648
    %v1078 = vmul.f32 %v1077, 1.442695
    %v1079 = vpow.pop %v1078
    %v1080 = vadd.f32 %v1079, 1.0
    %v1081 = vrcp.pop %v1080
    %v1082 = vmul.f32 1.0, %v1081
    %1084 = vrot.lane.b32.xlu0 %v1075, 64
    %v1085 = vpop.permute.xlu0 %1084
    %v1087 = vmul.f32 %v1082, %v1085
    %v1088 = vadd.f32 %v1075, %v1087
    %v1089 = vtanh.pop %v1088
    %v1090 = vsub.f32 1.0, %v1082
    %1092 = vrot.lane.b32.xlu0 %v1089, 64
    %v1093 = vpop.permute.xlu0 %1092
    %v1095 = vmul.f32 %v1090, %v1093
    %v1096 = vmul.f32 %v1082, %v790
    %v1097 = vadd.f32 %v1095, %v1096
    %v1098 = vld [vmem:[%s1 + $0xc0] sm:$0xff]
    %v1099 = vld [vmem:[%s1 + $0xd0] sm:$0xff]
    %v1100 = vld [vmem:[%s1 + $0xe0] sm:$0xff]
    %v1101 = vld [vmem:[%s1 + $0xf0] sm:$0xff]
    %v1102 = vld [vmem:[%s1 + $0x100] sm:$0xff]
    %v1103 = vld [vmem:[%s1 + $0x110] sm:$0xff]
    %v1104 = vld [vmem:[%s1 + $0x120] sm:$0xff]
    %v1105 = vld [vmem:[%s1 + $0x130] sm:$0xff]
    %1107 = vrot.lane.b32.xlu0 %v1097, 64
    %v1108 = vpop.permute.xlu0 %1107
    %v1109 = vsel %vm190, %v1108, 0
    %1111 = vmatprep.subr.mxu0 0.0
    %1112 = vmatpush1.msra.mxu0 0.0
    %1113 = vmatprep.subr.mxu0 0.0
    %1114 = vmatpush1.msra.mxu0 0.0
    %1115 = vmatprep.subr.mxu0 0.0
    %1116 = vmatpush1.msra.mxu0 0.0
    %1117 = vmatprep.subr.mxu0 0.0
    %1118 = vmatpush1.msra.mxu0 0.0
    %1119 = vmatprep.subr.mxu0 0.0
    %1120 = vmatpush1.msra.mxu0 0.0
    %1121 = vmatprep.subr.mxu0 0.0
    %1122 = vmatpush1.msra.mxu0 0.0
    %1123 = vmatprep.subr.mxu0 0.0
    %1124 = vmatpush1.msra.mxu0 0.0
    %1125 = vmatprep.subr.mxu0 0.0
    %1126 = vmatpush1.msra.mxu0 0.0
    %1127 = vmatprep.subr.mxu0 0.0
    %1128 = vmatpush1.msra.mxu0 %v1105
    %1129 = vmatprep.subr.mxu0 0.0
    %1130 = vmatpush1.msra.mxu0 %v1104
    %1131 = vmatprep.subr.mxu0 0.0
    %1132 = vmatpush1.msra.mxu0 %v1103
    %1133 = vmatprep.subr.mxu0 0.0
    %1134 = vmatpush1.msra.mxu0 %v1102
    %1135 = vmatprep.subr.mxu0 0.0
    %1136 = vmatpush1.msra.mxu0 %v1101
    %1137 = vmatprep.subr.mxu0 0.0
    %1138 = vmatpush1.msra.mxu0 %v1100
    %1139 = vmatprep.subr.mxu0 0.0
    %1140 = vmatpush1.msra.mxu0 %v1099
    %1141 = vmatprep.subr.mxu0 0.0
    %1142 = vmatpush1.msra.mxu0 %v1098
    %1143 = vmatprep.subr.mxu0 0.0
    %1144 = vmatpush2.msra.mxu0 0.0
    %1145 = vmatprep.subr.mxu0 0.0
    %1146 = vmatpush2.msra.mxu0 0.0
    %1147 = vmatprep.subr.mxu0 0.0
    %1148 = vmatpush2.msra.mxu0 0.0
    %1149 = vmatprep.subr.mxu0 0.0
    %1150 = vmatpush2.msra.mxu0 0.0
    %1151 = vmatprep.subr.mxu0 0.0
    %1152 = vmatpush2.msra.mxu0 0.0
    %1153 = vmatprep.subr.mxu0 0.0
    %1154 = vmatpush2.msra.mxu0 0.0
    %1155 = vmatprep.subr.mxu0 0.0
    %1156 = vmatpush2.msra.mxu0 0.0
    %1157 = vmatprep.subr.mxu0 0.0
    %1158 = vmatpush2.msra.mxu0 0.0
    %1159 = vmatprep.subr.mxu0 0.0
    %1160 = vmatpush2.msra.mxu0 0.0
    %1161 = vmatprep.subr.mxu0 0.0
    %1162 = vmatpush2.msra.mxu0 0.0
    %1163 = vmatprep.subr.mxu0 0.0
    %1164 = vmatpush2.msra.mxu0 0.0
    %1165 = vmatprep.subr.mxu0 0.0
    %1166 = vmatpush2.msra.mxu0 0.0
    %1167 = vmatprep.subr.mxu0 0.0
    %1168 = vmatpush2.msra.mxu0 0.0
    %1169 = vmatprep.subr.mxu0 0.0
    %1170 = vmatpush2.msra.mxu0 0.0
    %1171 = vmatprep.subr.mxu0 0.0
    %1172 = vmatpush2.msra.mxu0 0.0
    %1173 = vmatprep.subr.mxu0 0.0
    %1174 = vmatpush2.msra.mxu0 0.0
    %1175 = vmatprep.mubr.f32.mxu0 0.0
    %1176 = vmatmul.mubr.f32.gmra.mxu0 %v1109
    %v1177 = vpop.f32.mrf.mxu0
    %v1178 = vadd.f32 %v35, %v1177
    %v1179 = vpop.f32.mrf.mxu0
    %1180 = vdwg.mxu0
    %v1181 = vsel %vm264, %v1178, -inf
    %1182 = vmax.index.xlane.f32.xlu0 %v1181
    %v1183 = vpop.xlane.xlu0 %1182
    %vm1184 = vcmp.eq.s32.totalorder %v45, %v1183
    %v1185 = vsel %vm1184, 1, 0
    %v1186 = vcvt.s32.f32 %v1185
    %1187 = vmax.xlane.f32.xlu0 %v1181
    %v1188 = vpop.xlane.xlu0 %1187
    %v1189 = vsub.f32 %v1178, %v1188
    %v1190 = vmul.f32 %v1189, 1.442695
    %v1191 = vpow.pop %v1190
    %v1192 = vsel %vm264, %v1191, 0.0
    %1193 = vadd.xlane.f32.xlu0 %v1192
    %v1194 = vpop.xlane.xlu0 %1193
    %v1195 = vrcp.pop %v1194
    %v1196 = vmul.f32 %v1191, %v1195
    %1198 = vrot.lane.b32.xlu0 %v1196, 48
    %v1199 = vpop.permute.xlu0 %1198
    %vm1201 = vcmask 523648
    %1202 = vst.msk [vmem:[%s5] sm:$0xff] %vm1201, %v1199
    %1204 = vrot.lane.b32.xlu0 %v1186, 48
    %v1205 = vpop.permute.xlu0 %1204
    %1207 = vst.msk [vmem:[%s4] sm:$0xff] %vm1201, %v1205
    %v1208 = vld [vmem:[%s1 + $0x140] sm:$0xff]
    %v1209 = vld [vmem:[%s1 + $0x150] sm:$0xff]
    %v1210 = vsel %vm264, %v1186, 0
    %1212 = vmatprep.subr.mxu0 0.0
    %1213 = vmatpush1.msra.mxu0 0.0
    %1214 = vmatprep.subr.mxu0 0.0
    %1215 = vmatpush1.msra.mxu0 0.0
    %1216 = vmatprep.subr.mxu0 0.0
    %1217 = vmatpush1.msra.mxu0 0.0
    %1218 = vmatprep.subr.mxu0 0.0
    %1219 = vmatpush1.msra.mxu0 0.0
    %1220 = vmatprep.subr.mxu0 0.0
    %1221 = vmatpush1.msra.mxu0 0.0
    %1222 = vmatprep.subr.mxu0 0.0
    %1223 = vmatpush1.msra.mxu0 0.0
    %1224 = vmatprep.subr.mxu0 0.0
    %1225 = vmatpush1.msra.mxu0 0.0
    %1226 = vmatprep.subr.mxu0 0.0
    %1227 = vmatpush1.msra.mxu0 0.0
    %1228 = vmatprep.subr.mxu0 0.0
    %1229 = vmatpush1.msra.mxu0 0.0
    %1230 = vmatprep.subr.mxu0 0.0
    %1231 = vmatpush1.msra.mxu0 0.0
    %1232 = vmatprep.subr.mxu0 0.0
    %1233 = vmatpush1.msra.mxu0 0.0
    %1234 = vmatprep.subr.mxu0 0.0
    %1235 = vmatpush1.msra.mxu0 0.0
    %1236 = vmatprep.subr.mxu0 0.0
    %1237 = vmatpush1.msra.mxu0 0.0
    %1238 = vmatprep.subr.mxu0 0.0
    %1239 = vmatpush1.msra.mxu0 0.0
    %1240 = vmatprep.subr.mxu0 0.0
    %1241 = vmatpush1.msra.mxu0 %v1209
    %1242 = vmatprep.subr.mxu0 0.0
    %1243 = vmatpush1.msra.mxu0 %v1208
    %1244 = vmatprep.subr.mxu0 0.0
    %1245 = vmatpush2.msra.mxu0 0.0
    %1246 = vmatprep.subr.mxu0 0.0
    %1247 = vmatpush2.msra.mxu0 0.0
    %1248 = vmatprep.subr.mxu0 0.0
    %1249 = vmatpush2.msra.mxu0 0.0
    %1250 = vmatprep.subr.mxu0 0.0
    %1251 = vmatpush2.msra.mxu0 0.0
    %1252 = vmatprep.subr.mxu0 0.0
    %1253 = vmatpush2.msra.mxu0 0.0
    %1254 = vmatprep.subr.mxu0 0.0
    %1255 = vmatpush2.msra.mxu0 0.0
    %1256 = vmatprep.subr.mxu0 0.0
    %1257 = vmatpush2.msra.mxu0 0.0
    %1258 = vmatprep.subr.mxu0 0.0
    %1259 = vmatpush2.msra.mxu0 0.0
    %1260 = vmatprep.subr.mxu0 0.0
    %1261 = vmatpush2.msra.mxu0 0.0
    %1262 = vmatprep.subr.mxu0 0.0
    %1263 = vmatpush2.msra.mxu0 0.0
    %1264 = vmatprep.subr.mxu0 0.0
    %1265 = vmatpush2.msra.mxu0 0.0
    %1266 = vmatprep.subr.mxu0 0.0
    %1267 = vmatpush2.msra.mxu0 0.0
    %1268 = vmatprep.subr.mxu0 0.0
    %1269 = vmatpush2.msra.mxu0 0.0
    %1270 = vmatprep.subr.mxu0 0.0
    %1271 = vmatpush2.msra.mxu0 0.0
    %1272 = vmatprep.subr.mxu0 0.0
    %1273 = vmatpush2.msra.mxu0 0.0
    %1274 = vmatprep.subr.mxu0 0.0
    %1275 = vmatpush2.msra.mxu0 0.0
    %1276 = vmatprep.mubr.f32.mxu0 0.0
    %1277 = vmatmul.mubr.f32.gmra.mxu0 %v1210
    %v1278 = vpop.f32.mrf.mxu0
    %v1279 = vadd.f32 %v42, %v1278
    %v1280 = vpop.f32.mrf.mxu0
    %1281 = vdwg.mxu0
    %1282 = vrot.lane.b32.xlu0 %v1097, 96
    %v1283 = vpop.permute.xlu0 %1282
    %v1285 = vsel %vm47, %v1279, %v1283
    %v1286 = vld [vmem:[%s1] sm:$0xff]
    %v1287 = vld [vmem:[%s1 + $0x8] sm:$0xff]
    %v1288 = vld [vmem:[%s1 + $0x10] sm:$0xff]
    %v1289 = vld [vmem:[%s1 + $0x18] sm:$0xff]
    %v1290 = vld [vmem:[%s1 + $0x20] sm:$0xff]
    %v1291 = vld [vmem:[%s1 + $0x28] sm:$0xff]
    %v1292 = vld [vmem:[%s1 + $0x30] sm:$0xff]
    %v1293 = vld [vmem:[%s1 + $0x38] sm:$0xff]
    %v1294 = vld [vmem:[%s1 + $0x40] sm:$0xff]
    %v1295 = vld [vmem:[%s1 + $0x48] sm:$0xff]
    %v1296 = vld [vmem:[%s1 + $0x50] sm:$0xff]
    %v1297 = vld [vmem:[%s1 + $0x58] sm:$0xff]
    %v1298 = vld [vmem:[%s1 + $0x60] sm:$0xff]
    %v1299 = vld [vmem:[%s1 + $0x68] sm:$0xff]
    %v1300 = vld [vmem:[%s1 + $0x70] sm:$0xff]
    %v1301 = vld [vmem:[%s1 + $0x78] sm:$0xff]
    %v1302 = vld [vmem:[%s1 + $0x80] sm:$0xff]
    %v1303 = vld [vmem:[%s1 + $0x88] sm:$0xff]
    %v1304 = vld [vmem:[%s1 + $0x90] sm:$0xff]
    %v1305 = vld [vmem:[%s1 + $0x98] sm:$0xff]
    %v1306 = vld [vmem:[%s1 + $0xa0] sm:$0xff]
    %v1307 = vld [vmem:[%s1 + $0xa8] sm:$0xff]
    %v1308 = vld [vmem:[%s1 + $0xb0] sm:$0xff]
    %v1309 = vld [vmem:[%s1 + $0xb8] sm:$0xff]
    %v1311 = vsel %vm78, %v1285, 0
    %1313 = vmatprep.subr.mxu0 0.0
    %1314 = vmatpush1.msra.mxu0 0.0
    %1315 = vmatprep.subr.mxu0 0.0
    %1316 = vmatpush1.msra.mxu0 0.0
    %1317 = vmatprep.subr.mxu0 0.0
    %1318 = vmatpush1.msra.mxu0 0.0
    %1319 = vmatprep.subr.mxu0 0.0
    %1320 = vmatpush1.msra.mxu0 0.0
    %1321 = vmatprep.subr.mxu0 %v1309
    %1322 = vmatpush1.msra.mxu0 %v1308
    %1323 = vmatprep.subr.mxu0 %v1307
    %1324 = vmatpush1.msra.mxu0 %v1306
    %1325 = vmatprep.subr.mxu0 %v1305
    %1326 = vmatpush1.msra.mxu0 %v1304
    %1327 = vmatprep.subr.mxu0 %v1303
    %1328 = vmatpush1.msra.mxu0 %v1302
    %1329 = vmatprep.subr.mxu0 %v1301
    %1330 = vmatpush1.msra.mxu0 %v1300
    %1331 = vmatprep.subr.mxu0 %v1299
    %1332 = vmatpush1.msra.mxu0 %v1298
    %1333 = vmatprep.subr.mxu0 %v1297
    %1334 = vmatpush1.msra.mxu0 %v1296
    %1335 = vmatprep.subr.mxu0 %v1295
    %1336 = vmatpush1.msra.mxu0 %v1294
    %1337 = vmatprep.subr.mxu0 %v1293
    %1338 = vmatpush1.msra.mxu0 %v1292
    %1339 = vmatprep.subr.mxu0 %v1291
    %1340 = vmatpush1.msra.mxu0 %v1290
    %1341 = vmatprep.subr.mxu0 %v1289
    %1342 = vmatpush1.msra.mxu0 %v1288
    %1343 = vmatprep.subr.mxu0 %v1287
    %1344 = vmatpush1.msra.mxu0 %v1286
    %1345 = vmatprep.subr.mxu0 0.0
    %1346 = vmatpush2.msra.mxu0 0.0
    %1347 = vmatprep.subr.mxu0 0.0
    %1348 = vmatpush2.msra.mxu0 0.0
    %1349 = vmatprep.subr.mxu0 0.0
    %1350 = vmatpush2.msra.mxu0 0.0
    %1351 = vmatprep.subr.mxu0 0.0
    %1352 = vmatpush2.msra.mxu0 0.0
    %1353 = vmatprep.subr.mxu0 0.0
    %1354 = vmatpush2.msra.mxu0 0.0
    %1355 = vmatprep.subr.mxu0 0.0
    %1356 = vmatpush2.msra.mxu0 0.0
    %1357 = vmatprep.subr.mxu0 0.0
    %1358 = vmatpush2.msra.mxu0 0.0
    %1359 = vmatprep.subr.mxu0 0.0
    %1360 = vmatpush2.msra.mxu0 0.0
    %1361 = vmatprep.subr.mxu0 0.0
    %1362 = vmatpush2.msra.mxu0 0.0
    %1363 = vmatprep.subr.mxu0 0.0
    %1364 = vmatpush2.msra.mxu0 0.0
    %1365 = vmatprep.subr.mxu0 0.0
    %1366 = vmatpush2.msra.mxu0 0.0
    %1367 = vmatprep.subr.mxu0 0.0
    %1368 = vmatpush2.msra.mxu0 0.0
    %1369 = vmatprep.subr.mxu0 0.0
    %1370 = vmatpush2.msra.mxu0 0.0
    %1371 = vmatprep.subr.mxu0 0.0
    %1372 = vmatpush2.msra.mxu0 0.0
    %1373 = vmatprep.subr.mxu0 0.0
    %1374 = vmatpush2.msra.mxu0 0.0
    %1375 = vmatprep.subr.mxu0 0.0
    %1376 = vmatpush2.msra.mxu0 0.0
    %1377 = vmatprep.mubr.f32.mxu0 0.0
    %1378 = vmatmul.mubr.f32.gmra.mxu0 %v1311
    %v1379 = vpop.f32.mrf.mxu0
    %v1380 = vadd.f32 %v23, %v1379
    %v1381 = vpop.f32.mrf.mxu0
    %v1382 = vadd.f32 %v27, %v1381
    %1383 = vdwg.mxu0
    %v1384 = vxor.u32 %v1380, 2147483648
    %v1385 = vmul.f32 %v1384, 1.442695
    %v1386 = vpow.pop %v1385
    %v1387 = vadd.f32 %v1386, 1.0
    %v1388 = vrcp.pop %v1387
    %v1389 = vmul.f32 1.0, %v1388
    %1391 = vrot.lane.b32.xlu0 %v1382, 64
    %v1392 = vpop.permute.xlu0 %1391
    %v1394 = vmul.f32 %v1389, %v1392
    %v1395 = vadd.f32 %v1382, %v1394
    %v1396 = vtanh.pop %v1395
    %v1397 = vsub.f32 1.0, %v1389
    %1399 = vrot.lane.b32.xlu0 %v1396, 64
    %v1400 = vpop.permute.xlu0 %1399
    %v1402 = vmul.f32 %v1397, %v1400
    %v1403 = vmul.f32 %v1389, %v1097
    %v1404 = vadd.f32 %v1402, %v1403
    %v1405 = vld [vmem:[%s1 + $0xc0] sm:$0xff]
    %v1406 = vld [vmem:[%s1 + $0xd0] sm:$0xff]
    %v1407 = vld [vmem:[%s1 + $0xe0] sm:$0xff]
    %v1408 = vld [vmem:[%s1 + $0xf0] sm:$0xff]
    %v1409 = vld [vmem:[%s1 + $0x100] sm:$0xff]
    %v1410 = vld [vmem:[%s1 + $0x110] sm:$0xff]
    %v1411 = vld [vmem:[%s1 + $0x120] sm:$0xff]
    %v1412 = vld [vmem:[%s1 + $0x130] sm:$0xff]
    %1414 = vrot.lane.b32.xlu0 %v1404, 64
    %v1415 = vpop.permute.xlu0 %1414
    %v1416 = vsel %vm190, %v1415, 0
    %1418 = vmatprep.subr.mxu0 0.0
    %1419 = vmatpush1.msra.mxu0 0.0
    %1420 = vmatprep.subr.mxu0 0.0
    %1421 = vmatpush1.msra.mxu0 0.0
    %1422 = vmatprep.subr.mxu0 0.0
    %1423 = vmatpush1.msra.mxu0 0.0
    %1424 = vmatprep.subr.mxu0 0.0
    %1425 = vmatpush1.msra.mxu0 0.0
    %1426 = vmatprep.subr.mxu0 0.0
    %1427 = vmatpush1.msra.mxu0 0.0
    %1428 = vmatprep.subr.mxu0 0.0
    %1429 = vmatpush1.msra.mxu0 0.0
    %1430 = vmatprep.subr.mxu0 0.0
    %1431 = vmatpush1.msra.mxu0 0.0
    %1432 = vmatprep.subr.mxu0 0.0
    %1433 = vmatpush1.msra.mxu0 0.0
    %1434 = vmatprep.subr.mxu0 0.0
    %1435 = vmatpush1.msra.mxu0 %v1412
    %1436 = vmatprep.subr.mxu0 0.0
    %1437 = vmatpush1.msra.mxu0 %v1411
    %1438 = vmatprep.subr.mxu0 0.0
    %1439 = vmatpush1.msra.mxu0 %v1410
    %1440 = vmatprep.subr.mxu0 0.0
    %1441 = vmatpush1.msra.mxu0 %v1409
    %1442 = vmatprep.subr.mxu0 0.0
    %1443 = vmatpush1.msra.mxu0 %v1408
    %1444 = vmatprep.subr.mxu0 0.0
    %1445 = vmatpush1.msra.mxu0 %v1407
    %1446 = vmatprep.subr.mxu0 0.0
    %1447 = vmatpush1.msra.mxu0 %v1406
    %1448 = vmatprep.subr.mxu0 0.0
    %1449 = vmatpush1.msra.mxu0 %v1405
    %1450 = vmatprep.subr.mxu0 0.0
    %1451 = vmatpush2.msra.mxu0 0.0
    %1452 = vmatprep.subr.mxu0 0.0
    %1453 = vmatpush2.msra.mxu0 0.0
    %1454 = vmatprep.subr.mxu0 0.0
    %1455 = vmatpush2.msra.mxu0 0.0
    %1456 = vmatprep.subr.mxu0 0.0
    %1457 = vmatpush2.msra.mxu0 0.0
    %1458 = vmatprep.subr.mxu0 0.0
    %1459 = vmatpush2.msra.mxu0 0.0
    %1460 = vmatprep.subr.mxu0 0.0
    %1461 = vmatpush2.msra.mxu0 0.0
    %1462 = vmatprep.subr.mxu0 0.0
    %1463 = vmatpush2.msra.mxu0 0.0
    %1464 = vmatprep.subr.mxu0 0.0
    %1465 = vmatpush2.msra.mxu0 0.0
    %1466 = vmatprep.subr.mxu0 0.0
    %1467 = vmatpush2.msra.mxu0 0.0
    %1468 = vmatprep.subr.mxu0 0.0
    %1469 = vmatpush2.msra.mxu0 0.0
    %1470 = vmatprep.subr.mxu0 0.0
    %1471 = vmatpush2.msra.mxu0 0.0
    %1472 = vmatprep.subr.mxu0 0.0
    %1473 = vmatpush2.msra.mxu0 0.0
    %1474 = vmatprep.subr.mxu0 0.0
    %1475 = vmatpush2.msra.mxu0 0.0
    %1476 = vmatprep.subr.mxu0 0.0
    %1477 = vmatpush2.msra.mxu0 0.0
    %1478 = vmatprep.subr.mxu0 0.0
    %1479 = vmatpush2.msra.mxu0 0.0
    %1480 = vmatprep.subr.mxu0 0.0
    %1481 = vmatpush2.msra.mxu0 0.0
    %1482 = vmatprep.mubr.f32.mxu0 0.0
    %1483 = vmatmul.mubr.f32.gmra.mxu0 %v1416
    %v1484 = vpop.f32.mrf.mxu0
    %v1485 = vadd.f32 %v35, %v1484
    %v1486 = vpop.f32.mrf.mxu0
    %1487 = vdwg.mxu0
    %v1488 = vsel %vm264, %v1485, -inf
    %1489 = vmax.index.xlane.f32.xlu0 %v1488
    %v1490 = vpop.xlane.xlu0 %1489
    %vm1491 = vcmp.eq.s32.totalorder %v45, %v1490
    %v1492 = vsel %vm1491, 1, 0
    %v1493 = vcvt.s32.f32 %v1492
    %1494 = vmax.xlane.f32.xlu0 %v1488
    %v1495 = vpop.xlane.xlu0 %1494
    %v1496 = vsub.f32 %v1485, %v1495
    %v1497 = vmul.f32 %v1496, 1.442695
    %v1498 = vpow.pop %v1497
    %v1499 = vsel %vm264, %v1498, 0.0
    %1500 = vadd.xlane.f32.xlu0 %v1499
    %v1501 = vpop.xlane.xlu0 %1500
    %v1502 = vrcp.pop %v1501
    %v1503 = vmul.f32 %v1498, %v1502
    %1505 = vrot.lane.b32.xlu0 %v1503, 64
    %v1506 = vpop.permute.xlu0 %1505
    %vm1508 = vcmask 654848
    %1509 = vst.msk [vmem:[%s5] sm:$0xff] %vm1508, %v1506
    %1511 = vrot.lane.b32.xlu0 %v1493, 64
    %v1512 = vpop.permute.xlu0 %1511
    %1514 = vst.msk [vmem:[%s4] sm:$0xff] %vm1508, %v1512
    %v1515 = vld [vmem:[%s1 + $0x140] sm:$0xff]
    %v1516 = vld [vmem:[%s1 + $0x150] sm:$0xff]
    %v1517 = vsel %vm264, %v1493, 0
    %1519 = vmatprep.subr.mxu0 0.0
    %1520 = vmatpush1.msra.mxu0 0.0
    %1521 = vmatprep.subr.mxu0 0.0
    %1522 = vmatpush1.msra.mxu0 0.0
    %1523 = vmatprep.subr.mxu0 0.0
    %1524 = vmatpush1.msra.mxu0 0.0
    %1525 = vmatprep.subr.mxu0 0.0
    %1526 = vmatpush1.msra.mxu0 0.0
    %1527 = vmatprep.subr.mxu0 0.0
    %1528 = vmatpush1.msra.mxu0 0.0
    %1529 = vmatprep.subr.mxu0 0.0
    %1530 = vmatpush1.msra.mxu0 0.0
    %1531 = vmatprep.subr.mxu0 0.0
    %1532 = vmatpush1.msra.mxu0 0.0
    %1533 = vmatprep.subr.mxu0 0.0
    %1534 = vmatpush1.msra.mxu0 0.0
    %1535 = vmatprep.subr.mxu0 0.0
    %1536 = vmatpush1.msra.mxu0 0.0
    %1537 = vmatprep.subr.mxu0 0.0
    %1538 = vmatpush1.msra.mxu0 0.0
    %1539 = vmatprep.subr.mxu0 0.0
    %1540 = vmatpush1.msra.mxu0 0.0
    %1541 = vmatprep.subr.mxu0 0.0
    %1542 = vmatpush1.msra.mxu0 0.0
    %1543 = vmatprep.subr.mxu0 0.0
    %1544 = vmatpush1.msra.mxu0 0.0
    %1545 = vmatprep.subr.mxu0 0.0
    %1546 = vmatpush1.msra.mxu0 0.0
    %1547 = vmatprep.subr.mxu0 0.0
    %1548 = vmatpush1.msra.mxu0 %v1516
    %1549 = vmatprep.subr.mxu0 0.0
    %1550 = vmatpush1.msra.mxu0 %v1515
    %1551 = vmatprep.subr.mxu0 0.0
    %1552 = vmatpush2.msra.mxu0 0.0
    %1553 = vmatprep.subr.mxu0 0.0
    %1554 = vmatpush2.msra.mxu0 0.0
    %1555 = vmatprep.subr.mxu0 0.0
    %1556 = vmatpush2.msra.mxu0 0.0
    %1557 = vmatprep.subr.mxu0 0.0
    %1558 = vmatpush2.msra.mxu0 0.0
    %1559 = vmatprep.subr.mxu0 0.0
    %1560 = vmatpush2.msra.mxu0 0.0
    %1561 = vmatprep.subr.mxu0 0.0
    %1562 = vmatpush2.msra.mxu0 0.0
    %1563 = vmatprep.subr.mxu0 0.0
    %1564 = vmatpush2.msra.mxu0 0.0
    %1565 = vmatprep.subr.mxu0 0.0
    %1566 = vmatpush2.msra.mxu0 0.0
    %1567 = vmatprep.subr.mxu0 0.0
    %1568 = vmatpush2.msra.mxu0 0.0
    %1569 = vmatprep.subr.mxu0 0.0
    %1570 = vmatpush2.msra.mxu0 0.0
    %1571 = vmatprep.subr.mxu0 0.0
    %1572 = vmatpush2.msra.mxu0 0.0
    %1573 = vmatprep.subr.mxu0 0.0
    %1574 = vmatpush2.msra.mxu0 0.0
    %1575 = vmatprep.subr.mxu0 0.0
    %1576 = vmatpush2.msra.mxu0 0.0
    %1577 = vmatprep.subr.mxu0 0.0
    %1578 = vmatpush2.msra.mxu0 0.0
    %1579 = vmatprep.subr.mxu0 0.0
    %1580 = vmatpush2.msra.mxu0 0.0
    %1581 = vmatprep.subr.mxu0 0.0
    %1582 = vmatpush2.msra.mxu0 0.0
    %1583 = vmatprep.mubr.f32.mxu0 0.0
    %1584 = vmatmul.mubr.f32.gmra.mxu0 %v1517
    %v1585 = vpop.f32.mrf.mxu0
    %v1586 = vadd.f32 %v42, %v1585
    %v1587 = vpop.f32.mrf.mxu0
    %1588 = vdwg.mxu0
    %1589 = vrot.lane.b32.xlu0 %v1404, 96
    %v1590 = vpop.permute.xlu0 %1589
    %v1592 = vsel %vm47, %v1586, %v1590
    %v1593 = vld [vmem:[%s1] sm:$0xff]
    %v1594 = vld [vmem:[%s1 + $0x8] sm:$0xff]
    %v1595 = vld [vmem:[%s1 + $0x10] sm:$0xff]
    %v1596 = vld [vmem:[%s1 + $0x18] sm:$0xff]
    %v1597 = vld [vmem:[%s1 + $0x20] sm:$0xff]
    %v1598 = vld [vmem:[%s1 + $0x28] sm:$0xff]
    %v1599 = vld [vmem:[%s1 + $0x30] sm:$0xff]
    %v1600 = vld [vmem:[%s1 + $0x38] sm:$0xff]
    %v1601 = vld [vmem:[%s1 + $0x40] sm:$0xff]
    %v1602 = vld [vmem:[%s1 + $0x48] sm:$0xff]
    %v1603 = vld [vmem:[%s1 + $0x50] sm:$0xff]
    %v1604 = vld [vmem:[%s1 + $0x58] sm:$0xff]
    %v1605 = vld [vmem:[%s1 + $0x60] sm:$0xff]
    %v1606 = vld [vmem:[%s1 + $0x68] sm:$0xff]
    %v1607 = vld [vmem:[%s1 + $0x70] sm:$0xff]
    %v1608 = vld [vmem:[%s1 + $0x78] sm:$0xff]
    %v1609 = vld [vmem:[%s1 + $0x80] sm:$0xff]
    %v1610 = vld [vmem:[%s1 + $0x88] sm:$0xff]
    %v1611 = vld [vmem:[%s1 + $0x90] sm:$0xff]
    %v1612 = vld [vmem:[%s1 + $0x98] sm:$0xff]
    %v1613 = vld [vmem:[%s1 + $0xa0] sm:$0xff]
    %v1614 = vld [vmem:[%s1 + $0xa8] sm:$0xff]
    %v1615 = vld [vmem:[%s1 + $0xb0] sm:$0xff]
    %v1616 = vld [vmem:[%s1 + $0xb8] sm:$0xff]
    %v1618 = vsel %vm78, %v1592, 0
    %1620 = vmatprep.subr.mxu0 0.0
    %1621 = vmatpush1.msra.mxu0 0.0
    %1622 = vmatprep.subr.mxu0 0.0
    %1623 = vmatpush1.msra.mxu0 0.0
    %1624 = vmatprep.subr.mxu0 0.0
    %1625 = vmatpush1.msra.mxu0 0.0
    %1626 = vmatprep.subr.mxu0 0.0
    %1627 = vmatpush1.msra.mxu0 0.0
    %1628 = vmatprep.subr.mxu0 %v1616
    %1629 = vmatpush1.msra.mxu0 %v1615
    %1630 = vmatprep.subr.mxu0 %v1614
    %1631 = vmatpush1.msra.mxu0 %v1613
    %1632 = vmatprep.subr.mxu0 %v1612
    %1633 = vmatpush1.msra.mxu0 %v1611
    %1634 = vmatprep.subr.mxu0 %v1610
    %1635 = vmatpush1.msra.mxu0 %v1609
    %1636 = vmatprep.subr.mxu0 %v1608
    %1637 = vmatpush1.msra.mxu0 %v1607
    %1638 = vmatprep.subr.mxu0 %v1606
    %1639 = vmatpush1.msra.mxu0 %v1605
    %1640 = vmatprep.subr.mxu0 %v1604
    %1641 = vmatpush1.msra.mxu0 %v1603
    %1642 = vmatprep.subr.mxu0 %v1602
    %1643 = vmatpush1.msra.mxu0 %v1601
    %1644 = vmatprep.subr.mxu0 %v1600
    %1645 = vmatpush1.msra.mxu0 %v1599
    %1646 = vmatprep.subr.mxu0 %v1598
    %1647 = vmatpush1.msra.mxu0 %v1597
    %1648 = vmatprep.subr.mxu0 %v1596
    %1649 = vmatpush1.msra.mxu0 %v1595
    %1650 = vmatprep.subr.mxu0 %v1594
    %1651 = vmatpush1.msra.mxu0 %v1593
    %1652 = vmatprep.subr.mxu0 0.0
    %1653 = vmatpush2.msra.mxu0 0.0
    %1654 = vmatprep.subr.mxu0 0.0
    %1655 = vmatpush2.msra.mxu0 0.0
    %1656 = vmatprep.subr.mxu0 0.0
    %1657 = vmatpush2.msra.mxu0 0.0
    %1658 = vmatprep.subr.mxu0 0.0
    %1659 = vmatpush2.msra.mxu0 0.0
    %1660 = vmatprep.subr.mxu0 0.0
    %1661 = vmatpush2.msra.mxu0 0.0
    %1662 = vmatprep.subr.mxu0 0.0
    %1663 = vmatpush2.msra.mxu0 0.0
    %1664 = vmatprep.subr.mxu0 0.0
    %1665 = vmatpush2.msra.mxu0 0.0
    %1666 = vmatprep.subr.mxu0 0.0
    %1667 = vmatpush2.msra.mxu0 0.0
    %1668 = vmatprep.subr.mxu0 0.0
    %1669 = vmatpush2.msra.mxu0 0.0
    %1670 = vmatprep.subr.mxu0 0.0
    %1671 = vmatpush2.msra.mxu0 0.0
    %1672 = vmatprep.subr.mxu0 0.0
    %1673 = vmatpush2.msra.mxu0 0.0
    %1674 = vmatprep.subr.mxu0 0.0
    %1675 = vmatpush2.msra.mxu0 0.0
    %1676 = vmatprep.subr.mxu0 0.0
    %1677 = vmatpush2.msra.mxu0 0.0
    %1678 = vmatprep.subr.mxu0 0.0
    %1679 = vmatpush2.msra.mxu0 0.0
    %1680 = vmatprep.subr.mxu0 0.0
    %1681 = vmatpush2.msra.mxu0 0.0
    %1682 = vmatprep.subr.mxu0 0.0
    %1683 = vmatpush2.msra.mxu0 0.0
    %1684 = vmatprep.mubr.f32.mxu0 0.0
    %1685 = vmatmul.mubr.f32.gmra.mxu0 %v1618
    %v1686 = vpop.f32.mrf.mxu0
    %v1687 = vadd.f32 %v23, %v1686
    %v1688 = vpop.f32.mrf.mxu0
    %v1689 = vadd.f32 %v27, %v1688
    %1690 = vdwg.mxu0
    %v1691 = vxor.u32 %v1687, 2147483648
    %v1692 = vmul.f32 %v1691, 1.442695
    %v1693 = vpow.pop %v1692
    %v1694 = vadd.f32 %v1693, 1.0
    %v1695 = vrcp.pop %v1694
    %v1696 = vmul.f32 1.0, %v1695
    %1698 = vrot.lane.b32.xlu0 %v1689, 64
    %v1699 = vpop.permute.xlu0 %1698
    %v1701 = vmul.f32 %v1696, %v1699
    %v1702 = vadd.f32 %v1689, %v1701
    %v1703 = vtanh.pop %v1702
    %v1704 = vsub.f32 1.0, %v1696
    %1706 = vrot.lane.b32.xlu0 %v1703, 64
    %v1707 = vpop.permute.xlu0 %1706
    %v1709 = vmul.f32 %v1704, %v1707
    %v1710 = vmul.f32 %v1696, %v1404
    %v1711 = vadd.f32 %v1709, %v1710
    %v1712 = vld [vmem:[%s1 + $0xc0] sm:$0xff]
    %v1713 = vld [vmem:[%s1 + $0xd0] sm:$0xff]
    %v1714 = vld [vmem:[%s1 + $0xe0] sm:$0xff]
    %v1715 = vld [vmem:[%s1 + $0xf0] sm:$0xff]
    %v1716 = vld [vmem:[%s1 + $0x100] sm:$0xff]
    %v1717 = vld [vmem:[%s1 + $0x110] sm:$0xff]
    %v1718 = vld [vmem:[%s1 + $0x120] sm:$0xff]
    %v1719 = vld [vmem:[%s1 + $0x130] sm:$0xff]
    %1721 = vrot.lane.b32.xlu0 %v1711, 64
    %v1722 = vpop.permute.xlu0 %1721
    %v1723 = vsel %vm190, %v1722, 0
    %1725 = vmatprep.subr.mxu0 0.0
    %1726 = vmatpush1.msra.mxu0 0.0
    %1727 = vmatprep.subr.mxu0 0.0
    %1728 = vmatpush1.msra.mxu0 0.0
    %1729 = vmatprep.subr.mxu0 0.0
    %1730 = vmatpush1.msra.mxu0 0.0
    %1731 = vmatprep.subr.mxu0 0.0
    %1732 = vmatpush1.msra.mxu0 0.0
    %1733 = vmatprep.subr.mxu0 0.0
    %1734 = vmatpush1.msra.mxu0 0.0
    %1735 = vmatprep.subr.mxu0 0.0
    %1736 = vmatpush1.msra.mxu0 0.0
    %1737 = vmatprep.subr.mxu0 0.0
    %1738 = vmatpush1.msra.mxu0 0.0
    %1739 = vmatprep.subr.mxu0 0.0
    %1740 = vmatpush1.msra.mxu0 0.0
    %1741 = vmatprep.subr.mxu0 0.0
    %1742 = vmatpush1.msra.mxu0 %v1719
    %1743 = vmatprep.subr.mxu0 0.0
    %1744 = vmatpush1.msra.mxu0 %v1718
    %1745 = vmatprep.subr.mxu0 0.0
    %1746 = vmatpush1.msra.mxu0 %v1717
    %1747 = vmatprep.subr.mxu0 0.0
    %1748 = vmatpush1.msra.mxu0 %v1716
    %1749 = vmatprep.subr.mxu0 0.0
    %1750 = vmatpush1.msra.mxu0 %v1715
    %1751 = vmatprep.subr.mxu0 0.0
    %1752 = vmatpush1.msra.mxu0 %v1714
    %1753 = vmatprep.subr.mxu0 0.0
    %1754 = vmatpush1.msra.mxu0 %v1713
    %1755 = vmatprep.subr.mxu0 0.0
    %1756 = vmatpush1.msra.mxu0 %v1712
    %1757 = vmatprep.subr.mxu0 0.0
    %1758 = vmatpush2.msra.mxu0 0.0
    %1759 = vmatprep.subr.mxu0 0.0
    %1760 = vmatpush2.msra.mxu0 0.0
    %1761 = vmatprep.subr.mxu0 0.0
    %1762 = vmatpush2.msra.mxu0 0.0
    %1763 = vmatprep.subr.mxu0 0.0
    %1764 = vmatpush2.msra.mxu0 0.0
    %1765 = vmatprep.subr.mxu0 0.0
    %1766 = vmatpush2.msra.mxu0 0.0
    %1767 = vmatprep.subr.mxu0 0.0
    %1768 = vmatpush2.msra.mxu0 0.0
    %1769 = vmatprep.subr.mxu0 0.0
    %1770 = vmatpush2.msra.mxu0 0.0
    %1771 = vmatprep.subr.mxu0 0.0
    %1772 = vmatpush2.msra.mxu0 0.0
    %1773 = vmatprep.subr.mxu0 0.0
    %1774 = vmatpush2.msra.mxu0 0.0
    %1775 = vmatprep.subr.mxu0 0.0
    %1776 = vmatpush2.msra.mxu0 0.0
    %1777 = vmatprep.subr.mxu0 0.0
    %1778 = vmatpush2.msra.mxu0 0.0
    %1779 = vmatprep.subr.mxu0 0.0
    %1780 = vmatpush2.msra.mxu0 0.0
    %1781 = vmatprep.subr.mxu0 0.0
    %1782 = vmatpush2.msra.mxu0 0.0
    %1783 = vmatprep.subr.mxu0 0.0
    %1784 = vmatpush2.msra.mxu0 0.0
    %1785 = vmatprep.subr.mxu0 0.0
    %1786 = vmatpush2.msra.mxu0 0.0
    %1787 = vmatprep.subr.mxu0 0.0
    %1788 = vmatpush2.msra.mxu0 0.0
    %1789 = vmatprep.mubr.f32.mxu0 0.0
    %1790 = vmatmul.mubr.f32.gmra.mxu0 %v1723
    %v1791 = vpop.f32.mrf.mxu0
    %v1792 = vadd.f32 %v35, %v1791
    %v1793 = vpop.f32.mrf.mxu0
    %1794 = vdwg.mxu0
    %v1795 = vsel %vm264, %v1792, -inf
    %1796 = vmax.index.xlane.f32.xlu0 %v1795
    %v1797 = vpop.xlane.xlu0 %1796
    %vm1798 = vcmp.eq.s32.totalorder %v45, %v1797
    %v1799 = vsel %vm1798, 1, 0
    %v1800 = vcvt.s32.f32 %v1799
    %1801 = vmax.xlane.f32.xlu0 %v1795
    %v1802 = vpop.xlane.xlu0 %1801
    %v1803 = vsub.f32 %v1792, %v1802
    %v1804 = vmul.f32 %v1803, 1.442695
    %v1805 = vpow.pop %v1804
    %v1806 = vsel %vm264, %v1805, 0.0
    %1807 = vadd.xlane.f32.xlu0 %v1806
    %v1808 = vpop.xlane.xlu0 %1807
    %v1809 = vrcp.pop %v1808
    %v1810 = vmul.f32 %v1805, %v1809
    %1812 = vrot.lane.b32.xlu0 %v1810, 80
    %v1813 = vpop.permute.xlu0 %1812
    %vm1815 = vcmask 786048
    %1816 = vst.msk [vmem:[%s5] sm:$0xff] %vm1815, %v1813
    %1818 = vrot.lane.b32.xlu0 %v1800, 80
    %v1819 = vpop.permute.xlu0 %1818
    %1821 = vst.msk [vmem:[%s4] sm:$0xff] %vm1815, %v1819
    %v1822 = vld [vmem:[%s1 + $0x140] sm:$0xff]
    %v1823 = vld [vmem:[%s1 + $0x150] sm:$0xff]
    %v1824 = vsel %vm264, %v1800, 0
    %1826 = vmatprep.subr.mxu0 0.0
    %1827 = vmatpush1.msra.mxu0 0.0
    %1828 = vmatprep.subr.mxu0 0.0
    %1829 = vmatpush1.msra.mxu0 0.0
    %1830 = vmatprep.subr.mxu0 0.0
    %1831 = vmatpush1.msra.mxu0 0.0
    %1832 = vmatprep.subr.mxu0 0.0
    %1833 = vmatpush1.msra.mxu0 0.0
    %1834 = vmatprep.subr.mxu0 0.0
    %1835 = vmatpush1.msra.mxu0 0.0
    %1836 = vmatprep.subr.mxu0 0.0
    %1837 = vmatpush1.msra.mxu0 0.0
    %1838 = vmatprep.subr.mxu0 0.0
    %1839 = vmatpush1.msra.mxu0 0.0
    %1840 = vmatprep.subr.mxu0 0.0
    %1841 = vmatpush1.msra.mxu0 0.0
    %1842 = vmatprep.subr.mxu0 0.0
    %1843 = vmatpush1.msra.mxu0 0.0
    %1844 = vmatprep.subr.mxu0 0.0
    %1845 = vmatpush1.msra.mxu0 0.0
    %1846 = vmatprep.subr.mxu0 0.0
    %1847 = vmatpush1.msra.mxu0 0.0
    %1848 = vmatprep.subr.mxu0 0.0
    %1849 = vmatpush1.msra.mxu0 0.0
    %1850 = vmatprep.subr.mxu0 0.0
    %1851 = vmatpush1.msra.mxu0 0.0
    %1852 = vmatprep.subr.mxu0 0.0
    %1853 = vmatpush1.msra.mxu0 0.0
    %1854 = vmatprep.subr.mxu0 0.0
    %1855 = vmatpush1.msra.mxu0 %v1823
    %1856 = vmatprep.subr.mxu0 0.0
    %1857 = vmatpush1.msra.mxu0 %v1822
    %1858 = vmatprep.subr.mxu0 0.0
    %1859 = vmatpush2.msra.mxu0 0.0
    %1860 = vmatprep.subr.mxu0 0.0
    %1861 = vmatpush2.msra.mxu0 0.0
    %1862 = vmatprep.subr.mxu0 0.0
    %1863 = vmatpush2.msra.mxu0 0.0
    %1864 = vmatprep.subr.mxu0 0.0
    %1865 = vmatpush2.msra.mxu0 0.0
    %1866 = vmatprep.subr.mxu0 0.0
    %1867 = vmatpush2.msra.mxu0 0.0
    %1868 = vmatprep.subr.mxu0 0.0
    %1869 = vmatpush2.msra.mxu0 0.0
    %1870 = vmatprep.subr.mxu0 0.0
    %1871 = vmatpush2.msra.mxu0 0.0
    %1872 = vmatprep.subr.mxu0 0.0
    %1873 = vmatpush2.msra.mxu0 0.0
    %1874 = vmatprep.subr.mxu0 0.0
    %1875 = vmatpush2.msra.mxu0 0.0
    %1876 = vmatprep.subr.mxu0 0.0
    %1877 = vmatpush2.msra.mxu0 0.0
    %1878 = vmatprep.subr.mxu0 0.0
    %1879 = vmatpush2.msra.mxu0 0.0
    %1880 = vmatprep.subr.mxu0 0.0
    %1881 = vmatpush2.msra.mxu0 0.0
    %1882 = vmatprep.subr.mxu0 0.0
    %1883 = vmatpush2.msra.mxu0 0.0
    %1884 = vmatprep.subr.mxu0 0.0
    %1885 = vmatpush2.msra.mxu0 0.0
    %1886 = vmatprep.subr.mxu0 0.0
    %1887 = vmatpush2.msra.mxu0 0.0
    %1888 = vmatprep.subr.mxu0 0.0
    %1889 = vmatpush2.msra.mxu0 0.0
    %1890 = vmatprep.mubr.f32.mxu0 0.0
    %1891 = vmatmul.mubr.f32.gmra.mxu0 %v1824
    %v1892 = vpop.f32.mrf.mxu0
    %v1893 = vadd.f32 %v42, %v1892
    %v1894 = vpop.f32.mrf.mxu0
    %1895 = vdwg.mxu0
    %1896 = vrot.lane.b32.xlu0 %v1711, 96
    %v1897 = vpop.permute.xlu0 %1896
    %v1899 = vsel %vm47, %v1893, %v1897
    %v1900 = vld [vmem:[%s1] sm:$0xff]
    %v1901 = vld [vmem:[%s1 + $0x8] sm:$0xff]
    %v1902 = vld [vmem:[%s1 + $0x10] sm:$0xff]
    %v1903 = vld [vmem:[%s1 + $0x18] sm:$0xff]
    %v1904 = vld [vmem:[%s1 + $0x20] sm:$0xff]
    %v1905 = vld [vmem:[%s1 + $0x28] sm:$0xff]
    %v1906 = vld [vmem:[%s1 + $0x30] sm:$0xff]
    %v1907 = vld [vmem:[%s1 + $0x38] sm:$0xff]
    %v1908 = vld [vmem:[%s1 + $0x40] sm:$0xff]
    %v1909 = vld [vmem:[%s1 + $0x48] sm:$0xff]
    %v1910 = vld [vmem:[%s1 + $0x50] sm:$0xff]
    %v1911 = vld [vmem:[%s1 + $0x58] sm:$0xff]
    %v1912 = vld [vmem:[%s1 + $0x60] sm:$0xff]
    %v1913 = vld [vmem:[%s1 + $0x68] sm:$0xff]
    %v1914 = vld [vmem:[%s1 + $0x70] sm:$0xff]
    %v1915 = vld [vmem:[%s1 + $0x78] sm:$0xff]
    %v1916 = vld [vmem:[%s1 + $0x80] sm:$0xff]
    %v1917 = vld [vmem:[%s1 + $0x88] sm:$0xff]
    %v1918 = vld [vmem:[%s1 + $0x90] sm:$0xff]
    %v1919 = vld [vmem:[%s1 + $0x98] sm:$0xff]
    %v1920 = vld [vmem:[%s1 + $0xa0] sm:$0xff]
    %v1921 = vld [vmem:[%s1 + $0xa8] sm:$0xff]
    %v1922 = vld [vmem:[%s1 + $0xb0] sm:$0xff]
    %v1923 = vld [vmem:[%s1 + $0xb8] sm:$0xff]
    %v1925 = vsel %vm78, %v1899, 0
    %1927 = vmatprep.subr.mxu0 0.0
    %1928 = vmatpush1.msra.mxu0 0.0
    %1929 = vmatprep.subr.mxu0 0.0
    %1930 = vmatpush1.msra.mxu0 0.0
    %1931 = vmatprep.subr.mxu0 0.0
    %1932 = vmatpush1.msra.mxu0 0.0
    %1933 = vmatprep.subr.mxu0 0.0
    %1934 = vmatpush1.msra.mxu0 0.0
    %1935 = vmatprep.subr.mxu0 %v1923
    %1936 = vmatpush1.msra.mxu0 %v1922
    %1937 = vmatprep.subr.mxu0 %v1921
    %1938 = vmatpush1.msra.mxu0 %v1920
    %1939 = vmatprep.subr.mxu0 %v1919
    %1940 = vmatpush1.msra.mxu0 %v1918
    %1941 = vmatprep.subr.mxu0 %v1917
    %1942 = vmatpush1.msra.mxu0 %v1916
    %1943 = vmatprep.subr.mxu0 %v1915
    %1944 = vmatpush1.msra.mxu0 %v1914
    %1945 = vmatprep.subr.mxu0 %v1913
    %1946 = vmatpush1.msra.mxu0 %v1912
    %1947 = vmatprep.subr.mxu0 %v1911
    %1948 = vmatpush1.msra.mxu0 %v1910
    %1949 = vmatprep.subr.mxu0 %v1909
    %1950 = vmatpush1.msra.mxu0 %v1908
    %1951 = vmatprep.subr.mxu0 %v1907
    %1952 = vmatpush1.msra.mxu0 %v1906
    %1953 = vmatprep.subr.mxu0 %v1905
    %1954 = vmatpush1.msra.mxu0 %v1904
    %1955 = vmatprep.subr.mxu0 %v1903
    %1956 = vmatpush1.msra.mxu0 %v1902
    %1957 = vmatprep.subr.mxu0 %v1901
    %1958 = vmatpush1.msra.mxu0 %v1900
    %1959 = vmatprep.subr.mxu0 0.0
    %1960 = vmatpush2.msra.mxu0 0.0
    %1961 = vmatprep.subr.mxu0 0.0
    %1962 = vmatpush2.msra.mxu0 0.0
    %1963 = vmatprep.subr.mxu0 0.0
    %1964 = vmatpush2.msra.mxu0 0.0
    %1965 = vmatprep.subr.mxu0 0.0
    %1966 = vmatpush2.msra.mxu0 0.0
    %1967 = vmatprep.subr.mxu0 0.0
    %1968 = vmatpush2.msra.mxu0 0.0
    %1969 = vmatprep.subr.mxu0 0.0
    %1970 = vmatpush2.msra.mxu0 0.0
    %1971 = vmatprep.subr.mxu0 0.0
    %1972 = vmatpush2.msra.mxu0 0.0
    %1973 = vmatprep.subr.mxu0 0.0
    %1974 = vmatpush2.msra.mxu0 0.0
    %1975 = vmatprep.subr.mxu0 0.0
    %1976 = vmatpush2.msra.mxu0 0.0
    %1977 = vmatprep.subr.mxu0 0.0
    %1978 = vmatpush2.msra.mxu0 0.0
    %1979 = vmatprep.subr.mxu0 0.0
    %1980 = vmatpush2.msra.mxu0 0.0
    %1981 = vmatprep.subr.mxu0 0.0
    %1982 = vmatpush2.msra.mxu0 0.0
    %1983 = vmatprep.subr.mxu0 0.0
    %1984 = vmatpush2.msra.mxu0 0.0
    %1985 = vmatprep.subr.mxu0 0.0
    %1986 = vmatpush2.msra.mxu0 0.0
    %1987 = vmatprep.subr.mxu0 0.0
    %1988 = vmatpush2.msra.mxu0 0.0
    %1989 = vmatprep.subr.mxu0 0.0
    %1990 = vmatpush2.msra.mxu0 0.0
    %1991 = vmatprep.mubr.f32.mxu0 0.0
    %1992 = vmatmul.mubr.f32.gmra.mxu0 %v1925
    %v1993 = vpop.f32.mrf.mxu0
    %v1994 = vadd.f32 %v23, %v1993
    %v1995 = vpop.f32.mrf.mxu0
    %v1996 = vadd.f32 %v27, %v1995
    %1997 = vdwg.mxu0
    %v1998 = vxor.u32 %v1994, 2147483648
    %v1999 = vmul.f32 %v1998, 1.442695
    %v2000 = vpow.pop %v1999
    %v2001 = vadd.f32 %v2000, 1.0
    %v2002 = vrcp.pop %v2001
    %v2003 = vmul.f32 1.0, %v2002
    %2005 = vrot.lane.b32.xlu0 %v1996, 64
    %v2006 = vpop.permute.xlu0 %2005
    %v2008 = vmul.f32 %v2003, %v2006
    %v2009 = vadd.f32 %v1996, %v2008
    %v2010 = vtanh.pop %v2009
    %v2011 = vsub.f32 1.0, %v2003
    %2013 = vrot.lane.b32.xlu0 %v2010, 64
    %v2014 = vpop.permute.xlu0 %2013
    %v2016 = vmul.f32 %v2011, %v2014
    %v2017 = vmul.f32 %v2003, %v1711
    %v2018 = vadd.f32 %v2016, %v2017
    %v2019 = vld [vmem:[%s1 + $0xc0] sm:$0xff]
    %v2020 = vld [vmem:[%s1 + $0xd0] sm:$0xff]
    %v2021 = vld [vmem:[%s1 + $0xe0] sm:$0xff]
    %v2022 = vld [vmem:[%s1 + $0xf0] sm:$0xff]
    %v2023 = vld [vmem:[%s1 + $0x100] sm:$0xff]
    %v2024 = vld [vmem:[%s1 + $0x110] sm:$0xff]
    %v2025 = vld [vmem:[%s1 + $0x120] sm:$0xff]
    %v2026 = vld [vmem:[%s1 + $0x130] sm:$0xff]
    %2028 = vrot.lane.b32.xlu0 %v2018, 64
    %v2029 = vpop.permute.xlu0 %2028
    %v2030 = vsel %vm190, %v2029, 0
    %2032 = vmatprep.subr.mxu0 0.0
    %2033 = vmatpush1.msra.mxu0 0.0
    %2034 = vmatprep.subr.mxu0 0.0
    %2035 = vmatpush1.msra.mxu0 0.0
    %2036 = vmatprep.subr.mxu0 0.0
    %2037 = vmatpush1.msra.mxu0 0.0
    %2038 = vmatprep.subr.mxu0 0.0
    %2039 = vmatpush1.msra.mxu0 0.0
    %2040 = vmatprep.subr.mxu0 0.0
    %2041 = vmatpush1.msra.mxu0 0.0
    %2042 = vmatprep.subr.mxu0 0.0
    %2043 = vmatpush1.msra.mxu0 0.0
    %2044 = vmatprep.subr.mxu0 0.0
    %2045 = vmatpush1.msra.mxu0 0.0
    %2046 = vmatprep.subr.mxu0 0.0
    %2047 = vmatpush1.msra.mxu0 0.0
    %2048 = vmatprep.subr.mxu0 0.0
    %2049 = vmatpush1.msra.mxu0 %v2026
    %2050 = vmatprep.subr.mxu0 0.0
    %2051 = vmatpush1.msra.mxu0 %v2025
    %2052 = vmatprep.subr.mxu0 0.0
    %2053 = vmatpush1.msra.mxu0 %v2024
    %2054 = vmatprep.subr.mxu0 0.0
    %2055 = vmatpush1.msra.mxu0 %v2023
    %2056 = vmatprep.subr.mxu0 0.0
    %2057 = vmatpush1.msra.mxu0 %v2022
    %2058 = vmatprep.subr.mxu0 0.0
    %2059 = vmatpush1.msra.mxu0 %v2021
    %2060 = vmatprep.subr.mxu0 0.0
    %2061 = vmatpush1.msra.mxu0 %v2020
    %2062 = vmatprep.subr.mxu0 0.0
    %2063 = vmatpush1.msra.mxu0 %v2019
    %2064 = vmatprep.subr.mxu0 0.0
    %2065 = vmatpush2.msra.mxu0 0.0
    %2066 = vmatprep.subr.mxu0 0.0
    %2067 = vmatpush2.msra.mxu0 0.0
    %2068 = vmatprep.subr.mxu0 0.0
    %2069 = vmatpush2.msra.mxu0 0.0
    %2070 = vmatprep.subr.mxu0 0.0
    %2071 = vmatpush2.msra.mxu0 0.0
    %2072 = vmatprep.subr.mxu0 0.0
    %2073 = vmatpush2.msra.mxu0 0.0
    %2074 = vmatprep.subr.mxu0 0.0
    %2075 = vmatpush2.msra.mxu0 0.0
    %2076 = vmatprep.subr.mxu0 0.0
    %2077 = vmatpush2.msra.mxu0 0.0
    %2078 = vmatprep.subr.mxu0 0.0
    %2079 = vmatpush2.msra.mxu0 0.0
    %2080 = vmatprep.subr.mxu0 0.0
    %2081 = vmatpush2.msra.mxu0 0.0
    %2082 = vmatprep.subr.mxu0 0.0
    %2083 = vmatpush2.msra.mxu0 0.0
    %2084 = vmatprep.subr.mxu0 0.0
    %2085 = vmatpush2.msra.mxu0 0.0
    %2086 = vmatprep.subr.mxu0 0.0
    %2087 = vmatpush2.msra.mxu0 0.0
    %2088 = vmatprep.subr.mxu0 0.0
    %2089 = vmatpush2.msra.mxu0 0.0
    %2090 = vmatprep.subr.mxu0 0.0
    %2091 = vmatpush2.msra.mxu0 0.0
    %2092 = vmatprep.subr.mxu0 0.0
    %2093 = vmatpush2.msra.mxu0 0.0
    %2094 = vmatprep.subr.mxu0 0.0
    %2095 = vmatpush2.msra.mxu0 0.0
    %2096 = vmatprep.mubr.f32.mxu0 0.0
    %2097 = vmatmul.mubr.f32.gmra.mxu0 %v2030
    %v2098 = vpop.f32.mrf.mxu0
    %v2099 = vadd.f32 %v35, %v2098
    %v2100 = vpop.f32.mrf.mxu0
    %2101 = vdwg.mxu0
    %v2102 = vsel %vm264, %v2099, -inf
    %2103 = vmax.index.xlane.f32.xlu0 %v2102
    %v2104 = vpop.xlane.xlu0 %2103
    %vm2105 = vcmp.eq.s32.totalorder %v45, %v2104
    %v2106 = vsel %vm2105, 1, 0
    %v2107 = vcvt.s32.f32 %v2106
    %2108 = vmax.xlane.f32.xlu0 %v2102
    %v2109 = vpop.xlane.xlu0 %2108
    %v2110 = vsub.f32 %v2099, %v2109
    %v2111 = vmul.f32 %v2110, 1.442695
    %v2112 = vpow.pop %v2111
    %v2113 = vsel %vm264, %v2112, 0.0
    %2114 = vadd.xlane.f32.xlu0 %v2113
    %v2115 = vpop.xlane.xlu0 %2114
    %v2116 = vrcp.pop %v2115
    %v2117 = vmul.f32 %v2112, %v2116
    %2119 = vrot.lane.b32.xlu0 %v2117, 96
    %v2120 = vpop.permute.xlu0 %2119
    %vm2122 = vcmask 917248
    %2123 = vst.msk [vmem:[%s5] sm:$0xff] %vm2122, %v2120
    %2125 = vrot.lane.b32.xlu0 %v2107, 96
    %v2126 = vpop.permute.xlu0 %2125
    %2128 = vst.msk [vmem:[%s4] sm:$0xff] %vm2122, %v2126
    %v2129 = vld [vmem:[%s1 + $0x140] sm:$0xff]
    %v2130 = vld [vmem:[%s1 + $0x150] sm:$0xff]
    %v2131 = vsel %vm264, %v2107, 0
    %2133 = vmatprep.subr.mxu0 0.0
    %2134 = vmatpush1.msra.mxu0 0.0
    %2135 = vmatprep.subr.mxu0 0.0
    %2136 = vmatpush1.msra.mxu0 0.0
    %2137 = vmatprep.subr.mxu0 0.0
    %2138 = vmatpush1.msra.mxu0 0.0
    %2139 = vmatprep.subr.mxu0 0.0
    %2140 = vmatpush1.msra.mxu0 0.0
    %2141 = vmatprep.subr.mxu0 0.0
    %2142 = vmatpush1.msra.mxu0 0.0
    %2143 = vmatprep.subr.mxu0 0.0
    %2144 = vmatpush1.msra.mxu0 0.0
    %2145 = vmatprep.subr.mxu0 0.0
    %2146 = vmatpush1.msra.mxu0 0.0
    %2147 = vmatprep.subr.mxu0 0.0
    %2148 = vmatpush1.msra.mxu0 0.0
    %2149 = vmatprep.subr.mxu0 0.0
    %2150 = vmatpush1.msra.mxu0 0.0
    %2151 = vmatprep.subr.mxu0 0.0
    %2152 = vmatpush1.msra.mxu0 0.0
    %2153 = vmatprep.subr.mxu0 0.0
    %2154 = vmatpush1.msra.mxu0 0.0
    %2155 = vmatprep.subr.mxu0 0.0
    %2156 = vmatpush1.msra.mxu0 0.0
    %2157 = vmatprep.subr.mxu0 0.0
    %2158 = vmatpush1.msra.mxu0 0.0
    %2159 = vmatprep.subr.mxu0 0.0
    %2160 = vmatpush1.msra.mxu0 0.0
    %2161 = vmatprep.subr.mxu0 0.0
    %2162 = vmatpush1.msra.mxu0 %v2130
    %2163 = vmatprep.subr.mxu0 0.0
    %2164 = vmatpush1.msra.mxu0 %v2129
    %2165 = vmatprep.subr.mxu0 0.0
    %2166 = vmatpush2.msra.mxu0 0.0
    %2167 = vmatprep.subr.mxu0 0.0
    %2168 = vmatpush2.msra.mxu0 0.0
    %2169 = vmatprep.subr.mxu0 0.0
    %2170 = vmatpush2.msra.mxu0 0.0
    %2171 = vmatprep.subr.mxu0 0.0
    %2172 = vmatpush2.msra.mxu0 0.0
    %2173 = vmatprep.subr.mxu0 0.0
    %2174 = vmatpush2.msra.mxu0 0.0
    %2175 = vmatprep.subr.mxu0 0.0
    %2176 = vmatpush2.msra.mxu0 0.0
    %2177 = vmatprep.subr.mxu0 0.0
    %2178 = vmatpush2.msra.mxu0 0.0
    %2179 = vmatprep.subr.mxu0 0.0
    %2180 = vmatpush2.msra.mxu0 0.0
    %2181 = vmatprep.subr.mxu0 0.0
    %2182 = vmatpush2.msra.mxu0 0.0
    %2183 = vmatprep.subr.mxu0 0.0
    %2184 = vmatpush2.msra.mxu0 0.0
    %2185 = vmatprep.subr.mxu0 0.0
    %2186 = vmatpush2.msra.mxu0 0.0
    %2187 = vmatprep.subr.mxu0 0.0
    %2188 = vmatpush2.msra.mxu0 0.0
    %2189 = vmatprep.subr.mxu0 0.0
    %2190 = vmatpush2.msra.mxu0 0.0
    %2191 = vmatprep.subr.mxu0 0.0
    %2192 = vmatpush2.msra.mxu0 0.0
    %2193 = vmatprep.subr.mxu0 0.0
    %2194 = vmatpush2.msra.mxu0 0.0
    %2195 = vmatprep.subr.mxu0 0.0
    %2196 = vmatpush2.msra.mxu0 0.0
    %2197 = vmatprep.mubr.f32.mxu0 0.0
    %2198 = vmatmul.mubr.f32.gmra.mxu0 %v2131
    %v2199 = vpop.f32.mrf.mxu0
    %v2200 = vadd.f32 %v42, %v2199
    %v2201 = vpop.f32.mrf.mxu0
    %2202 = vdwg.mxu0
    %2203 = vrot.lane.b32.xlu0 %v2018, 96
    %v2204 = vpop.permute.xlu0 %2203
    %v2206 = vsel %vm47, %v2200, %v2204
    %v2207 = vld [vmem:[%s1] sm:$0xff]
    %v2208 = vld [vmem:[%s1 + $0x8] sm:$0xff]
    %v2209 = vld [vmem:[%s1 + $0x10] sm:$0xff]
    %v2210 = vld [vmem:[%s1 + $0x18] sm:$0xff]
    %v2211 = vld [vmem:[%s1 + $0x20] sm:$0xff]
    %v2212 = vld [vmem:[%s1 + $0x28] sm:$0xff]
    %v2213 = vld [vmem:[%s1 + $0x30] sm:$0xff]
    %v2214 = vld [vmem:[%s1 + $0x38] sm:$0xff]
    %v2215 = vld [vmem:[%s1 + $0x40] sm:$0xff]
    %v2216 = vld [vmem:[%s1 + $0x48] sm:$0xff]
    %v2217 = vld [vmem:[%s1 + $0x50] sm:$0xff]
    %v2218 = vld [vmem:[%s1 + $0x58] sm:$0xff]
    %v2219 = vld [vmem:[%s1 + $0x60] sm:$0xff]
    %v2220 = vld [vmem:[%s1 + $0x68] sm:$0xff]
    %v2221 = vld [vmem:[%s1 + $0x70] sm:$0xff]
    %v2222 = vld [vmem:[%s1 + $0x78] sm:$0xff]
    %v2223 = vld [vmem:[%s1 + $0x80] sm:$0xff]
    %v2224 = vld [vmem:[%s1 + $0x88] sm:$0xff]
    %v2225 = vld [vmem:[%s1 + $0x90] sm:$0xff]
    %v2226 = vld [vmem:[%s1 + $0x98] sm:$0xff]
    %v2227 = vld [vmem:[%s1 + $0xa0] sm:$0xff]
    %v2228 = vld [vmem:[%s1 + $0xa8] sm:$0xff]
    %v2229 = vld [vmem:[%s1 + $0xb0] sm:$0xff]
    %v2230 = vld [vmem:[%s1 + $0xb8] sm:$0xff]
    %v2232 = vsel %vm78, %v2206, 0
    %2234 = vmatprep.subr.mxu0 0.0
    %2235 = vmatpush1.msra.mxu0 0.0
    %2236 = vmatprep.subr.mxu0 0.0
    %2237 = vmatpush1.msra.mxu0 0.0
    %2238 = vmatprep.subr.mxu0 0.0
    %2239 = vmatpush1.msra.mxu0 0.0
    %2240 = vmatprep.subr.mxu0 0.0
    %2241 = vmatpush1.msra.mxu0 0.0
    %2242 = vmatprep.subr.mxu0 %v2230
    %2243 = vmatpush1.msra.mxu0 %v2229
    %2244 = vmatprep.subr.mxu0 %v2228
    %2245 = vmatpush1.msra.mxu0 %v2227
    %2246 = vmatprep.subr.mxu0 %v2226
    %2247 = vmatpush1.msra.mxu0 %v2225
    %2248 = vmatprep.subr.mxu0 %v2224
    %2249 = vmatpush1.msra.mxu0 %v2223
    %2250 = vmatprep.subr.mxu0 %v2222
    %2251 = vmatpush1.msra.mxu0 %v2221
    %2252 = vmatprep.subr.mxu0 %v2220
    %2253 = vmatpush1.msra.mxu0 %v2219
    %2254 = vmatprep.subr.mxu0 %v2218
    %2255 = vmatpush1.msra.mxu0 %v2217
    %2256 = vmatprep.subr.mxu0 %v2216
    %2257 = vmatpush1.msra.mxu0 %v2215
    %2258 = vmatprep.subr.mxu0 %v2214
    %2259 = vmatpush1.msra.mxu0 %v2213
    %2260 = vmatprep.subr.mxu0 %v2212
    %2261 = vmatpush1.msra.mxu0 %v2211
    %2262 = vmatprep.subr.mxu0 %v2210
    %2263 = vmatpush1.msra.mxu0 %v2209
    %2264 = vmatprep.subr.mxu0 %v2208
    %2265 = vmatpush1.msra.mxu0 %v2207
    %2266 = vmatprep.subr.mxu0 0.0
    %2267 = vmatpush2.msra.mxu0 0.0
    %2268 = vmatprep.subr.mxu0 0.0
    %2269 = vmatpush2.msra.mxu0 0.0
    %2270 = vmatprep.subr.mxu0 0.0
    %2271 = vmatpush2.msra.mxu0 0.0
    %2272 = vmatprep.subr.mxu0 0.0
    %2273 = vmatpush2.msra.mxu0 0.0
    %2274 = vmatprep.subr.mxu0 0.0
    %2275 = vmatpush2.msra.mxu0 0.0
    %2276 = vmatprep.subr.mxu0 0.0
    %2277 = vmatpush2.msra.mxu0 0.0
    %2278 = vmatprep.subr.mxu0 0.0
    %2279 = vmatpush2.msra.mxu0 0.0
    %2280 = vmatprep.subr.mxu0 0.0
    %2281 = vmatpush2.msra.mxu0 0.0
    %2282 = vmatprep.subr.mxu0 0.0
    %2283 = vmatpush2.msra.mxu0 0.0
    %2284 = vmatprep.subr.mxu0 0.0
    %2285 = vmatpush2.msra.mxu0 0.0
    %2286 = vmatprep.subr.mxu0 0.0
    %2287 = vmatpush2.msra.mxu0 0.0
    %2288 = vmatprep.subr.mxu0 0.0
    %2289 = vmatpush2.msra.mxu0 0.0
    %2290 = vmatprep.subr.mxu0 0.0
    %2291 = vmatpush2.msra.mxu0 0.0
    %2292 = vmatprep.subr.mxu0 0.0
    %2293 = vmatpush2.msra.mxu0 0.0
    %2294 = vmatprep.subr.mxu0 0.0
    %2295 = vmatpush2.msra.mxu0 0.0
    %2296 = vmatprep.subr.mxu0 0.0
    %2297 = vmatpush2.msra.mxu0 0.0
    %2298 = vmatprep.mubr.f32.mxu0 0.0
    %2299 = vmatmul.mubr.f32.gmra.mxu0 %v2232
    %v2300 = vpop.f32.mrf.mxu0
    %v2301 = vadd.f32 %v23, %v2300
    %v2302 = vpop.f32.mrf.mxu0
    %v2303 = vadd.f32 %v27, %v2302
    %2304 = vdwg.mxu0
    %v2305 = vxor.u32 %v2301, 2147483648
    %v2306 = vmul.f32 %v2305, 1.442695
    %v2307 = vpow.pop %v2306
    %v2308 = vadd.f32 %v2307, 1.0
    %v2309 = vrcp.pop %v2308
    %v2310 = vmul.f32 1.0, %v2309
    %2312 = vrot.lane.b32.xlu0 %v2303, 64
    %v2313 = vpop.permute.xlu0 %2312
    %v2315 = vmul.f32 %v2310, %v2313
    %v2316 = vadd.f32 %v2303, %v2315
    %v2317 = vtanh.pop %v2316
    %v2318 = vsub.f32 1.0, %v2310
    %2320 = vrot.lane.b32.xlu0 %v2317, 64
    %v2321 = vpop.permute.xlu0 %2320
    %v2323 = vmul.f32 %v2318, %v2321
    %v2324 = vmul.f32 %v2310, %v2018
    %v2325 = vadd.f32 %v2323, %v2324
    %v2326 = vld [vmem:[%s1 + $0xc0] sm:$0xff]
    %v2327 = vld [vmem:[%s1 + $0xd0] sm:$0xff]
    %v2328 = vld [vmem:[%s1 + $0xe0] sm:$0xff]
    %v2329 = vld [vmem:[%s1 + $0xf0] sm:$0xff]
    %v2330 = vld [vmem:[%s1 + $0x100] sm:$0xff]
    %v2331 = vld [vmem:[%s1 + $0x110] sm:$0xff]
    %v2332 = vld [vmem:[%s1 + $0x120] sm:$0xff]
    %v2333 = vld [vmem:[%s1 + $0x130] sm:$0xff]
    %2335 = vrot.lane.b32.xlu0 %v2325, 64
    %v2336 = vpop.permute.xlu0 %2335
    %v2337 = vsel %vm190, %v2336, 0
    %2339 = vmatprep.subr.mxu0 0.0
    %2340 = vmatpush1.msra.mxu0 0.0
    %2341 = vmatprep.subr.mxu0 0.0
    %2342 = vmatpush1.msra.mxu0 0.0
    %2343 = vmatprep.subr.mxu0 0.0
    %2344 = vmatpush1.msra.mxu0 0.0
    %2345 = vmatprep.subr.mxu0 0.0
    %2346 = vmatpush1.msra.mxu0 0.0
    %2347 = vmatprep.subr.mxu0 0.0
    %2348 = vmatpush1.msra.mxu0 0.0
    %2349 = vmatprep.subr.mxu0 0.0
    %2350 = vmatpush1.msra.mxu0 0.0
    %2351 = vmatprep.subr.mxu0 0.0
    %2352 = vmatpush1.msra.mxu0 0.0
    %2353 = vmatprep.subr.mxu0 0.0
    %2354 = vmatpush1.msra.mxu0 0.0
    %2355 = vmatprep.subr.mxu0 0.0
    %2356 = vmatpush1.msra.mxu0 %v2333
    %2357 = vmatprep.subr.mxu0 0.0
    %2358 = vmatpush1.msra.mxu0 %v2332
    %2359 = vmatprep.subr.mxu0 0.0
    %2360 = vmatpush1.msra.mxu0 %v2331
    %2361 = vmatprep.subr.mxu0 0.0
    %2362 = vmatpush1.msra.mxu0 %v2330
    %2363 = vmatprep.subr.mxu0 0.0
    %2364 = vmatpush1.msra.mxu0 %v2329
    %2365 = vmatprep.subr.mxu0 0.0
    %2366 = vmatpush1.msra.mxu0 %v2328
    %2367 = vmatprep.subr.mxu0 0.0
    %2368 = vmatpush1.msra.mxu0 %v2327
    %2369 = vmatprep.subr.mxu0 0.0
    %2370 = vmatpush1.msra.mxu0 %v2326
    %2371 = vmatprep.subr.mxu0 0.0
    %2372 = vmatpush2.msra.mxu0 0.0
    %2373 = vmatprep.subr.mxu0 0.0
    %2374 = vmatpush2.msra.mxu0 0.0
    %2375 = vmatprep.subr.mxu0 0.0
    %2376 = vmatpush2.msra.mxu0 0.0
    %2377 = vmatprep.subr.mxu0 0.0
    %2378 = vmatpush2.msra.mxu0 0.0
    %2379 = vmatprep.subr.mxu0 0.0
    %2380 = vmatpush2.msra.mxu0 0.0
    %2381 = vmatprep.subr.mxu0 0.0
    %2382 = vmatpush2.msra.mxu0 0.0
    %2383 = vmatprep.subr.mxu0 0.0
    %2384 = vmatpush2.msra.mxu0 0.0
    %2385 = vmatprep.subr.mxu0 0.0
    %2386 = vmatpush2.msra.mxu0 0.0
    %2387 = vmatprep.subr.mxu0 0.0
    %2388 = vmatpush2.msra.mxu0 0.0
    %2389 = vmatprep.subr.mxu0 0.0
    %2390 = vmatpush2.msra.mxu0 0.0
    %2391 = vmatprep.subr.mxu0 0.0
    %2392 = vmatpush2.msra.mxu0 0.0
    %2393 = vmatprep.subr.mxu0 0.0
    %2394 = vmatpush2.msra.mxu0 0.0
    %2395 = vmatprep.subr.mxu0 0.0
    %2396 = vmatpush2.msra.mxu0 0.0
    %2397 = vmatprep.subr.mxu0 0.0
    %2398 = vmatpush2.msra.mxu0 0.0
    %2399 = vmatprep.subr.mxu0 0.0
    %2400 = vmatpush2.msra.mxu0 0.0
    %2401 = vmatprep.subr.mxu0 0.0
    %2402 = vmatpush2.msra.mxu0 0.0
    %2403 = vmatprep.mubr.f32.mxu0 0.0
    %2404 = vmatmul.mubr.f32.gmra.mxu0 %v2337
    %v2405 = vpop.f32.mrf.mxu0
    %v2406 = vadd.f32 %v35, %v2405
    %v2407 = vpop.f32.mrf.mxu0
    %2408 = vdwg.mxu0
    %v2409 = vsel %vm264, %v2406, -inf
    %2410 = vmax.index.xlane.f32.xlu0 %v2409
    %v2411 = vpop.xlane.xlu0 %2410
    %vm2412 = vcmp.eq.s32.totalorder %v45, %v2411
    %v2413 = vsel %vm2412, 1, 0
    %v2414 = vcvt.s32.f32 %v2413
    %2415 = vmax.xlane.f32.xlu0 %v2409
    %v2416 = vpop.xlane.xlu0 %2415
    %v2417 = vsub.f32 %v2406, %v2416
    %v2418 = vmul.f32 %v2417, 1.442695
    %v2419 = vpow.pop %v2418
    %v2420 = vsel %vm264, %v2419, 0.0
    %2421 = vadd.xlane.f32.xlu0 %v2420
    %v2422 = vpop.xlane.xlu0 %2421
    %v2423 = vrcp.pop %v2422
    %v2424 = vmul.f32 %v2419, %v2423
    %2426 = vrot.lane.b32.xlu0 %v2424, 112
    %v2427 = vpop.permute.xlu0 %2426
    %vm2429 = vcmask 1048448
    %2430 = vst.msk [vmem:[%s5] sm:$0xff] %vm2429, %v2427
    %2432 = vrot.lane.b32.xlu0 %v2414, 112
    %v2433 = vpop.permute.xlu0 %2432
    %2435 = vst.msk [vmem:[%s4] sm:$0xff] %vm2429, %v2433
    %v2436 = vld [vmem:[%s1 + $0x140] sm:$0xff]
    %v2437 = vld [vmem:[%s1 + $0x150] sm:$0xff]
    %v2438 = vsel %vm264, %v2414, 0
    %2440 = vmatprep.subr.mxu0 0.0
    %2441 = vmatpush1.msra.mxu0 0.0
    %2442 = vmatprep.subr.mxu0 0.0
    %2443 = vmatpush1.msra.mxu0 0.0
    %2444 = vmatprep.subr.mxu0 0.0
    %2445 = vmatpush1.msra.mxu0 0.0
    %2446 = vmatprep.subr.mxu0 0.0
    %2447 = vmatpush1.msra.mxu0 0.0
    %2448 = vmatprep.subr.mxu0 0.0
    %2449 = vmatpush1.msra.mxu0 0.0
    %2450 = vmatprep.subr.mxu0 0.0
    %2451 = vmatpush1.msra.mxu0 0.0
    %2452 = vmatprep.subr.mxu0 0.0
    %2453 = vmatpush1.msra.mxu0 0.0
    %2454 = vmatprep.subr.mxu0 0.0
    %2455 = vmatpush1.msra.mxu0 0.0
    %2456 = vmatprep.subr.mxu0 0.0
    %2457 = vmatpush1.msra.mxu0 0.0
    %2458 = vmatprep.subr.mxu0 0.0
    %2459 = vmatpush1.msra.mxu0 0.0
    %2460 = vmatprep.subr.mxu0 0.0
    %2461 = vmatpush1.msra.mxu0 0.0
    %2462 = vmatprep.subr.mxu0 0.0
    %2463 = vmatpush1.msra.mxu0 0.0
    %2464 = vmatprep.subr.mxu0 0.0
    %2465 = vmatpush1.msra.mxu0 0.0
    %2466 = vmatprep.subr.mxu0 0.0
    %2467 = vmatpush1.msra.mxu0 0.0
    %2468 = vmatprep.subr.mxu0 0.0
    %2469 = vmatpush1.msra.mxu0 %v2437
    %2470 = vmatprep.subr.mxu0 0.0
    %2471 = vmatpush1.msra.mxu0 %v2436
    %2472 = vmatprep.subr.mxu0 0.0
    %2473 = vmatpush2.msra.mxu0 0.0
    %2474 = vmatprep.subr.mxu0 0.0
    %2475 = vmatpush2.msra.mxu0 0.0
    %2476 = vmatprep.subr.mxu0 0.0
    %2477 = vmatpush2.msra.mxu0 0.0
    %2478 = vmatprep.subr.mxu0 0.0
    %2479 = vmatpush2.msra.mxu0 0.0
    %2480 = vmatprep.subr.mxu0 0.0
    %2481 = vmatpush2.msra.mxu0 0.0
    %2482 = vmatprep.subr.mxu0 0.0
    %2483 = vmatpush2.msra.mxu0 0.0
    %2484 = vmatprep.subr.mxu0 0.0
    %2485 = vmatpush2.msra.mxu0 0.0
    %2486 = vmatprep.subr.mxu0 0.0
    %2487 = vmatpush2.msra.mxu0 0.0
    %2488 = vmatprep.subr.mxu0 0.0
    %2489 = vmatpush2.msra.mxu0 0.0
    %2490 = vmatprep.subr.mxu0 0.0
    %2491 = vmatpush2.msra.mxu0 0.0
    %2492 = vmatprep.subr.mxu0 0.0
    %2493 = vmatpush2.msra.mxu0 0.0
    %2494 = vmatprep.subr.mxu0 0.0
    %2495 = vmatpush2.msra.mxu0 0.0
    %2496 = vmatprep.subr.mxu0 0.0
    %2497 = vmatpush2.msra.mxu0 0.0
    %2498 = vmatprep.subr.mxu0 0.0
    %2499 = vmatpush2.msra.mxu0 0.0
    %2500 = vmatprep.subr.mxu0 0.0
    %2501 = vmatpush2.msra.mxu0 0.0
    %2502 = vmatprep.subr.mxu0 0.0
    %2503 = vmatpush2.msra.mxu0 0.0
    %2504 = vmatprep.mubr.f32.mxu0 0.0
    %2505 = vmatmul.mubr.f32.gmra.mxu0 %v2438
    %v2506 = vpop.f32.mrf.mxu0
    %v2507 = vadd.f32 %v42, %v2506
    %v2508 = vpop.f32.mrf.mxu0
    %2509 = vdwg.mxu0
    %2510 = vrot.lane.b32.xlu0 %v2325, 96
    %v2511 = vpop.permute.xlu0 %2510
    %v2513 = vsel %vm47, %v2507, %v2511
    %v2514 = vld [vmem:[%s1] sm:$0xff]
    %v2515 = vld [vmem:[%s1 + $0x8] sm:$0xff]
    %v2516 = vld [vmem:[%s1 + $0x10] sm:$0xff]
    %v2517 = vld [vmem:[%s1 + $0x18] sm:$0xff]
    %v2518 = vld [vmem:[%s1 + $0x20] sm:$0xff]
    %v2519 = vld [vmem:[%s1 + $0x28] sm:$0xff]
    %v2520 = vld [vmem:[%s1 + $0x30] sm:$0xff]
    %v2521 = vld [vmem:[%s1 + $0x38] sm:$0xff]
    %v2522 = vld [vmem:[%s1 + $0x40] sm:$0xff]
    %v2523 = vld [vmem:[%s1 + $0x48] sm:$0xff]
    %v2524 = vld [vmem:[%s1 + $0x50] sm:$0xff]
    %v2525 = vld [vmem:[%s1 + $0x58] sm:$0xff]
    %v2526 = vld [vmem:[%s1 + $0x60] sm:$0xff]
    %v2527 = vld [vmem:[%s1 + $0x68] sm:$0xff]
    %v2528 = vld [vmem:[%s1 + $0x70] sm:$0xff]
    %v2529 = vld [vmem:[%s1 + $0x78] sm:$0xff]
    %v2530 = vld [vmem:[%s1 + $0x80] sm:$0xff]
    %v2531 = vld [vmem:[%s1 + $0x88] sm:$0xff]
    %v2532 = vld [vmem:[%s1 + $0x90] sm:$0xff]
    %v2533 = vld [vmem:[%s1 + $0x98] sm:$0xff]
    %v2534 = vld [vmem:[%s1 + $0xa0] sm:$0xff]
    %v2535 = vld [vmem:[%s1 + $0xa8] sm:$0xff]
    %v2536 = vld [vmem:[%s1 + $0xb0] sm:$0xff]
    %v2537 = vld [vmem:[%s1 + $0xb8] sm:$0xff]
    %v2539 = vsel %vm78, %v2513, 0
    %2541 = vmatprep.subr.mxu0 0.0
    %2542 = vmatpush1.msra.mxu0 0.0
    %2543 = vmatprep.subr.mxu0 0.0
    %2544 = vmatpush1.msra.mxu0 0.0
    %2545 = vmatprep.subr.mxu0 0.0
    %2546 = vmatpush1.msra.mxu0 0.0
    %2547 = vmatprep.subr.mxu0 0.0
    %2548 = vmatpush1.msra.mxu0 0.0
    %2549 = vmatprep.subr.mxu0 %v2537
    %2550 = vmatpush1.msra.mxu0 %v2536
    %2551 = vmatprep.subr.mxu0 %v2535
    %2552 = vmatpush1.msra.mxu0 %v2534
    %2553 = vmatprep.subr.mxu0 %v2533
    %2554 = vmatpush1.msra.mxu0 %v2532
    %2555 = vmatprep.subr.mxu0 %v2531
    %2556 = vmatpush1.msra.mxu0 %v2530
    %2557 = vmatprep.subr.mxu0 %v2529
    %2558 = vmatpush1.msra.mxu0 %v2528
    %2559 = vmatprep.subr.mxu0 %v2527
    %2560 = vmatpush1.msra.mxu0 %v2526
    %2561 = vmatprep.subr.mxu0 %v2525
    %2562 = vmatpush1.msra.mxu0 %v2524
    %2563 = vmatprep.subr.mxu0 %v2523
    %2564 = vmatpush1.msra.mxu0 %v2522
    %2565 = vmatprep.subr.mxu0 %v2521
    %2566 = vmatpush1.msra.mxu0 %v2520
    %2567 = vmatprep.subr.mxu0 %v2519
    %2568 = vmatpush1.msra.mxu0 %v2518
    %2569 = vmatprep.subr.mxu0 %v2517
    %2570 = vmatpush1.msra.mxu0 %v2516
    %2571 = vmatprep.subr.mxu0 %v2515
    %2572 = vmatpush1.msra.mxu0 %v2514
    %2573 = vmatprep.subr.mxu0 0.0
    %2574 = vmatpush2.msra.mxu0 0.0
    %2575 = vmatprep.subr.mxu0 0.0
    %2576 = vmatpush2.msra.mxu0 0.0
    %2577 = vmatprep.subr.mxu0 0.0
    %2578 = vmatpush2.msra.mxu0 0.0
    %2579 = vmatprep.subr.mxu0 0.0
    %2580 = vmatpush2.msra.mxu0 0.0
    %2581 = vmatprep.subr.mxu0 0.0
    %2582 = vmatpush2.msra.mxu0 0.0
    %2583 = vmatprep.subr.mxu0 0.0
    %2584 = vmatpush2.msra.mxu0 0.0
    %2585 = vmatprep.subr.mxu0 0.0
    %2586 = vmatpush2.msra.mxu0 0.0
    %2587 = vmatprep.subr.mxu0 0.0
    %2588 = vmatpush2.msra.mxu0 0.0
    %2589 = vmatprep.subr.mxu0 0.0
    %2590 = vmatpush2.msra.mxu0 0.0
    %2591 = vmatprep.subr.mxu0 0.0
    %2592 = vmatpush2.msra.mxu0 0.0
    %2593 = vmatprep.subr.mxu0 0.0
    %2594 = vmatpush2.msra.mxu0 0.0
    %2595 = vmatprep.subr.mxu0 0.0
    %2596 = vmatpush2.msra.mxu0 0.0
    %2597 = vmatprep.subr.mxu0 0.0
    %2598 = vmatpush2.msra.mxu0 0.0
    %2599 = vmatprep.subr.mxu0 0.0
    %2600 = vmatpush2.msra.mxu0 0.0
    %2601 = vmatprep.subr.mxu0 0.0
    %2602 = vmatpush2.msra.mxu0 0.0
    %2603 = vmatprep.subr.mxu0 0.0
    %2604 = vmatpush2.msra.mxu0 0.0
    %2605 = vmatprep.mubr.f32.mxu0 0.0
    %2606 = vmatmul.mubr.f32.gmra.mxu0 %v2539
    %v2607 = vpop.f32.mrf.mxu0
    %v2608 = vadd.f32 %v23, %v2607
    %v2609 = vpop.f32.mrf.mxu0
    %v2610 = vadd.f32 %v27, %v2609
    %2611 = vdwg.mxu0
    %v2612 = vxor.u32 %v2608, 2147483648
    %v2613 = vmul.f32 %v2612, 1.442695
    %v2614 = vpow.pop %v2613
    %v2615 = vadd.f32 %v2614, 1.0
    %v2616 = vrcp.pop %v2615
    %v2617 = vmul.f32 1.0, %v2616
    %2619 = vrot.lane.b32.xlu0 %v2610, 64
    %v2620 = vpop.permute.xlu0 %2619
    %v2622 = vmul.f32 %v2617, %v2620
    %v2623 = vadd.f32 %v2610, %v2622
    %v2624 = vtanh.pop %v2623
    %v2625 = vsub.f32 1.0, %v2617
    %2627 = vrot.lane.b32.xlu0 %v2624, 64
    %v2628 = vpop.permute.xlu0 %2627
    %v2630 = vmul.f32 %v2625, %v2628
    %v2631 = vmul.f32 %v2617, %v2325
    %v2632 = vadd.f32 %v2630, %v2631
    %v2633 = vld [vmem:[%s2 + $0x4] sm:$0x1]
    %v2635 = vlaneseq
    %v2636 = vshrl.u32 %v2635, 7
    %v2637 = vsub.s32 0, %v2636
    %v2638 = vrot.slane %v2633, %v2637
    %v2640 = vld [vmem:[%s1 + $0x160] sm:$0xff]
    %v2641 = vld [vmem:[%s1 + $0x170] sm:$0xff]
    %v2642 = vld [vmem:[%s1 + $0x180] sm:$0xff]
    %v2643 = vld [vmem:[%s1 + $0x190] sm:$0xff]
    %2645 = vrot.lane.b32.xlu0 %v2632, 32
    %v2646 = vpop.permute.xlu0 %2645
    %v2647 = vsel %vm47, %v2646, 0
    %2649 = vmatprep.subr.mxu0 0.0
    %2650 = vmatpush1.msra.mxu0 0.0
    %2651 = vmatprep.subr.mxu0 0.0
    %2652 = vmatpush1.msra.mxu0 0.0
    %2653 = vmatprep.subr.mxu0 0.0
    %2654 = vmatpush1.msra.mxu0 0.0
    %2655 = vmatprep.subr.mxu0 0.0
    %2656 = vmatpush1.msra.mxu0 0.0
    %2657 = vmatprep.subr.mxu0 0.0
    %2658 = vmatpush1.msra.mxu0 0.0
    %2659 = vmatprep.subr.mxu0 0.0
    %2660 = vmatpush1.msra.mxu0 0.0
    %2661 = vmatprep.subr.mxu0 0.0
    %2662 = vmatpush1.msra.mxu0 0.0
    %2663 = vmatprep.subr.mxu0 0.0
    %2664 = vmatpush1.msra.mxu0 0.0
    %2665 = vmatprep.subr.mxu0 0.0
    %2666 = vmatpush1.msra.mxu0 0.0
    %2667 = vmatprep.subr.mxu0 0.0
    %2668 = vmatpush1.msra.mxu0 0.0
    %2669 = vmatprep.subr.mxu0 0.0
    %2670 = vmatpush1.msra.mxu0 0.0
    %2671 = vmatprep.subr.mxu0 0.0
    %2672 = vmatpush1.msra.mxu0 0.0
    %2673 = vmatprep.subr.mxu0 0.0
    %2674 = vmatpush1.msra.mxu0 %v2643
    %2675 = vmatprep.subr.mxu0 0.0
    %2676 = vmatpush1.msra.mxu0 %v2642
    %2677 = vmatprep.subr.mxu0 0.0
    %2678 = vmatpush1.msra.mxu0 %v2641
    %2679 = vmatprep.subr.mxu0 0.0
    %2680 = vmatpush1.msra.mxu0 %v2640
    %2681 = vmatprep.subr.mxu0 0.0
    %2682 = vmatpush2.msra.mxu0 0.0
    %2683 = vmatprep.subr.mxu0 0.0
    %2684 = vmatpush2.msra.mxu0 0.0
    %2685 = vmatprep.subr.mxu0 0.0
    %2686 = vmatpush2.msra.mxu0 0.0
    %2687 = vmatprep.subr.mxu0 0.0
    %2688 = vmatpush2.msra.mxu0 0.0
    %2689 = vmatprep.subr.mxu0 0.0
    %2690 = vmatpush2.msra.mxu0 0.0
    %2691 = vmatprep.subr.mxu0 0.0
    %2692 = vmatpush2.msra.mxu0 0.0
    %2693 = vmatprep.subr.mxu0 0.0
    %2694 = vmatpush2.msra.mxu0 0.0
    %2695 = vmatprep.subr.mxu0 0.0
    %2696 = vmatpush2.msra.mxu0 0.0
    %2697 = vmatprep.subr.mxu0 0.0
    %2698 = vmatpush2.msra.mxu0 0.0
    %2699 = vmatprep.subr.mxu0 0.0
    %2700 = vmatpush2.msra.mxu0 0.0
    %2701 = vmatprep.subr.mxu0 0.0
    %2702 = vmatpush2.msra.mxu0 0.0
    %2703 = vmatprep.subr.mxu0 0.0
    %2704 = vmatpush2.msra.mxu0 0.0
    %2705 = vmatprep.subr.mxu0 0.0
    %2706 = vmatpush2.msra.mxu0 0.0
    %2707 = vmatprep.subr.mxu0 0.0
    %2708 = vmatpush2.msra.mxu0 0.0
    %2709 = vmatprep.subr.mxu0 0.0
    %2710 = vmatpush2.msra.mxu0 0.0
    %2711 = vmatprep.subr.mxu0 0.0
    %2712 = vmatpush2.msra.mxu0 0.0
    %2713 = vmatprep.mubr.f32.mxu0 0.0
    %2714 = vmatmul.mubr.f32.gmra.mxu0 %v2647
    %v2715 = vpop.f32.mrf.mxu0
    %v2716 = vadd.f32 %v2638, %v2715
    %v2717 = vpop.f32.mrf.mxu0
    %2718 = vdwg.mxu0
    %2719 = vst.msk [vmem:[#allocation2] sm:$0xff] %vm47, %v2716
    // Predicated region
    $region14: #{vae_forward.1} parent=1 // pred_check
      _
    $region15: #{vae_forward.1} parent=1 // pred_check_branch
      %2721 = sbr.rel (0) target = $region17
    $region16: #{vae_forward.1} parent=1 // pred_region
      %s2723 = ssub.s32 128, 128
      %2724 = vsyncadd [#allocation3], %s2723
      %s2726 = sshll.u32 [#allocation2], 4
      %s2727 = int_to_ptr.vmem [resolvable:$true] %s2726
      %2729 = dma.vmem_to_hbm [thread:$0]  %s2727, 128, %s3, [#allocation3]
    $region17: #{vae_forward.1} parent=1 // pred_fallthru
      _
    // Predicated region
    $region18: #{vae_forward.1} parent=1 // pred_check
      _
    $region19: #{vae_forward.1} parent=1 // pred_check_branch
      %2731 = sbr.rel (0) target = $region21
    $region20: #{vae_forward.1} parent=1 // pred_region
      _
    $region21: #{vae_forward.1} parent=1 // pred_fallthru
      _
    // Predicated region
    $region22: #{vae_forward.1} parent=1 // pred_check
      _
    $region23: #{vae_forward.1} parent=1 // pred_check_branch
      %2733 = sbr.rel (0) target = $region25
    $region24: #{vae_forward.1} parent=1 // pred_region
      _
    $region25: #{vae_forward.1} parent=1 // pred_fallthru
      _
    // Predicated region
    $region26: #{vae_forward.1} parent=1 // pred_check
      _
    $region27: #{vae_forward.1} parent=1 // pred_check_branch
      %2735 = sbr.rel (0) target = $region29
    $region28: #{vae_forward.1} parent=1 // pred_region
      %2736 = dma.done [#allocation3], 128
    $region29: #{vae_forward.1} parent=1 // pred_fallthru
      _
    // Predicated region
    $region30: #{vae_forward.1} parent=1 // pred_check
      _
    $region31: #{vae_forward.1} parent=1 // pred_check_branch
      %2738 = sbr.rel (0) target = $region33
    $region32: #{vae_forward.1} parent=1 // pred_region
      _
    $region33: #{vae_forward.1} parent=1 // pred_fallthru
      _
    // Predicated region
    $region34: #{vae_forward.1} parent=1 // pred_check
      _
    $region35: #{vae_forward.1} parent=1 // pred_check_branch
      %2740 = sbr.rel (0) target = $region37
    $region36: #{vae_forward.1} parent=1 // pred_region
      _
    $region37: #{vae_forward.1} parent=1 // pred_fallthru
      _
    %2741 = vsyncpa [#allocation3], 1

</llo_original>
